<compile_context>
chip_gen: v7x
topology: tpu7x:2x2x1
jax: 0.10.0
libtpu: 0.0.40
codegen_flags: <defaults>
</compile_context>

<pallas_src>
import jax
import jax.numpy as jnp
from jax.experimental import pallas as pl
from jax.experimental.pallas import tpu as pltpu


# Window offsets into the (+1)-padded input used by output phase 0 / 1, and
# the corresponding original ConvTranspose2d kernel taps:
#   out[n, c, 2*io+ph, 2*jo+pw] = sum_{a,b,cin}
#     x_pad[n, io+_OFF[ph][a], jo+_OFF[pw][b], cin] * w[cin, c, _TAP[ph][a], _TAP[pw][b]]
_OFF = ((0, 1), (1, 2))
_TAP = ((3, 1), (2, 0))


# --------------------------------------------------------------------------
# Kernel 1: transposed conv (stride^2 phase decomposition) + partial BN stats
# --------------------------------------------------------------------------
def _make_conv_stats_kernel(th, W, ci, co):
    rows = th * W                       # matmul rows per (tile, phase)
    inv_rows = 1.0 / float(rows)

    def kernel(x_ref, w_ref, y_ref, psum_ref, pssq_ref):
        # x_ref   : (1, 1, th+2, W+2, ci)  bf16  padded input slab (2-row halo)
        # w_ref   : (2, 2, 2, 2, ci, co)   bf16  per-(ph, pw, a, b) sub-kernels
        # y_ref   : (1, th, 2, W, 2*co)    bf16  phase-interleaved conv output
        # psum/pssq: (1, 1, 4, co)         f32   per-(tile, phase) sum / centered ssq

        # Nine shifted 3x3-window views flattened to (rows, ci); VMEM-only
        # slices of the slab -- no HBM patch matrix is ever built.
        wins = {}
        for dr in range(3):
            for dc in range(3):
                wins[(dr, dc)] = x_ref[0, 0, dr:dr + th, dc:dc + W, :].reshape(rows, ci)

        for ph in range(2):
            for pw in range(2):
                k = ph * 2 + pw
                acc = None
                for a in range(2):
                    for b in range(2):
                        part = jnp.dot(wins[(_OFF[ph][a], _OFF[pw][b])],
                                       w_ref[ph, pw, a, b],
                                       preferred_element_type=jnp.float32)
                        acc = part if acc is None else acc + part
                # Per-(tile, phase) statistics, centered at the chunk mean
                # (combined across chunks with Chan's formula in the wrapper).
                s = jnp.sum(acc, axis=0, keepdims=True)             # (1, co)
                d = acc - s * inv_rows
                q = jnp.sum(d * d, axis=0, keepdims=True)           # (1, co)
                psum_ref[0, 0, k:k + 1, :] = s
                pssq_ref[0, 0, k:k + 1, :] = q
                # Store this phase at its final NHWC-interleaved position:
                #   out[n, 2*i+ph, 2*j+pw, c] == y[n, i, ph, j, pw*co + c]
                # TODO(synk): for 2*co < 128 this store is lane-masked; for
                # typical decoder widths (co >= 64) it is lane-dense.
                y_ref[0, :, ph, :, pw * co:(pw + 1) * co] = (
                    acc.reshape(th, W, co).astype(y_ref.dtype))

    return kernel


# --------------------------------------------------------------------------
# Kernel 2: BatchNorm affine (precomputed scale/shift, single FMA) + ReLU
# --------------------------------------------------------------------------
def _bn_relu_kernel(y_ref, scale_ref, shift_ref, o_ref):
    y = y_ref[...].astype(jnp.float32)
    o_ref[...] = jnp.maximum(y * scale_ref[...] + shift_ref[...],
                             0.0).astype(o_ref.dtype)


# --------------------------------------------------------------------------
# Glue (tiny linear algebra / trace-time tiling decisions)
# --------------------------------------------------------------------------
def _spectral_norm(weight, u, eps=1e-12):
    """One power-iteration step, dim=1 (PyTorch default for ConvTranspose2d).

    TODO(synk): PyTorch runs the power iteration under no_grad and persists
    the updated u in-place; only the forward value is reproduced here and the
    updated u is not returned.
    """
    ci, co, kh, kw = weight.shape
    w_mat = jnp.transpose(weight, (1, 0, 2, 3)).reshape(co, -1)
    v = w_mat.T @ u
    v = v / jnp.maximum(jnp.linalg.norm(v), eps)
    u1 = w_mat @ v
    u1 = u1 / jnp.maximum(jnp.linalg.norm(u1), eps)
    sigma = u1 @ (w_mat @ v)
    return weight / sigma


def _choose_h_tile(N, H, W, min_grid=4, max_rows=2048):
    """Row-band height for kernel 1: divides H, bounds the matmul rows, and
    (when possible) keeps >= min_grid grid steps for megacore / pipelining."""
    divs = [d for d in range(1, H + 1) if H % d == 0]
    feasible = [d for d in divs if d * W <= max_rows] or [1]
    good = [d for d in feasible if N * (H // d) >= min_grid]
    return max(good) if good else max(feasible)


def _choose_row_tile(R, cline, vmem_budget=4 << 20, min_tiles=4):
    """Row tile for kernel 2: multiple of 8, VMEM-bounded, >= min_tiles steps.
    If R has no aligned divisor, pad R instead of degrading to one block."""
    per_row = cline * (2 + 4) * 2            # bf16 in + f32 out, double-buffered
    cap = min(R, max(8, vmem_budget // per_row))
    cap = max(8, cap - cap % 8)
    divs = [t for t in range(8, cap + 1, 8) if R % t == 0]
    if divs:
        good = [t for t in divs if R // t >= min_tiles]
        return (max(good) if good else max(divs)), R
    tr = min(cap, 256)
    return tr, ((R + tr - 1) // tr) * tr


def basic_layer_transpose(x, weight, gamma, beta, u, *, ksize=4, dstep=2,
                          padding=1, output_padding=0, eps=1e-5,
                          out_dtype=jnp.float32):
    """Forward pass of BasicLayerTranspose.

    x:      (N, ch_in, H, W)        f32, NCHW (PyTorch layout)
    weight: (ch_in, ch_out, k, k)   ConvTranspose2d weight
    gamma, beta: (ch_out,)          BatchNorm2d affine parameters
    u:      (ch_out,)               spectral-norm left vector estimate
    returns (N, ch_out, 2H, 2W)     NCHW
    """
    N, ci, H, W = x.shape
    ci_w, co, kh, kw = weight.shape
    assert ci == ci_w and kh == ksize and kw == ksize
    # TODO(synk): only the module defaults are supported by the stride^2 phase
    # decomposition; other (ksize, dstep, padding) need a generic sub-kernel builder.
    assert (ksize, dstep, padding, output_padding) == (4, 2, 1, 0)

    w_sn = _spectral_norm(weight, u)

    # ---- per-phase 2x2 sub-kernels (ph, pw, a, b, ci, co), bf16 --------------
    w4 = jnp.zeros((2, 2, 2, 2, ci, co), jnp.float32)
    for ph in range(2):
        for pw in range(2):
            for a in range(2):
                for b in range(2):
                    w4 = w4.at[ph, pw, a, b].set(
                        w_sn[:, :, _TAP[ph][a], _TAP[pw][b]])
    w4 = w4.astype(jnp.bfloat16)

    # ---- padded NHWC input, split into row bands with a 2-row halo -----------
    th = _choose_h_tile(N, H, W)
    T_h = H // th
    x_p = jnp.pad(jnp.transpose(x, (0, 2, 3, 1)),
                  ((0, 0), (1, 1), (1, 1), (0, 0))).astype(jnp.bfloat16)
    if T_h == 1:
        x_tiles = x_p[:, None]                                  # free, no copy
    else:
        x_tiles = jnp.stack(
            [x_p[:, t * th:t * th + th + 2] for t in range(T_h)], axis=1)
    # x_tiles: (N, T_h, th+2, W+2, ci)

    c2 = 2 * co
    cline = W * c2

    # ---- kernel 1: conv (16 small MXU matmuls) + per-tile/phase statistics ---
    y, psum, pssq = pl.pallas_call(
        _make_conv_stats_kernel(th, W, ci, co),
        out_shape=(jax.ShapeDtypeStruct((N, H, 2, W, c2), jnp.bfloat16),
                   jax.ShapeDtypeStruct((N, T_h, 4, co), jnp.float32),
                   jax.ShapeDtypeStruct((N, T_h, 4, co), jnp.float32)),
        grid_spec=pltpu.PrefetchScalarGridSpec(
            num_scalar_prefetch=0,
            grid=(N, T_h),
            in_specs=[
                pl.BlockSpec((1, 1, th + 2, W + 2, ci),
                             lambda n, t: (n, t, 0, 0, 0)),
                pl.BlockSpec((2, 2, 2, 2, ci, co),
                             lambda n, t: (0, 0, 0, 0, 0, 0)),   # resident weights
            ],
            out_specs=[
                pl.BlockSpec((1, th, 2, W, c2), lambda n, t: (n, t, 0, 0, 0)),
                pl.BlockSpec((1, 1, 4, co), lambda n, t: (n, t, 0, 0)),
                pl.BlockSpec((1, 1, 4, co), lambda n, t: (n, t, 0, 0)),
            ]),
        compiler_params=pltpu.CompilerParams(
            dimension_semantics=("parallel", "parallel")),
    )(x_tiles, w4)

    # ---- combine statistics (Chan's parallel-variance formula, f32, tiny) ----
    rows = float(th * W)                       # values per (tile, phase) chunk
    count = float(N * 4 * H * W)               # = N * Hout * Wout
    s = psum.reshape(-1, co)
    q = pssq.reshape(-1, co)
    mean = jnp.sum(s, axis=0) / count
    m_k = s / rows
    m2 = jnp.sum(q, axis=0) + rows * jnp.sum((m_k - mean) ** 2, axis=0)
    var = jnp.maximum(m2 / count, 0.0)         # biased (training-mode BN)
    inv_std = jax.lax.rsqrt(var + eps)
    scale = gamma.astype(jnp.float32) * inv_std
    shift = beta.astype(jnp.float32) - mean * scale
    # NOTE: stats come from the f32 MXU accumulator while kernel 2 normalizes
    # the bf16-rounded y -- a tiny, documented inconsistency (within tolerance).
    scale_row = jnp.tile(scale, 2 * W).reshape(1, cline)
    shift_row = jnp.tile(shift, 2 * W).reshape(1, cline)

    # ---- kernel 2: BatchNorm FMA + ReLU on a lane-dense folded view ----------
    # y's HBM layout (N, H, 2, W, 2*co) reshapes FOR FREE to (N*H*2, W*2*co):
    # the phase unshuffle costs nothing here.
    R = N * H * 2
    y2 = y.reshape(R, cline)
    tr, R_pad = _choose_row_tile(R, cline)
    if R_pad != R:
        y2 = jnp.pad(y2, ((0, R_pad - R), (0, 0)))
    out2 = pl.pallas_call(
        _bn_relu_kernel,
        out_shape=jax.ShapeDtypeStruct((R_pad, cline), out_dtype),
        grid_spec=pltpu.PrefetchScalarGridSpec(
            num_scalar_prefetch=0,
            grid=(R_pad // tr,),
            in_specs=[pl.BlockSpec((tr, cline), lambda i: (i, 0)),
                      pl.BlockSpec((1, cline), lambda i: (0, 0)),
                      pl.BlockSpec((1, cline), lambda i: (0, 0))],
            out_specs=pl.BlockSpec((tr, cline), lambda i: (i, 0))),
        compiler_params=pltpu.CompilerParams(
            dimension_semantics=("parallel",)),
    )(y2, scale_row, shift_row)
    if R_pad != R:
        out2 = out2[:R]

    # Free reshape to NHWC; one final transpose because the module contract is
    # NCHW (use out_dtype=bfloat16 / keep NHWC if the consumer allows it).
    out_nhwc = out2.reshape(N, 2 * H, 2 * W, co)
    return jnp.transpose(out_nhwc, (0, 3, 1, 2))


# --------------------------------------------------------------------------
# Pure-JAX reference (correctness check)
# --------------------------------------------------------------------------
def _reference(x, weight, gamma, beta, u, *, ksize=4, dstep=2, padding=1, eps=1e-5):
    w_sn = _spectral_norm(weight, u)
    w_conv = jnp.flip(w_sn, axis=(2, 3)).transpose(1, 0, 2, 3)   # (co, ci, k, k)
    pad = ksize - 1 - padding
    y = jax.lax.conv_general_dilated(
        x, w_conv, window_strides=(1, 1),
        padding=((pad, pad), (pad, pad)),
        lhs_dilation=(dstep, dstep),
        dimension_numbers=('NCHW', 'OIHW', 'NCHW'))
    mean = y.mean(axis=(0, 2, 3), keepdims=True)
    var = y.var(axis=(0, 2, 3), keepdims=True)          # biased, training-mode BN
    yn = (y - mean) / jnp.sqrt(var + eps)
    yn = yn * gamma.reshape(1, -1, 1, 1) + beta.reshape(1, -1, 1, 1)
    return jnp.maximum(yn, 0.0)


# --------------------------------------------------------------------------
if __name__ == "__main__":
    ch_in, ch_out, ksize = 4, 8, 4
    N, H, W = 2, 16, 16

    key = jax.random.PRNGKey(0)
    k_x, k_w, k_u = jax.random.split(key, 3)
    x = jax.random.normal(k_x, (N, ch_in, H, W), jnp.float32)
    weight = jax.random.normal(k_w, (ch_in, ch_out, ksize, ksize), jnp.float32) * 0.1
    u = jax.random.normal(k_u, (ch_out,), jnp.float32)
    u = u / jnp.linalg.norm(u)
    gamma = jnp.ones((ch_out,), jnp.float32)    # BatchNorm2d weight init
    beta = jnp.zeros((ch_out,), jnp.float32)    # BatchNorm2d bias init

    fwd = jax.jit(basic_layer_transpose)
    out = jax.block_until_ready(fwd(x, weight, gamma, beta, u))
    ref = jax.block_until_ready(_reference(x, weight, gamma, beta, u))

    assert out.shape == (N, ch_out, 2 * H, 2 * W), out.shape
    max_err = float(jnp.max(jnp.abs(out - ref)))
    # bf16 data path (input slabs / weights / intermediate y) vs f32 reference.
    assert max_err < 6e-2, f"mismatch vs reference: {max_err}"

    print("KERNEL_OK")
</pallas_src>

<mosaic_0001>
module attributes {stable_mosaic.version = 11 : i64} {
  func.func @kernel(%arg0: i32, %arg1: i32, %arg2: memref<1x1x10x18x4xbf16, #tpu.memory_space<vmem>>, %arg3: memref<2x2x2x2x4x8xbf16, #tpu.memory_space<vmem>>, %arg4: memref<1x8x2x16x16xbf16, #tpu.memory_space<vmem>>, %arg5: memref<1x1x4x8xf32, #tpu.memory_space<vmem>>, %arg6: memref<1x1x4x8xf32, #tpu.memory_space<vmem>>) attributes {dimension_semantics = [#tpu.dimension_semantics<parallel>, #tpu.dimension_semantics<parallel>], iteration_bounds = array<i64: 2, 2>, scalar_prefetch = 0 : i64, scratch_operands = 0 : i64, tpu.core_type = #tpu.core_type<tc>, window_params = [{transform_indices = @transform_0, window_bounds = array<i64: 1, 1, 10, 18, 4>}, {pipeline_mode = #tpu.pipeline_mode<synchronous>, transform_indices = @transform_1, window_bounds = array<i64: 2, 2, 2, 2, 4, 8>}, {transform_indices = @transform_2, window_bounds = array<i64: 1, 8, 2, 16, 16>}, {transform_indices = @transform_3, window_bounds = array<i64: 1, 1, 4, 8>}, {transform_indices = @transform_4, window_bounds = array<i64: 1, 1, 4, 8>}]} {
    %c0 = arith.constant 0 : index
    %c0_0 = arith.constant 0 : index
    %c0_1 = arith.constant 0 : index
    %c0_2 = arith.constant 0 : index
    %c0_3 = arith.constant 0 : index
    %0 = vector.load %arg2[%c0, %c0_0, %c0_1, %c0_2, %c0_3] : memref<1x1x10x18x4xbf16, #tpu.memory_space<vmem>>, vector<1x1x8x16x4xbf16>
    %1 = vector.shape_cast %0 : vector<1x1x8x16x4xbf16> to vector<8x16x4xbf16>
    %2 = vector.shape_cast %1 : vector<8x16x4xbf16> to vector<128x4xbf16>
    %c0_4 = arith.constant 0 : index
    %c0_5 = arith.constant 0 : index
    %c0_6 = arith.constant 0 : index
    %c1 = arith.constant 1 : index
    %c0_7 = arith.constant 0 : index
    %3 = vector.load %arg2[%c0_4, %c0_5, %c0_6, %c1, %c0_7] : memref<1x1x10x18x4xbf16, #tpu.memory_space<vmem>>, vector<1x1x8x16x4xbf16>
    %4 = vector.shape_cast %3 : vector<1x1x8x16x4xbf16> to vector<8x16x4xbf16>
    %5 = vector.shape_cast %4 : vector<8x16x4xbf16> to vector<128x4xbf16>
    %c0_8 = arith.constant 0 : index
    %c0_9 = arith.constant 0 : index
    %c0_10 = arith.constant 0 : index
    %c2 = arith.constant 2 : index
    %c0_11 = arith.constant 0 : index
    %6 = vector.load %arg2[%c0_8, %c0_9, %c0_10, %c2, %c0_11] : memref<1x1x10x18x4xbf16, #tpu.memory_space<vmem>>, vector<1x1x8x16x4xbf16>
    %7 = vector.shape_cast %6 : vector<1x1x8x16x4xbf16> to vector<8x16x4xbf16>
    %8 = vector.shape_cast %7 : vector<8x16x4xbf16> to vector<128x4xbf16>
    %c0_12 = arith.constant 0 : index
    %c0_13 = arith.constant 0 : index
    %c1_14 = arith.constant 1 : index
    %c0_15 = arith.constant 0 : index
    %c0_16 = arith.constant 0 : index
    %9 = vector.load %arg2[%c0_12, %c0_13, %c1_14, %c0_15, %c0_16] : memref<1x1x10x18x4xbf16, #tpu.memory_space<vmem>>, vector<1x1x8x16x4xbf16>
    %10 = vector.shape_cast %9 : vector<1x1x8x16x4xbf16> to vector<8x16x4xbf16>
    %11 = vector.shape_cast %10 : vector<8x16x4xbf16> to vector<128x4xbf16>
    %c0_17 = arith.constant 0 : index
    %c0_18 = arith.constant 0 : index
    %c1_19 = arith.constant 1 : index
    %c1_20 = arith.constant 1 : index
    %c0_21 = arith.constant 0 : index
    %12 = vector.load %arg2[%c0_17, %c0_18, %c1_19, %c1_20, %c0_21] : memref<1x1x10x18x4xbf16, #tpu.memory_space<vmem>>, vector<1x1x8x16x4xbf16>
    %13 = vector.shape_cast %12 : vector<1x1x8x16x4xbf16> to vector<8x16x4xbf16>
    %14 = vector.shape_cast %13 : vector<8x16x4xbf16> to vector<128x4xbf16>
    %c0_22 = arith.constant 0 : index
    %c0_23 = arith.constant 0 : index
    %c1_24 = arith.constant 1 : index
    %c2_25 = arith.constant 2 : index
    %c0_26 = arith.constant 0 : index
    %15 = vector.load %arg2[%c0_22, %c0_23, %c1_24, %c2_25, %c0_26] : memref<1x1x10x18x4xbf16, #tpu.memory_space<vmem>>, vector<1x1x8x16x4xbf16>
    %16 = vector.shape_cast %15 : vector<1x1x8x16x4xbf16> to vector<8x16x4xbf16>
    %17 = vector.shape_cast %16 : vector<8x16x4xbf16> to vector<128x4xbf16>
    %c0_27 = arith.constant 0 : index
    %c0_28 = arith.constant 0 : index
    %c2_29 = arith.constant 2 : index
    %c0_30 = arith.constant 0 : index
    %c0_31 = arith.constant 0 : index
    %18 = vector.load %arg2[%c0_27, %c0_28, %c2_29, %c0_30, %c0_31] : memref<1x1x10x18x4xbf16, #tpu.memory_space<vmem>>, vector<1x1x8x16x4xbf16>
    %19 = vector.shape_cast %18 : vector<1x1x8x16x4xbf16> to vector<8x16x4xbf16>
    %20 = vector.shape_cast %19 : vector<8x16x4xbf16> to vector<128x4xbf16>
    %c0_32 = arith.constant 0 : index
    %c0_33 = arith.constant 0 : index
    %c2_34 = arith.constant 2 : index
    %c1_35 = arith.constant 1 : index
    %c0_36 = arith.constant 0 : index
    %21 = vector.load %arg2[%c0_32, %c0_33, %c2_34, %c1_35, %c0_36] : memref<1x1x10x18x4xbf16, #tpu.memory_space<vmem>>, vector<1x1x8x16x4xbf16>
    %22 = vector.shape_cast %21 : vector<1x1x8x16x4xbf16> to vector<8x16x4xbf16>
    %23 = vector.shape_cast %22 : vector<8x16x4xbf16> to vector<128x4xbf16>
    %c0_37 = arith.constant 0 : index
    %c0_38 = arith.constant 0 : index
    %c2_39 = arith.constant 2 : index
    %c2_40 = arith.constant 2 : index
    %c0_41 = arith.constant 0 : index
    %24 = vector.load %arg2[%c0_37, %c0_38, %c2_39, %c2_40, %c0_41] : memref<1x1x10x18x4xbf16, #tpu.memory_space<vmem>>, vector<1x1x8x16x4xbf16>
    %25 = vector.shape_cast %24 : vector<1x1x8x16x4xbf16> to vector<8x16x4xbf16>
    %26 = vector.shape_cast %25 : vector<8x16x4xbf16> to vector<128x4xbf16>
    %c0_42 = arith.constant 0 : index
    %c0_43 = arith.constant 0 : index
    %c0_44 = arith.constant 0 : index
    %c0_45 = arith.constant 0 : index
    %c0_46 = arith.constant 0 : index
    %c0_47 = arith.constant 0 : index
    %27 = vector.load %arg3[%c0_42, %c0_43, %c0_44, %c0_45, %c0_46, %c0_47] : memref<2x2x2x2x4x8xbf16, #tpu.memory_space<vmem>>, vector<1x1x1x1x4x8xbf16>
    %28 = vector.shape_cast %27 : vector<1x1x1x1x4x8xbf16> to vector<4x8xbf16>
    %cst = arith.constant dense<0.000000e+00> : vector<128x8xf32>
    %29 = tpu.matmul %2, %28, %cst {dimension_numbers = #tpu.dot_dimension_numbers<[1], [0], [0], [1], [0, 0, 1, 1], [], []>} : vector<128x4xbf16>, vector<4x8xbf16>, vector<128x8xf32> -> vector<128x8xf32>
    %c0_48 = arith.constant 0 : index
    %c0_49 = arith.constant 0 : index
    %c0_50 = arith.constant 0 : index
    %c1_51 = arith.constant 1 : index
    %c0_52 = arith.constant 0 : index
    %c0_53 = arith.constant 0 : index
    %30 = vector.load %arg3[%c0_48, %c0_49, %c0_50, %c1_51, %c0_52, %c0_53] : memref<2x2x2x2x4x8xbf16, #tpu.memory_space<vmem>>, vector<1x1x1x1x4x8xbf16>
    %31 = vector.shape_cast %30 : vector<1x1x1x1x4x8xbf16> to vector<4x8xbf16>
    %cst_54 = arith.constant dense<0.000000e+00> : vector<128x8xf32>
    %32 = tpu.matmul %5, %31, %cst_54 {dimension_numbers = #tpu.dot_dimension_numbers<[1], [0], [0], [1], [0, 0, 1, 1], [], []>} : vector<128x4xbf16>, vector<4x8xbf16>, vector<128x8xf32> -> vector<128x8xf32>
    %33 = arith.addf %29, %32 : vector<128x8xf32>
    %c0_55 = arith.constant 0 : index
    %c0_56 = arith.constant 0 : index
    %c1_57 = arith.constant 1 : index
    %c0_58 = arith.constant 0 : index
    %c0_59 = arith.constant 0 : index
    %c0_60 = arith.constant 0 : index
    %34 = vector.load %arg3[%c0_55, %c0_56, %c1_57, %c0_58, %c0_59, %c0_60] : memref<2x2x2x2x4x8xbf16, #tpu.memory_space<vmem>>, vector<1x1x1x1x4x8xbf16>
    %35 = vector.shape_cast %34 : vector<1x1x1x1x4x8xbf16> to vector<4x8xbf16>
    %cst_61 = arith.constant dense<0.000000e+00> : vector<128x8xf32>
    %36 = tpu.matmul %11, %35, %cst_61 {dimension_numbers = #tpu.dot_dimension_numbers<[1], [0], [0], [1], [0, 0, 1, 1], [], []>} : vector<128x4xbf16>, vector<4x8xbf16>, vector<128x8xf32> -> vector<128x8xf32>
    %37 = arith.addf %33, %36 : vector<128x8xf32>
    %c0_62 = arith.constant 0 : index
    %c0_63 = arith.constant 0 : index
    %c1_64 = arith.constant 1 : index
    %c1_65 = arith.constant 1 : index
    %c0_66 = arith.constant 0 : index
    %c0_67 = arith.constant 0 : index
    %38 = vector.load %arg3[%c0_62, %c0_63, %c1_64, %c1_65, %c0_66, %c0_67] : memref<2x2x2x2x4x8xbf16, #tpu.memory_space<vmem>>, vector<1x1x1x1x4x8xbf16>
    %39 = vector.shape_cast %38 : vector<1x1x1x1x4x8xbf16> to vector<4x8xbf16>
    %cst_68 = arith.constant dense<0.000000e+00> : vector<128x8xf32>
    %40 = tpu.matmul %14, %39, %cst_68 {dimension_numbers = #tpu.dot_dimension_numbers<[1], [0], [0], [1], [0, 0, 1, 1], [], []>} : vector<128x4xbf16>, vector<4x8xbf16>, vector<128x8xf32> -> vector<128x8xf32>
    %41 = arith.addf %37, %40 : vector<128x8xf32>
    %cst_69 = arith.constant dense<0.000000e+00> : vector<8xf32>
    %42 = vector.multi_reduction <add>, %41, %cst_69 [0] : vector<128x8xf32> to vector<8xf32>
    %43 = vector.shape_cast %42 : vector<8xf32> to vector<1x8xf32>
    %cst_70 = arith.constant 7.812500e-03 : f32
    %44 = vector.broadcast %cst_70 : f32 to vector<1x8xf32>
    %45 = arith.mulf %43, %44 : vector<1x8xf32>
    %46 = vector.broadcast %45 : vector<1x8xf32> to vector<128x8xf32>
    %47 = arith.subf %41, %46 : vector<128x8xf32>
    %48 = arith.mulf %47, %47 : vector<128x8xf32>
    %cst_71 = arith.constant dense<0.000000e+00> : vector<8xf32>
    %49 = vector.multi_reduction <add>, %48, %cst_71 [0] : vector<128x8xf32> to vector<8xf32>
    %50 = vector.shape_cast %49 : vector<8xf32> to vector<1x8xf32>
    %c0_72 = arith.constant 0 : index
    %c0_73 = arith.constant 0 : index
    %c0_74 = arith.constant 0 : index
    %c0_75 = arith.constant 0 : index
    %51 = vector.load %arg5[%c0_72, %c0_73, %c0_74, %c0_75] : memref<1x1x4x8xf32, #tpu.memory_space<vmem>>, vector<1x1x1x8xf32>
    %52 = vector.shape_cast %51 : vector<1x1x1x8xf32> to vector<1x8xf32>
    %53 = vector.shape_cast %43 : vector<1x8xf32> to vector<1x1x1x8xf32>
    tpu.vector_store %arg5[%c0_72, %c0_73, %c0_74, %c0_75], %53 {strides = array<i32>} : memref<1x1x4x8xf32, #tpu.memory_space<vmem>>, vector<1x1x1x8xf32>,
    %c0_76 = arith.constant 0 : index
    %c0_77 = arith.constant 0 : index
    %c0_78 = arith.constant 0 : index
    %c0_79 = arith.constant 0 : index
    %54 = vector.load %arg6[%c0_76, %c0_77, %c0_78, %c0_79] : memref<1x1x4x8xf32, #tpu.memory_space<vmem>>, vector<1x1x1x8xf32>
    %55 = vector.shape_cast %54 : vector<1x1x1x8xf32> to vector<1x8xf32>
    %56 = vector.shape_cast %50 : vector<1x8xf32> to vector<1x1x1x8xf32>
    tpu.vector_store %arg6[%c0_76, %c0_77, %c0_78, %c0_79], %56 {strides = array<i32>} : memref<1x1x4x8xf32, #tpu.memory_space<vmem>>, vector<1x1x1x8xf32>,
    %57 = vector.shape_cast %41 : vector<128x8xf32> to vector<8x16x8xf32>
    %58 = arith.truncf %57 : vector<8x16x8xf32> to vector<8x16x8xbf16>
    %c0_80 = arith.constant 0 : index
    %c0_81 = arith.constant 0 : index
    %c0_82 = arith.constant 0 : index
    %c0_83 = arith.constant 0 : index
    %c0_84 = arith.constant 0 : index
    %59 = vector.load %arg4[%c0_80, %c0_81, %c0_82, %c0_83, %c0_84] : memref<1x8x2x16x16xbf16, #tpu.memory_space<vmem>>, vector<1x8x1x16x8xbf16>
    %60 = vector.shape_cast %59 : vector<1x8x1x16x8xbf16> to vector<8x16x8xbf16>
    %61 = vector.shape_cast %58 : vector<8x16x8xbf16> to vector<1x8x1x16x8xbf16>
    tpu.vector_store %arg4[%c0_80, %c0_81, %c0_82, %c0_83, %c0_84], %61 {strides = array<i32>} : memref<1x8x2x16x16xbf16, #tpu.memory_space<vmem>>, vector<1x8x1x16x8xbf16>,
    %c0_85 = arith.constant 0 : index
    %c1_86 = arith.constant 1 : index
    %c0_87 = arith.constant 0 : index
    %c0_88 = arith.constant 0 : index
    %c0_89 = arith.constant 0 : index
    %c0_90 = arith.constant 0 : index
    %62 = vector.load %arg3[%c0_85, %c1_86, %c0_87, %c0_88, %c0_89, %c0_90] : memref<2x2x2x2x4x8xbf16, #tpu.memory_space<vmem>>, vector<1x1x1x1x4x8xbf16>
    %63 = vector.shape_cast %62 : vector<1x1x1x1x4x8xbf16> to vector<4x8xbf16>
    %cst_91 = arith.constant dense<0.000000e+00> : vector<128x8xf32>
    %64 = tpu.matmul %5, %63, %cst_91 {dimension_numbers = #tpu.dot_dimension_numbers<[1], [0], [0], [1], [0, 0, 1, 1], [], []>} : vector<128x4xbf16>, vector<4x8xbf16>, vector<128x8xf32> -> vector<128x8xf32>
    %c0_92 = arith.constant 0 : index
    %c1_93 = arith.constant 1 : index
    %c0_94 = arith.constant 0 : index
    %c1_95 = arith.constant 1 : index
    %c0_96 = arith.constant 0 : index
    %c0_97 = arith.constant 0 : index
    %65 = vector.load %arg3[%c0_92, %c1_93, %c0_94, %c1_95, %c0_96, %c0_97] : memref<2x2x2x2x4x8xbf16, #tpu.memory_space<vmem>>, vector<1x1x1x1x4x8xbf16>
    %66 = vector.shape_cast %65 : vector<1x1x1x1x4x8xbf16> to vector<4x8xbf16>
    %cst_98 = arith.constant dense<0.000000e+00> : vector<128x8xf32>
    %67 = tpu.matmul %8, %66, %cst_98 {dimension_numbers = #tpu.dot_dimension_numbers<[1], [0], [0], [1], [0, 0, 1, 1], [], []>} : vector<128x4xbf16>, vector<4x8xbf16>, vector<128x8xf32> -> vector<128x8xf32>
    %68 = arith.addf %64, %67 : vector<128x8xf32>
    %c0_99 = arith.constant 0 : index
    %c1_100 = arith.constant 1 : index
    %c1_101 = arith.constant 1 : index
    %c0_102 = arith.constant 0 : index
    %c0_103 = arith.constant 0 : index
    %c0_104 = arith.constant 0 : index
    %69 = vector.load %arg3[%c0_99, %c1_100, %c1_101, %c0_102, %c0_103, %c0_104] : memref<2x2x2x2x4x8xbf16, #tpu.memory_space<vmem>>, vector<1x1x1x1x4x8xbf16>
    %70 = vector.shape_cast %69 : vector<1x1x1x1x4x8xbf16> to vector<4x8xbf16>
    %cst_105 = arith.constant dense<0.000000e+00> : vector<128x8xf32>
    %71 = tpu.matmul %14, %70, %cst_105 {dimension_numbers = #tpu.dot_dimension_numbers<[1], [0], [0], [1], [0, 0, 1, 1], [], []>} : vector<128x4xbf16>, vector<4x8xbf16>, vector<128x8xf32> -> vector<128x8xf32>
    %72 = arith.addf %68, %71 : vector<128x8xf32>
    %c0_106 = arith.constant 0 : index
    %c1_107 = arith.constant 1 : index
    %c1_108 = arith.constant 1 : index
    %c1_109 = arith.constant 1 : index
    %c0_110 = arith.constant 0 : index
    %c0_111 = arith.constant 0 : index
    %73 = vector.load %arg3[%c0_106, %c1_107, %c1_108, %c1_109, %c0_110, %c0_111] : memref<2x2x2x2x4x8xbf16, #tpu.memory_space<vmem>>, vector<1x1x1x1x4x8xbf16>
    %74 = vector.shape_cast %73 : vector<1x1x1x1x4x8xbf16> to vector<4x8xbf16>
    %cst_112 = arith.constant dense<0.000000e+00> : vector<128x8xf32>
    %75 = tpu.matmul %17, %74, %cst_112 {dimension_numbers = #tpu.dot_dimension_numbers<[1], [0], [0], [1], [0, 0, 1, 1], [], []>} : vector<128x4xbf16>, vector<4x8xbf16>, vector<128x8xf32> -> vector<128x8xf32>
    %76 = arith.addf %72, %75 : vector<128x8xf32>
    %cst_113 = arith.constant dense<0.000000e+00> : vector<8xf32>
    %77 = vector.multi_reduction <add>, %76, %cst_113 [0] : vector<128x8xf32> to vector<8xf32>
    %78 = vector.shape_cast %77 : vector<8xf32> to vector<1x8xf32>
    %cst_114 = arith.constant 7.812500e-03 : f32
    %79 = vector.broadcast %cst_114 : f32 to vector<1x8xf32>
    %80 = arith.mulf %78, %79 : vector<1x8xf32>
    %81 = vector.broadcast %80 : vector<1x8xf32> to vector<128x8xf32>
    %82 = arith.subf %76, %81 : vector<128x8xf32>
    %83 = arith.mulf %82, %82 : vector<128x8xf32>
    %cst_115 = arith.constant dense<0.000000e+00> : vector<8xf32>
    %84 = vector.multi_reduction <add>, %83, %cst_115 [0] : vector<128x8xf32> to vector<8xf32>
    %85 = vector.shape_cast %84 : vector<8xf32> to vector<1x8xf32>
    %c0_116 = arith.constant 0 : index
    %c0_117 = arith.constant 0 : index
    %c1_118 = arith.constant 1 : index
    %c0_119 = arith.constant 0 : index
    %86 = vector.load %arg5[%c0_116, %c0_117, %c1_118, %c0_119] : memref<1x1x4x8xf32, #tpu.memory_space<vmem>>, vector<1x1x1x8xf32>
    %87 = vector.shape_cast %86 : vector<1x1x1x8xf32> to vector<1x8xf32>
    %88 = vector.shape_cast %78 : vector<1x8xf32> to vector<1x1x1x8xf32>
    tpu.vector_store %arg5[%c0_116, %c0_117, %c1_118, %c0_119], %88 {strides = array<i32>} : memref<1x1x4x8xf32, #tpu.memory_space<vmem>>, vector<1x1x1x8xf32>,
    %c0_120 = arith.constant 0 : index
    %c0_121 = arith.constant 0 : index
    %c1_122 = arith.constant 1 : index
    %c0_123 = arith.constant 0 : index
    %89 = vector.load %arg6[%c0_120, %c0_121, %c1_122, %c0_123] : memref<1x1x4x8xf32, #tpu.memory_space<vmem>>, vector<1x1x1x8xf32>
    %90 = vector.shape_cast %89 : vector<1x1x1x8xf32> to vector<1x8xf32>
    %91 = vector.shape_cast %85 : vector<1x8xf32> to vector<1x1x1x8xf32>
    tpu.vector_store %arg6[%c0_120, %c0_121, %c1_122, %c0_123], %91 {strides = array<i32>} : memref<1x1x4x8xf32, #tpu.memory_space<vmem>>, vector<1x1x1x8xf32>,
    %92 = vector.shape_cast %76 : vector<128x8xf32> to vector<8x16x8xf32>
    %93 = arith.truncf %92 : vector<8x16x8xf32> to vector<8x16x8xbf16>
    %c0_124 = arith.constant 0 : index
    %c0_125 = arith.constant 0 : index
    %c0_126 = arith.constant 0 : index
    %c0_127 = arith.constant 0 : index
    %c8 = arith.constant 8 : index
    %94 = vector.load %arg4[%c0_124, %c0_125, %c0_126, %c0_127, %c8] : memref<1x8x2x16x16xbf16, #tpu.memory_space<vmem>>, vector<1x8x1x16x8xbf16>
    %95 = vector.shape_cast %94 : vector<1x8x1x16x8xbf16> to vector<8x16x8xbf16>
    %96 = vector.shape_cast %93 : vector<8x16x8xbf16> to vector<1x8x1x16x8xbf16>
    tpu.vector_store %arg4[%c0_124, %c0_125, %c0_126, %c0_127, %c8], %96 {strides = array<i32>} : memref<1x8x2x16x16xbf16, #tpu.memory_space<vmem>>, vector<1x8x1x16x8xbf16>,
    %c1_128 = arith.constant 1 : index
    %c0_129 = arith.constant 0 : index
    %c0_130 = arith.constant 0 : index
    %c0_131 = arith.constant 0 : index
    %c0_132 = arith.constant 0 : index
    %c0_133 = arith.constant 0 : index
    %97 = vector.load %arg3[%c1_128, %c0_129, %c0_130, %c0_131, %c0_132, %c0_133] : memref<2x2x2x2x4x8xbf16, #tpu.memory_space<vmem>>, vector<1x1x1x1x4x8xbf16>
    %98 = vector.shape_cast %97 : vector<1x1x1x1x4x8xbf16> to vector<4x8xbf16>
    %cst_134 = arith.constant dense<0.000000e+00> : vector<128x8xf32>
    %99 = tpu.matmul %11, %98, %cst_134 {dimension_numbers = #tpu.dot_dimension_numbers<[1], [0], [0], [1], [0, 0, 1, 1], [], []>} : vector<128x4xbf16>, vector<4x8xbf16>, vector<128x8xf32> -> vector<128x8xf32>
    %c1_135 = arith.constant 1 : index
    %c0_136 = arith.constant 0 : index
    %c0_137 = arith.constant 0 : index
    %c1_138 = arith.constant 1 : index
    %c0_139 = arith.constant 0 : index
    %c0_140 = arith.constant 0 : index
    %100 = vector.load %arg3[%c1_135, %c0_136, %c0_137, %c1_138, %c0_139, %c0_140] : memref<2x2x2x2x4x8xbf16, #tpu.memory_space<vmem>>, vector<1x1x1x1x4x8xbf16>
    %101 = vector.shape_cast %100 : vector<1x1x1x1x4x8xbf16> to vector<4x8xbf16>
    %cst_141 = arith.constant dense<0.000000e+00> : vector<128x8xf32>
    %102 = tpu.matmul %14, %101, %cst_141 {dimension_numbers = #tpu.dot_dimension_numbers<[1], [0], [0], [1], [0, 0, 1, 1], [], []>} : vector<128x4xbf16>, vector<4x8xbf16>, vector<128x8xf32> -> vector<128x8xf32>
    %103 = arith.addf %99, %102 : vector<128x8xf32>
    %c1_142 = arith.constant 1 : index
    %c0_143 = arith.constant 0 : index
    %c1_144 = arith.constant 1 : index
    %c0_145 = arith.constant 0 : index
    %c0_146 = arith.constant 0 : index
    %c0_147 = arith.constant 0 : index
    %104 = vector.load %arg3[%c1_142, %c0_143, %c1_144, %c0_145, %c0_146, %c0_147] : memref<2x2x2x2x4x8xbf16, #tpu.memory_space<vmem>>, vector<1x1x1x1x4x8xbf16>
    %105 = vector.shape_cast %104 : vector<1x1x1x1x4x8xbf16> to vector<4x8xbf16>
    %cst_148 = arith.constant dense<0.000000e+00> : vector<128x8xf32>
    %106 = tpu.matmul %20, %105, %cst_148 {dimension_numbers = #tpu.dot_dimension_numbers<[1], [0], [0], [1], [0, 0, 1, 1], [], []>} : vector<128x4xbf16>, vector<4x8xbf16>, vector<128x8xf32> -> vector<128x8xf32>
    %107 = arith.addf %103, %106 : vector<128x8xf32>
    %c1_149 = arith.constant 1 : index
    %c0_150 = arith.constant 0 : index
    %c1_151 = arith.constant 1 : index
    %c1_152 = arith.constant 1 : index
    %c0_153 = arith.constant 0 : index
    %c0_154 = arith.constant 0 : index
    %108 = vector.load %arg3[%c1_149, %c0_150, %c1_151, %c1_152, %c0_153, %c0_154] : memref<2x2x2x2x4x8xbf16, #tpu.memory_space<vmem>>, vector<1x1x1x1x4x8xbf16>
    %109 = vector.shape_cast %108 : vector<1x1x1x1x4x8xbf16> to vector<4x8xbf16>
    %cst_155 = arith.constant dense<0.000000e+00> : vector<128x8xf32>
    %110 = tpu.matmul %23, %109, %cst_155 {dimension_numbers = #tpu.dot_dimension_numbers<[1], [0], [0], [1], [0, 0, 1, 1], [], []>} : vector<128x4xbf16>, vector<4x8xbf16>, vector<128x8xf32> -> vector<128x8xf32>
    %111 = arith.addf %107, %110 : vector<128x8xf32>
    %cst_156 = arith.constant dense<0.000000e+00> : vector<8xf32>
    %112 = vector.multi_reduction <add>, %111, %cst_156 [0] : vector<128x8xf32> to vector<8xf32>
    %113 = vector.shape_cast %112 : vector<8xf32> to vector<1x8xf32>
    %cst_157 = arith.constant 7.812500e-03 : f32
    %114 = vector.broadcast %cst_157 : f32 to vector<1x8xf32>
    %115 = arith.mulf %113, %114 : vector<1x8xf32>
    %116 = vector.broadcast %115 : vector<1x8xf32> to vector<128x8xf32>
    %117 = arith.subf %111, %116 : vector<128x8xf32>
    %118 = arith.mulf %117, %117 : vector<128x8xf32>
    %cst_158 = arith.constant dense<0.000000e+00> : vector<8xf32>
    %119 = vector.multi_reduction <add>, %118, %cst_158 [0] : vector<128x8xf32> to vector<8xf32>
    %120 = vector.shape_cast %119 : vector<8xf32> to vector<1x8xf32>
    %c0_159 = arith.constant 0 : index
    %c0_160 = arith.constant 0 : index
    %c2_161 = arith.constant 2 : index
    %c0_162 = arith.constant 0 : index
    %121 = vector.load %arg5[%c0_159, %c0_160, %c2_161, %c0_162] : memref<1x1x4x8xf32, #tpu.memory_space<vmem>>, vector<1x1x1x8xf32>
    %122 = vector.shape_cast %121 : vector<1x1x1x8xf32> to vector<1x8xf32>
    %123 = vector.shape_cast %113 : vector<1x8xf32> to vector<1x1x1x8xf32>
    tpu.vector_store %arg5[%c0_159, %c0_160, %c2_161, %c0_162], %123 {strides = array<i32>} : memref<1x1x4x8xf32, #tpu.memory_space<vmem>>, vector<1x1x1x8xf32>,
    %c0_163 = arith.constant 0 : index
    %c0_164 = arith.constant 0 : index
    %c2_165 = arith.constant 2 : index
    %c0_166 = arith.constant 0 : index
    %124 = vector.load %arg6[%c0_163, %c0_164, %c2_165, %c0_166] : memref<1x1x4x8xf32, #tpu.memory_space<vmem>>, vector<1x1x1x8xf32>
    %125 = vector.shape_cast %124 : vector<1x1x1x8xf32> to vector<1x8xf32>
    %126 = vector.shape_cast %120 : vector<1x8xf32> to vector<1x1x1x8xf32>
    tpu.vector_store %arg6[%c0_163, %c0_164, %c2_165, %c0_166], %126 {strides = array<i32>} : memref<1x1x4x8xf32, #tpu.memory_space<vmem>>, vector<1x1x1x8xf32>,
    %127 = vector.shape_cast %111 : vector<128x8xf32> to vector<8x16x8xf32>
    %128 = arith.truncf %127 : vector<8x16x8xf32> to vector<8x16x8xbf16>
    %c0_167 = arith.constant 0 : index
    %c0_168 = arith.constant 0 : index
    %c1_169 = arith.constant 1 : index
    %c0_170 = arith.constant 0 : index
    %c0_171 = arith.constant 0 : index
    %129 = vector.load %arg4[%c0_167, %c0_168, %c1_169, %c0_170, %c0_171] : memref<1x8x2x16x16xbf16, #tpu.memory_space<vmem>>, vector<1x8x1x16x8xbf16>
    %130 = vector.shape_cast %129 : vector<1x8x1x16x8xbf16> to vector<8x16x8xbf16>
    %131 = vector.shape_cast %128 : vector<8x16x8xbf16> to vector<1x8x1x16x8xbf16>
    tpu.vector_store %arg4[%c0_167, %c0_168, %c1_169, %c0_170, %c0_171], %131 {strides = array<i32>} : memref<1x8x2x16x16xbf16, #tpu.memory_space<vmem>>, vector<1x8x1x16x8xbf16>,
    %c1_172 = arith.constant 1 : index
    %c1_173 = arith.constant 1 : index
    %c0_174 = arith.constant 0 : index
    %c0_175 = arith.constant 0 : index
    %c0_176 = arith.constant 0 : index
    %c0_177 = arith.constant 0 : index
    %132 = vector.load %arg3[%c1_172, %c1_173, %c0_174, %c0_175, %c0_176, %c0_177] : memref<2x2x2x2x4x8xbf16, #tpu.memory_space<vmem>>, vector<1x1x1x1x4x8xbf16>
    %133 = vector.shape_cast %132 : vector<1x1x1x1x4x8xbf16> to vector<4x8xbf16>
    %cst_178 = arith.constant dense<0.000000e+00> : vector<128x8xf32>
    %134 = tpu.matmul %14, %133, %cst_178 {dimension_numbers = #tpu.dot_dimension_numbers<[1], [0], [0], [1], [0, 0, 1, 1], [], []>} : vector<128x4xbf16>, vector<4x8xbf16>, vector<128x8xf32> -> vector<128x8xf32>
    %c1_179 = arith.constant 1 : index
    %c1_180 = arith.constant 1 : index
    %c0_181 = arith.constant 0 : index
    %c1_182 = arith.constant 1 : index
    %c0_183 = arith.constant 0 : index
    %c0_184 = arith.constant 0 : index
    %135 = vector.load %arg3[%c1_179, %c1_180, %c0_181, %c1_182, %c0_183, %c0_184] : memref<2x2x2x2x4x8xbf16, #tpu.memory_space<vmem>>, vector<1x1x1x1x4x8xbf16>
    %136 = vector.shape_cast %135 : vector<1x1x1x1x4x8xbf16> to vector<4x8xbf16>
    %cst_185 = arith.constant dense<0.000000e+00> : vector<128x8xf32>
    %137 = tpu.matmul %17, %136, %cst_185 {dimension_numbers = #tpu.dot_dimension_numbers<[1], [0], [0], [1], [0, 0, 1, 1], [], []>} : vector<128x4xbf16>, vector<4x8xbf16>, vector<128x8xf32> -> vector<128x8xf32>
    %138 = arith.addf %134, %137 : vector<128x8xf32>
    %c1_186 = arith.constant 1 : index
    %c1_187 = arith.constant 1 : index
    %c1_188 = arith.constant 1 : index
    %c0_189 = arith.constant 0 : index
    %c0_190 = arith.constant 0 : index
    %c0_191 = arith.constant 0 : index
    %139 = vector.load %arg3[%c1_186, %c1_187, %c1_188, %c0_189, %c0_190, %c0_191] : memref<2x2x2x2x4x8xbf16, #tpu.memory_space<vmem>>, vector<1x1x1x1x4x8xbf16>
    %140 = vector.shape_cast %139 : vector<1x1x1x1x4x8xbf16> to vector<4x8xbf16>
    %cst_192 = arith.constant dense<0.000000e+00> : vector<128x8xf32>
    %141 = tpu.matmul %23, %140, %cst_192 {dimension_numbers = #tpu.dot_dimension_numbers<[1], [0], [0], [1], [0, 0, 1, 1], [], []>} : vector<128x4xbf16>, vector<4x8xbf16>, vector<128x8xf32> -> vector<128x8xf32>
    %142 = arith.addf %138, %141 : vector<128x8xf32>
    %c1_193 = arith.constant 1 : index
    %c1_194 = arith.constant 1 : index
    %c1_195 = arith.constant 1 : index
    %c1_196 = arith.constant 1 : index
    %c0_197 = arith.constant 0 : index
    %c0_198 = arith.constant 0 : index
    %143 = vector.load %arg3[%c1_193, %c1_194, %c1_195, %c1_196, %c0_197, %c0_198] : memref<2x2x2x2x4x8xbf16, #tpu.memory_space<vmem>>, vector<1x1x1x1x4x8xbf16>
    %144 = vector.shape_cast %143 : vector<1x1x1x1x4x8xbf16> to vector<4x8xbf16>
    %cst_199 = arith.constant dense<0.000000e+00> : vector<128x8xf32>
    %145 = tpu.matmul %26, %144, %cst_199 {dimension_numbers = #tpu.dot_dimension_numbers<[1], [0], [0], [1], [0, 0, 1, 1], [], []>} : vector<128x4xbf16>, vector<4x8xbf16>, vector<128x8xf32> -> vector<128x8xf32>
    %146 = arith.addf %142, %145 : vector<128x8xf32>
    %cst_200 = arith.constant dense<0.000000e+00> : vector<8xf32>
    %147 = vector.multi_reduction <add>, %146, %cst_200 [0] : vector<128x8xf32> to vector<8xf32>
    %148 = vector.shape_cast %147 : vector<8xf32> to vector<1x8xf32>
    %cst_201 = arith.constant 7.812500e-03 : f32
    %149 = vector.broadcast %cst_201 : f32 to vector<1x8xf32>
    %150 = arith.mulf %148, %149 : vector<1x8xf32>
    %151 = vector.broadcast %150 : vector<1x8xf32> to vector<128x8xf32>
    %152 = arith.subf %146, %151 : vector<128x8xf32>
    %153 = arith.mulf %152, %152 : vector<128x8xf32>
    %cst_202 = arith.constant dense<0.000000e+00> : vector<8xf32>
    %154 = vector.multi_reduction <add>, %153, %cst_202 [0] : vector<128x8xf32> to vector<8xf32>
    %155 = vector.shape_cast %154 : vector<8xf32> to vector<1x8xf32>
    %c0_203 = arith.constant 0 : index
    %c0_204 = arith.constant 0 : index
    %c3 = arith.constant 3 : index
    %c0_205 = arith.constant 0 : index
    %156 = vector.load %arg5[%c0_203, %c0_204, %c3, %c0_205] : memref<1x1x4x8xf32, #tpu.memory_space<vmem>>, vector<1x1x1x8xf32>
    %157 = vector.shape_cast %156 : vector<1x1x1x8xf32> to vector<1x8xf32>
    %158 = vector.shape_cast %148 : vector<1x8xf32> to vector<1x1x1x8xf32>
    tpu.vector_store %arg5[%c0_203, %c0_204, %c3, %c0_205], %158 {strides = array<i32>} : memref<1x1x4x8xf32, #tpu.memory_space<vmem>>, vector<1x1x1x8xf32>,
    %c0_206 = arith.constant 0 : index
    %c0_207 = arith.constant 0 : index
    %c3_208 = arith.constant 3 : index
    %c0_209 = arith.constant 0 : index
    %159 = vector.load %arg6[%c0_206, %c0_207, %c3_208, %c0_209] : memref<1x1x4x8xf32, #tpu.memory_space<vmem>>, vector<1x1x1x8xf32>
    %160 = vector.shape_cast %159 : vector<1x1x1x8xf32> to vector<1x8xf32>
    %161 = vector.shape_cast %155 : vector<1x8xf32> to vector<1x1x1x8xf32>
    tpu.vector_store %arg6[%c0_206, %c0_207, %c3_208, %c0_209], %161 {strides = array<i32>} : memref<1x1x4x8xf32, #tpu.memory_space<vmem>>, vector<1x1x1x8xf32>,
    %162 = vector.shape_cast %146 : vector<128x8xf32> to vector<8x16x8xf32>
    %163 = arith.truncf %162 : vector<8x16x8xf32> to vector<8x16x8xbf16>
    %c0_210 = arith.constant 0 : index
    %c0_211 = arith.constant 0 : index
    %c1_212 = arith.constant 1 : index
    %c0_213 = arith.constant 0 : index
    %c8_214 = arith.constant 8 : index
    %164 = vector.load %arg4[%c0_210, %c0_211, %c1_212, %c0_213, %c8_214] : memref<1x8x2x16x16xbf16, #tpu.memory_space<vmem>>, vector<1x8x1x16x8xbf16>
    %165 = vector.shape_cast %164 : vector<1x8x1x16x8xbf16> to vector<8x16x8xbf16>
    %166 = vector.shape_cast %163 : vector<8x16x8xbf16> to vector<1x8x1x16x8xbf16>
    tpu.vector_store %arg4[%c0_210, %c0_211, %c1_212, %c0_213, %c8_214], %166 {strides = array<i32>} : memref<1x8x2x16x16xbf16, #tpu.memory_space<vmem>>, vector<1x8x1x16x8xbf16>,
    return
  }
  func.func @transform_0(%arg0: i32, %arg1: i32) -> (i32, i32, i32, i32, i32) {
    %c0_i32 = arith.constant 0 : i32
    %c0_i32_0 = arith.constant 0 : i32
    %c0_i32_1 = arith.constant 0 : i32
    %c0_i32_2 = arith.constant 0 : i32
    return %arg0, %arg1, %c0_i32, %c0_i32_0, %c0_i32_1 : i32, i32, i32, i32, i32
  }
  func.func @transform_1(%arg0: i32, %arg1: i32) -> (i32, i32, i32, i32, i32, i32) {
    %c0_i32 = arith.constant 0 : i32
    %c0_i32_0 = arith.constant 0 : i32
    %c0_i32_1 = arith.constant 0 : i32
    %c0_i32_2 = arith.constant 0 : i32
    %c0_i32_3 = arith.constant 0 : i32
    %c0_i32_4 = arith.constant 0 : i32
    %c0_i32_5 = arith.constant 0 : i32
    return %c0_i32, %c0_i32_0, %c0_i32_1, %c0_i32_2, %c0_i32_3, %c0_i32_4 : i32, i32, i32, i32, i32, i32
  }
  func.func @transform_2(%arg0: i32, %arg1: i32) -> (i32, i32, i32, i32, i32) {
    %c0_i32 = arith.constant 0 : i32
    %c0_i32_0 = arith.constant 0 : i32
    %c0_i32_1 = arith.constant 0 : i32
    %c0_i32_2 = arith.constant 0 : i32
    return %arg0, %arg1, %c0_i32, %c0_i32_0, %c0_i32_1 : i32, i32, i32, i32, i32
  }
  func.func @transform_3(%arg0: i32, %arg1: i32) -> (i32, i32, i32, i32) {
    %c0_i32 = arith.constant 0 : i32
    %c0_i32_0 = arith.constant 0 : i32
    %c0_i32_1 = arith.constant 0 : i32
    return %arg0, %arg1, %c0_i32, %c0_i32_0 : i32, i32, i32, i32
  }
  func.func @transform_4(%arg0: i32, %arg1: i32) -> (i32, i32, i32, i32) {
    %c0_i32 = arith.constant 0 : i32
    %c0_i32_0 = arith.constant 0 : i32
    %c0_i32_1 = arith.constant 0 : i32
    return %arg0, %arg1, %c0_i32, %c0_i32_0 : i32, i32, i32, i32
  }
}

module attributes {stable_mosaic.version = 11 : i64} {
  func.func @_bn_relu_kernel(%arg0: i32, %arg1: memref<16x256xbf16, #tpu.memory_space<vmem>>, %arg2: memref<1x256xf32, #tpu.memory_space<vmem>>, %arg3: memref<1x256xf32, #tpu.memory_space<vmem>>, %arg4: memref<16x256xf32, #tpu.memory_space<vmem>>) attributes {dimension_semantics = [#tpu.dimension_semantics<parallel>], iteration_bounds = array<i64: 4>, scalar_prefetch = 0 : i64, scratch_operands = 0 : i64, tpu.core_type = #tpu.core_type<tc>, window_params = [{transform_indices = @transform_0, window_bounds = array<i64: 16, 256>}, {pipeline_mode = #tpu.pipeline_mode<synchronous>, transform_indices = @transform_1, window_bounds = array<i64: 1, 256>}, {pipeline_mode = #tpu.pipeline_mode<synchronous>, transform_indices = @transform_2, window_bounds = array<i64: 1, 256>}, {transform_indices = @transform_3, window_bounds = array<i64: 16, 256>}]} {
    %c0 = arith.constant 0 : index
    %c0_0 = arith.constant 0 : index
    %0 = vector.load %arg1[%c0, %c0_0] : memref<16x256xbf16, #tpu.memory_space<vmem>>, vector<16x256xbf16>
    %1 = arith.extf %0 : vector<16x256xbf16> to vector<16x256xf32>
    %c0_1 = arith.constant 0 : index
    %c0_2 = arith.constant 0 : index
    %2 = vector.load %arg2[%c0_1, %c0_2] : memref<1x256xf32, #tpu.memory_space<vmem>>, vector<1x256xf32>
    %3 = vector.broadcast %2 : vector<1x256xf32> to vector<16x256xf32>
    %4 = arith.mulf %1, %3 : vector<16x256xf32>
    %c0_3 = arith.constant 0 : index
    %c0_4 = arith.constant 0 : index
    %5 = vector.load %arg3[%c0_3, %c0_4] : memref<1x256xf32, #tpu.memory_space<vmem>>, vector<1x256xf32>
    %6 = vector.broadcast %5 : vector<1x256xf32> to vector<16x256xf32>
    %7 = arith.addf %4, %6 : vector<16x256xf32>
    %cst = arith.constant 0.000000e+00 : f32
    %8 = vector.broadcast %cst : f32 to vector<16x256xf32>
    %9 = arith.maximumf %7, %8 : vector<16x256xf32>
    %c0_5 = arith.constant 0 : index
    %c0_6 = arith.constant 0 : index
    %10 = vector.load %arg4[%c0_5, %c0_6] : memref<16x256xf32, #tpu.memory_space<vmem>>, vector<16x256xf32>
    tpu.vector_store %arg4[%c0_5, %c0_6], %9 {strides = array<i32>} : memref<16x256xf32, #tpu.memory_space<vmem>>, vector<16x256xf32>,
    return
  }
  func.func @transform_0(%arg0: i32) -> (i32, i32) {
    %c0_i32 = arith.constant 0 : i32
    %c0_i32_0 = arith.constant 0 : i32
    return %arg0, %c0_i32 : i32, i32
  }
  func.func @transform_1(%arg0: i32) -> (i32, i32) {
    %c0_i32 = arith.constant 0 : i32
    %c0_i32_0 = arith.constant 0 : i32
    %c0_i32_1 = arith.constant 0 : i32
    return %c0_i32, %c0_i32_0 : i32, i32
  }
  func.func @transform_2(%arg0: i32) -> (i32, i32) {
    %c0_i32 = arith.constant 0 : i32
    %c0_i32_0 = arith.constant 0 : i32
    %c0_i32_1 = arith.constant 0 : i32
    return %c0_i32, %c0_i32_0 : i32, i32
  }
  func.func @transform_3(%arg0: i32) -> (i32, i32) {
    %c0_i32 = arith.constant 0 : i32
    %c0_i32_0 = arith.constant 0 : i32
    return %arg0, %c0_i32 : i32, i32
  }
}

</mosaic_0001>

<llo_original>
// kernel: tile.18
$region0: #{tile.18}
  #allocation0 [shape = 's32[1]{0}', space=sflag, size = 0x4, scoped, tag = 'scoped memory for tile.18']
  %s0 = inlined_call_operand.vmem [shape: f32[8], index: 0, kind: input, shape index: {}]
  %s1 = inlined_call_operand.vmem [shape: f32[32,8], index: 1, kind: output, shape index: {}]
  // Predicated region
  $region2: #{tile.18} parent=0 // pred_check
    _
  $region3: #{tile.18} parent=0 // pred_check_branch
    %3 = sbr.rel (0) target = $region5
  $region4: #{tile.18} parent=0 // pred_region
    _
  $region5: #{tile.18} parent=0 // pred_fallthru
    _
  %v4 = vld [vmem:[%s0] ss:$0 sm:$0xff]
  %5 = vst [vmem:[%s1] sm:$0xff] %v4
  %s6 = scalar_lea.vmem %s1, 8
  %7 = vst [vmem:[%s6] sm:$0xff] %v4
  %s8 = scalar_lea.vmem %s1, 16
  %9 = vst [vmem:[%s8] sm:$0xff] %v4
  %s10 = scalar_lea.vmem %s1, 24
  %11 = vst [vmem:[%s10] sm:$0xff] %v4

// kernel: tile.19
$region0: #{tile.19}
  %s0 = inlined_call_operand.vmem [shape: f32[32,8], index: 0, kind: input, shape index: {}]
  %s1 = inlined_call_operand.vmem [shape: f32[1,256], index: 1, kind: output, shape index: {}]
  $region1: #{tile.19} parent=0
    #allocation0 [shape = 'u8[8192]{0}', space=vmem, size = 0x2000, scoped, tag = 'scoped mem for output reshape']
    %s2 = smov 3
    %v3 = vld [vmem:[%s0] ss:$16 sm:%s2]
    %vm4 = vcmask 64512
    %5 = vst.msk [vmem:[#allocation0] ss:$8 sm:$0x3] %vm4, %v3
    %s6 = scalar_lea.vmem %s0, 15
    %s7 = smov 3
    %v8 = vld [vmem:[%s6] ss:$16 sm:%s7]
    %9 = vrot.lane.b32.xlu0 %v8, 120
    %v10 = vpop.permute.xlu0 %9
    %vm11 = vcmask 1048512
    %12 = vst.msk [vmem:[#allocation0] ss:$8 sm:$0x3] %vm11, %v10
    %s13 = scalar_lea.vmem %s0, 14
    %s14 = smov 3
    %v15 = vld [vmem:[%s13] ss:$16 sm:%s14]
    %16 = vrot.lane.b32.xlu0 %v15, 112
    %v17 = vpop.permute.xlu0 %16
    %vm18 = vcmask 982912
    %19 = vst.msk [vmem:[#allocation0] ss:$8 sm:$0x3] %vm18, %v17
    %s20 = scalar_lea.vmem %s0, 13
    %s21 = smov 3
    %v22 = vld [vmem:[%s20] ss:$16 sm:%s21]
    %23 = vrot.lane.b32.xlu0 %v22, 104
    %v24 = vpop.permute.xlu0 %23
    %vm25 = vcmask 917312
    %26 = vst.msk [vmem:[#allocation0] ss:$8 sm:$0x3] %vm25, %v24
    %s27 = scalar_lea.vmem %s0, 12
    %s28 = smov 3
    %v29 = vld [vmem:[%s27] ss:$16 sm:%s28]
    %30 = vrot.lane.b32.xlu0 %v29, 96
    %v31 = vpop.permute.xlu0 %30
    %vm32 = vcmask 851712
    %33 = vst.msk [vmem:[#allocation0] ss:$8 sm:$0x3] %vm32, %v31
    %s34 = scalar_lea.vmem %s0, 11
    %s35 = smov 3
    %v36 = vld [vmem:[%s34] ss:$16 sm:%s35]
    %37 = vrot.lane.b32.xlu0 %v36, 88
    %v38 = vpop.permute.xlu0 %37
    %vm39 = vcmask 786112
    %40 = vst.msk [vmem:[#allocation0] ss:$8 sm:$0x3] %vm39, %v38
    %s41 = scalar_lea.vmem %s0, 10
    %s42 = smov 3
    %v43 = vld [vmem:[%s41] ss:$16 sm:%s42]
    %44 = vrot.lane.b32.xlu0 %v43, 80
    %v45 = vpop.permute.xlu0 %44
    %vm46 = vcmask 720512
    %47 = vst.msk [vmem:[#allocation0] ss:$8 sm:$0x3] %vm46, %v45
    %s48 = scalar_lea.vmem %s0, 9
    %s49 = smov 3
    %v50 = vld [vmem:[%s48] ss:$16 sm:%s49]
    %51 = vrot.lane.b32.xlu0 %v50, 72
    %v52 = vpop.permute.xlu0 %51
    %vm53 = vcmask 654912
    %54 = vst.msk [vmem:[#allocation0] ss:$8 sm:$0x3] %vm53, %v52
    %s55 = scalar_lea.vmem %s0, 8
    %s56 = smov 3
    %v57 = vld [vmem:[%s55] ss:$16 sm:%s56]
    %58 = vrot.lane.b32.xlu0 %v57, 64
    %v59 = vpop.permute.xlu0 %58
    %vm60 = vcmask 589312
    %61 = vst.msk [vmem:[#allocation0] ss:$8 sm:$0x3] %vm60, %v59
    %s62 = scalar_lea.vmem %s0, 7
    %s63 = smov 3
    %v64 = vld [vmem:[%s62] ss:$16 sm:%s63]
    %65 = vrot.lane.b32.xlu0 %v64, 56
    %v66 = vpop.permute.xlu0 %65
    %vm67 = vcmask 523712
    %68 = vst.msk [vmem:[#allocation0] ss:$8 sm:$0x3] %vm67, %v66
    %s69 = scalar_lea.vmem %s0, 6
    %s70 = smov 3
    %v71 = vld [vmem:[%s69] ss:$16 sm:%s70]
    %72 = vrot.lane.b32.xlu0 %v71, 48
    %v73 = vpop.permute.xlu0 %72
    %vm74 = vcmask 458112
    %75 = vst.msk [vmem:[#allocation0] ss:$8 sm:$0x3] %vm74, %v73
    %s76 = scalar_lea.vmem %s0, 5
    %s77 = smov 3
    %v78 = vld [vmem:[%s76] ss:$16 sm:%s77]
    %79 = vrot.lane.b32.xlu0 %v78, 40
    %v80 = vpop.permute.xlu0 %79
    %vm81 = vcmask 392512
    %82 = vst.msk [vmem:[#allocation0] ss:$8 sm:$0x3] %vm81, %v80
    %s83 = scalar_lea.vmem %s0, 4
    %s84 = smov 3
    %v85 = vld [vmem:[%s83] ss:$16 sm:%s84]
    %86 = vrot.lane.b32.xlu0 %v85, 32
    %v87 = vpop.permute.xlu0 %86
    %vm88 = vcmask 326912
    %89 = vst.msk [vmem:[#allocation0] ss:$8 sm:$0x3] %vm88, %v87
    %s90 = scalar_lea.vmem %s0, 3
    %s91 = smov 3
    %v92 = vld [vmem:[%s90] ss:$16 sm:%s91]
    %93 = vrot.lane.b32.xlu0 %v92, 24
    %v94 = vpop.permute.xlu0 %93
    %vm95 = vcmask 261312
    %96 = vst.msk [vmem:[#allocation0] ss:$8 sm:$0x3] %vm95, %v94
    %s97 = scalar_lea.vmem %s0, 2
    %s98 = smov 3
    %v99 = vld [vmem:[%s97] ss:$16 sm:%s98]
    %100 = vrot.lane.b32.xlu0 %v99, 16
    %v101 = vpop.permute.xlu0 %100
    %vm102 = vcmask 195712
    %103 = vst.msk [vmem:[#allocation0] ss:$8 sm:$0x3] %vm102, %v101
    %s104 = scalar_lea.vmem %s0, 1
    %s105 = smov 3
    %v106 = vld [vmem:[%s104] ss:$16 sm:%s105]
    %107 = vrot.lane.b32.xlu0 %v106, 8
    %v108 = vpop.permute.xlu0 %107
    %vm109 = vcmask 130112
    %110 = vst.msk [vmem:[#allocation0] ss:$8 sm:$0x3] %vm109, %v108
    %s112 = sshllo.u32 0, 1
    %v114 = vld [vmem:[#allocation0] sm:%s112]
    %s115 = sshllo.u32 0, 1
    %116 = vst [vmem:[%s1] sm:%s115] %v114
    %s117 = scalar_lea.vmem [#allocation0], 8
    %v118 = vld [vmem:[%s117] sm:%s112]
    %s119 = sshllo.u32 0, 1
    %s120 = scalar_lea.vmem %s1, 1
    %121 = vst [vmem:[%s120] sm:%s119] %v118

// kernel: basic_layer_transpose.3
$region0: #{basic_layer_transpose.3}
  #allocation0 [shape = 'u32[]', space=smem, size = 0x4, offset = 0x4, fixed_abs, tag = 'smem constant byte address 0x4 - core index']
  #allocation1 [shape = 'u32[144,128]{1,0:T(1,128)}', space=vmem, size = 0x12000, scoped, tag = 'internal scratch']
  %s0 = inlined_call_operand.vmem [shape: bf16[64,256], index: 0, kind: input, shape index: {}]
  %s1 = inlined_call_operand.vmem [shape: f32[1,256], index: 1, kind: input, shape index: {}]
  %s2 = inlined_call_operand.vmem [shape: f32[1,256], index: 2, kind: input, shape index: {}]
  %s3 = inlined_call_operand.vmem [shape: f32[64,256], index: 3, kind: output, shape index: {}]
  %s4 = sld [smem:[#allocation0]]
  $region45: #{basic_layer_transpose.3} parent=0
    _
  %s6 = ssub.s32 1, %s4
  %s7 = scalar_select 0, %s6, %s4
  loop: start=0, step=1, limit=6
  $region2: #{basic_layer_transpose.3} parent=0 // loop_pre_header
    _
  $region3: #{basic_layer_transpose.3} parent=0 // loop_header
    %s9 = sphi 0, %s13
    %p10 = scmp.ge.s32.totalorder %s9, 6
    %s19 = sphi 0, %s21
    %s22 = sphi 0, %s19
    %s23 = sphi 0, %s22
    %s39 = sphi 0, %s23
    %s43 = sphi 0, %s43
    %s45 = sphi 0, %s43
    %s46 = sphi 0, %s45
    %s60 = sphi 0, %s46
    %s64 = sphi 0, %s64
    %s66 = sphi 0, %s64
    %s67 = sphi 0, %s66
    %s81 = sphi 0, %s67
    %s87 = sphi 0, %s89
    %s90 = sphi 0, %s87
    %s91 = sphi 0, %s90
    %s107 = sphi 0, %s91
  $region4: #{basic_layer_transpose.3} parent=0 // loop_header_branch
    %12 = sbr.rel (%p10) target = $region8
  $region5: #{basic_layer_transpose.3} parent=0 // loop_body
    %s14 = ssub.s32 %s9, 1
    %s15 = ssub.s32 %s9, 2
    %s16 = sadd.s32 %s9, 1
    %s17 = ssub.s32 %s9, %s16
    %p18 = scmp.eq.s32.totalorder %s17, 0
    %s20 = sadd.s32 %s19, 1
    %s21 = scalar_select %p18, %s19, %s20
    %p24 = pneg %p18
    %p25 = scmp.eq.s32.totalorder %s9, 3
    %p26 = por %p24, %p25
    %p27 = scmp.ne.s32.totalorder %s19, %s22
    %p28 = scmp.eq.s32.totalorder %s9, 0
    %p29 = por %p27, %p28
    %p30 = scmp.ne.s32.totalorder %s19, %s22
    %p31 = scmp.eq.s32.totalorder %s14, 3
    %p32 = por %p30, %p31
    %p33 = scmp.ne.s32.totalorder %s22, %s23
    %p34 = scmp.eq.s32.totalorder %s14, 0
    %p35 = por %p33, %p34
    %p36 = scmp.ne.s32.totalorder %s22, %s23
    %p37 = scmp.eq.s32.totalorder %s15, 3
    %p38 = por %p36, %p37
    %p40 = scmp.ne.s32.totalorder %s23, %s39
    %p41 = scmp.eq.s32.totalorder %s15, 0
    %p42 = por %p40, %p41
    %s44 = sadd.s32 %s43, 1
    %p47 = scmp.eq.s32.totalorder %s9, 3
    %p48 = scmp.ne.s32.totalorder %s43, %s45
    %p49 = scmp.eq.s32.totalorder %s9, 0
    %p50 = por %p48, %p49
    %p51 = scmp.ne.s32.totalorder %s43, %s45
    %p52 = scmp.eq.s32.totalorder %s14, 3
    %p53 = por %p51, %p52
    %p54 = scmp.ne.s32.totalorder %s45, %s46
    %p55 = scmp.eq.s32.totalorder %s14, 0
    %p56 = por %p54, %p55
    %p57 = scmp.ne.s32.totalorder %s45, %s46
    %p58 = scmp.eq.s32.totalorder %s15, 3
    %p59 = por %p57, %p58
    %p61 = scmp.ne.s32.totalorder %s46, %s60
    %p62 = scmp.eq.s32.totalorder %s15, 0
    %p63 = por %p61, %p62
    %s65 = sadd.s32 %s64, 1
    %p68 = scmp.eq.s32.totalorder %s9, 3
    %p69 = scmp.ne.s32.totalorder %s64, %s66
    %p70 = scmp.eq.s32.totalorder %s9, 0
    %p71 = por %p69, %p70
    %p72 = scmp.ne.s32.totalorder %s64, %s66
    %p73 = scmp.eq.s32.totalorder %s14, 3
    %p74 = por %p72, %p73
    %p75 = scmp.ne.s32.totalorder %s66, %s67
    %p76 = scmp.eq.s32.totalorder %s14, 0
    %p77 = por %p75, %p76
    %p78 = scmp.ne.s32.totalorder %s66, %s67
    %p79 = scmp.eq.s32.totalorder %s15, 3
    %p80 = por %p78, %p79
    %p82 = scmp.ne.s32.totalorder %s67, %s81
    %p83 = scmp.eq.s32.totalorder %s15, 0
    %p84 = por %p82, %p83
    %s85 = ssub.s32 %s9, %s16
    %p86 = scmp.eq.s32.totalorder %s85, 0
    %s88 = sadd.s32 %s87, 1
    %s89 = scalar_select %p86, %s87, %s88
    %p92 = pneg %p86
    %p93 = scmp.eq.s32.totalorder %s9, 3
    %p94 = por %p92, %p93
    %p95 = scmp.ne.s32.totalorder %s87, %s90
    %p96 = scmp.eq.s32.totalorder %s9, 0
    %p97 = por %p95, %p96
    %p98 = scmp.ne.s32.totalorder %s87, %s90
    %p99 = scmp.eq.s32.totalorder %s14, 3
    %p100 = por %p98, %p99
    %p101 = scmp.ne.s32.totalorder %s90, %s91
    %p102 = scmp.eq.s32.totalorder %s14, 0
    %p103 = por %p101, %p102
    %p104 = scmp.ne.s32.totalorder %s90, %s91
    %p105 = scmp.eq.s32.totalorder %s15, 3
    %p106 = por %p104, %p105
    %p108 = scmp.ne.s32.totalorder %s91, %s107
    %p109 = scmp.eq.s32.totalorder %s15, 0
    %p110 = por %p108, %p109
    %p111 = scmp.le.s32.totalorder 1, %s9
    %p112 = scmp.lt.s32.totalorder %s9, 5
    %p113 = pnand %p111, %p112
    %p114 = pneg %p113
    // Predicated region
    $region9: #{basic_layer_transpose.3} parent=5 // pred_check
      _
    $region10: #{basic_layer_transpose.3} parent=5 // pred_check_branch
      %116 = sbr.rel (%p113) target = $region12
    $region11: #{basic_layer_transpose.3} parent=5 // pred_region
      %s117 = ssub.s32 %s9, 1
      // Predicated region
      $region13: #{basic_layer_transpose.3} parent=11 // pred_check
        %p118 = pneg %p56
      $region14: #{basic_layer_transpose.3} parent=11 // pred_check_branch
        %120 = sbr.rel (%p118) target = $region16
      $region15: #{basic_layer_transpose.3} parent=11 // pred_region
        _
      $region16: #{basic_layer_transpose.3} parent=11 // pred_fallthru
        _
      // Predicated region
      $region17: #{basic_layer_transpose.3} parent=11 // pred_check
        %p121 = pneg %p77
      $region18: #{basic_layer_transpose.3} parent=11 // pred_check_branch
        %123 = sbr.rel (%p121) target = $region20
      $region19: #{basic_layer_transpose.3} parent=11 // pred_region
        _
      $region20: #{basic_layer_transpose.3} parent=11 // pred_fallthru
        _
    $region12: #{basic_layer_transpose.3} parent=5 // pred_fallthru
      _
    %p124 = scmp.lt.s32.totalorder %s9, 4
    // Predicated region
    $region21: #{basic_layer_transpose.3} parent=5 // pred_check
      %p125 = pneg %p124
    $region22: #{basic_layer_transpose.3} parent=5 // pred_check_branch
      %127 = sbr.rel (%p125) target = $region24
    $region23: #{basic_layer_transpose.3} parent=5 // pred_region
      // Predicated region
      $region25: #{basic_layer_transpose.3} parent=23 // pred_check
        %p128 = pneg %p29
      $region26: #{basic_layer_transpose.3} parent=23 // pred_check_branch
        %130 = sbr.rel (%p128) target = $region28
      $region27: #{basic_layer_transpose.3} parent=23 // pred_region
        %s131 = smul.u32 2, %s9
        %p132 = scmp.lt.s32.totalorder %s131, 7
        %s133 = scalar_select %p132, %s131, 7
        %s134 = smul.addr %s133, 2
        %s135 = smul.addr %s134, 4
        %s136 = scalar_lea.vmem %s0, %s135
        %s137 = smul.u32 2, %s9
      $region28: #{basic_layer_transpose.3} parent=23 // pred_fallthru
        _
    $region24: #{basic_layer_transpose.3} parent=5 // pred_fallthru
      _
    %p138 = scmp.le.s32.totalorder 1, %s9
    %p139 = scmp.lt.s32.totalorder %s9, 5
    %p140 = pnand %p138, %p139
    %p141 = pneg %p140
    // Predicated region
    $region29: #{basic_layer_transpose.3} parent=5 // pred_check
      _
    $region30: #{basic_layer_transpose.3} parent=5 // pred_check_branch
      %143 = sbr.rel (%p140) target = $region32
    $region31: #{basic_layer_transpose.3} parent=5 // pred_region
      %s144 = ssub.s32 %s9, 1
      %s145 = smul.u32 2, %s14
      %p146 = scmp.lt.s32.totalorder %s145, 7
      %s147 = scalar_select %p146, %s145, 7
      %s148 = smul.addr %s147, 2
      %s149 = smul.addr %s148, 4
      %s150 = scalar_lea.vmem %s0, %s149
      %p151 = pneg %p35
      %p152 = pneg %p32
      %p153 = pneg %p56
      %p154 = pneg %p53
      %p155 = pneg %p77
      %p156 = pneg %p74
      %p157 = pneg %p103
      %p158 = pneg %p100
      %s159 = smul.u32 2, %s14
      %p160 = scmp.lt.s32.totalorder %s159, 7
      %s161 = scalar_select %p160, %s159, 7
      %s162 = smul.addr %s161, 2
      %s163 = smul.addr %s162, 8
      %s164 = scalar_lea.vmem %s3, %s163
      %s165 = smul.u32 2, %s14
      %p166 = scmp.lt.s32.totalorder %s165, 7
      %s167 = scalar_select %p166, %s165, 7
      %s168 = smul.addr %s167, 2
      %s169 = smul.addr %s168, 4
      %s170 = scalar_lea.vmem %s0, %s169
      %s171 = smul.u32 2, %s14
      %s172 = smul.u32 2, %s14
      %p173 = scmp.lt.s32.totalorder %s172, 7
      %s174 = scalar_select %p173, %s172, 7
      %s175 = smul.addr %s174, 2
      %s176 = smul.addr %s175, 8
      %s177 = scalar_lea.vmem %s3, %s176
      %s178 = smul.u32 2, %s14
      %v179 = vld [vmem:[%s170] sm:$0xff]
      %v180 = vld [vmem:[%s170 + $0x8] sm:$0xff]
      %v181 = vunpack.c.l.bf16 %v179
      %v182 = vunpack.c.h.bf16 %v179
      %v183 = vunpack.c.l.bf16 %v180
      %v184 = vunpack.c.h.bf16 %v180
      %v185 = vld [vmem:[%s1] sm:$0x3]
      %v187 = vlaneseq
      %v188 = vshrl.u32 %v187, 7
      %v189 = vsub.s32 0, %v188
      %v190 = vrot.slane %v185, %v189
      %v191 = vlaneseq
      %v192 = vshrl.u32 %v191, 7
      %v193 = vsub.s32 1, %v192
      %v194 = vrot.slane %v185, %v193
      %v197 = vmul.f32 %v181, %v190
      %v198 = vmul.f32 %v182, %v194
      %v199 = vmul.f32 %v183, %v190
      %v200 = vmul.f32 %v184, %v194
      %v201 = vld [vmem:[%s2] sm:$0x3]
      %v203 = vlaneseq
      %v204 = vshrl.u32 %v203, 7
      %v205 = vsub.s32 0, %v204
      %v206 = vrot.slane %v201, %v205
      %v207 = vlaneseq
      %v208 = vshrl.u32 %v207, 7
      %v209 = vsub.s32 1, %v208
      %v210 = vrot.slane %v201, %v209
      %v213 = vadd.f32 %v197, %v206
      %v214 = vadd.f32 %v198, %v210
      %v215 = vadd.f32 %v199, %v206
      %v216 = vadd.f32 %v200, %v210
      %v217 = vmax.f32 %v213, 0.0
      %v218 = vmax.f32 %v214, 0.0
      %v219 = vmax.f32 %v215, 0.0
      %v220 = vmax.f32 %v216, 0.0
      %221 = vst [vmem:[%s177] sm:$0xff] %v217
      %222 = vst [vmem:[%s177 + $0x8] sm:$0xff] %v218
      %223 = vst [vmem:[%s177 + $0x10] sm:$0xff] %v219
      %224 = vst [vmem:[%s177 + $0x18] sm:$0xff] %v220
      %s225 = smul.u32 2, %s14
      %p226 = scmp.lt.s32.totalorder %s225, 7
      %s227 = scalar_select %p226, %s225, 7
      %s228 = smul.addr %s227, 2
      %s229 = smul.addr %s228, 8
      %s230 = scalar_lea.vmem %s3, %s229
      // Predicated region
      $region33: #{basic_layer_transpose.3} parent=31 // pred_check
        %p231 = pneg %p100
      $region34: #{basic_layer_transpose.3} parent=31 // pred_check_branch
        %233 = sbr.rel (%p231) target = $region36
      $region35: #{basic_layer_transpose.3} parent=31 // pred_region
        %s234 = smul.u32 2, %s14
      $region36: #{basic_layer_transpose.3} parent=31 // pred_fallthru
        _
    $region32: #{basic_layer_transpose.3} parent=5 // pred_fallthru
      _
    %p235 = scmp.le.s32.totalorder 2, %s9
    // Predicated region
    $region37: #{basic_layer_transpose.3} parent=5 // pred_check
      %p236 = pneg %p235
    $region38: #{basic_layer_transpose.3} parent=5 // pred_check_branch
      %238 = sbr.rel (%p236) target = $region40
    $region39: #{basic_layer_transpose.3} parent=5 // pred_region
      %s239 = ssub.s32 %s9, 2
      // Predicated region
      $region41: #{basic_layer_transpose.3} parent=39 // pred_check
        %p240 = pneg %p106
      $region42: #{basic_layer_transpose.3} parent=39 // pred_check_branch
        %242 = sbr.rel (%p240) target = $region44
      $region43: #{basic_layer_transpose.3} parent=39 // pred_region
        %s243 = smul.u32 2, %s15
        %p244 = scmp.lt.s32.totalorder %s243, 7
        %s245 = scalar_select %p244, %s243, 7
        %s246 = smul.addr %s245, 2
        %s247 = smul.addr %s246, 8
        %s248 = scalar_lea.vmem %s3, %s247
      $region44: #{basic_layer_transpose.3} parent=39 // pred_fallthru
        _
    $region40: #{basic_layer_transpose.3} parent=5 // pred_fallthru
      _
  $region6: #{basic_layer_transpose.3} parent=0 // loop_footer
    %s13 = sadd.s32 1, %s9
  $region7: #{basic_layer_transpose.3} parent=0 // loop_footer_branch
    %8 = sbr.rel target = $region3
  $region8: #{basic_layer_transpose.3} parent=0 // loop_exit
    _

// kernel: basic_layer_transpose.2
$region0: #{basic_layer_transpose.2}
  #allocation0 [shape = 'u32[]', space=smem, size = 0x4, offset = 0x4, fixed_abs, tag = 'smem constant byte address 0x4 - core index']
  #allocation1 [shape = 'u32[144,128]{1,0:T(1,128)}', space=vmem, size = 0x12000, scoped, tag = 'internal scratch']
  %s0 = inlined_call_operand.vmem [shape: bf16[2,2,10,18,4], index: 0, kind: input, shape index: {}]
  %s1 = inlined_call_operand.vmem [shape: bf16[2,2,2,2,4,8], index: 1, kind: input, shape index: {}]
  %s2 = inlined_call_operand.vmem [shape: bf16[2,16,2,16,16], index: 2, kind: output, shape index: {0}]
  %s3 = inlined_call_operand.vmem [shape: f32[2,2,4,8], index: 3, kind: output, shape index: {1}]
  %s4 = inlined_call_operand.vmem [shape: f32[2,2,4,8], index: 4, kind: output, shape index: {2}]
  %5 = xla_tuple %s2, %s3, %s4
  %s6 = sld [smem:[#allocation0]]
  $region57: #{basic_layer_transpose.2} parent=0
    _
  %s8 = ssub.s32 1, %s6
  %s9 = scalar_select 0, %s8, %s6
  loop: start=0, step=1, limit=6
  $region2: #{basic_layer_transpose.2} parent=0 // loop_pre_header
    _
  $region3: #{basic_layer_transpose.2} parent=0 // loop_header
    %s11 = sphi 0, %s15
    %p12 = scmp.ge.s32.totalorder %s11, 6
    %s18 = sphi 0, %s30
    %s19 = sphi 0, %s26
    %s20 = sphi 0, %s18
    %s21 = sphi 0, %s19
    %s22 = sphi 0, %s20
    %s23 = sphi 0, %s21
    %s35 = sphi 0, %s37
    %s38 = sphi 0, %s35
    %s39 = sphi 0, %s38
    %s55 = sphi 0, %s39
    %s59 = sphi 0, %s59
    %s61 = sphi 0, %s59
    %s62 = sphi 0, %s61
    %s76 = sphi 0, %s62
    %s84 = sphi 0, %s86
    %s87 = sphi 0, %s84
    %s88 = sphi 0, %s87
    %s104 = sphi 0, %s88
    %s112 = sphi 0, %s114
    %s115 = sphi 0, %s112
    %s116 = sphi 0, %s115
    %s132 = sphi 0, %s116
    %s140 = sphi 0, %s142
    %s143 = sphi 0, %s140
    %s144 = sphi 0, %s143
    %s160 = sphi 0, %s144
  $region4: #{basic_layer_transpose.2} parent=0 // loop_header_branch
    %14 = sbr.rel (%p12) target = $region8
  $region5: #{basic_layer_transpose.2} parent=0 // loop_body
    %s16 = ssub.s32 %s11, 1
    %s17 = ssub.s32 %s11, 2
    %s24 = sadd.s32 1, %s19
    %p25 = scmp.ge.s32.totalorder %s24, 2
    %s26 = scalar_select %p25, 0, %s24
    %s27 = sadd.s32 1, %s18
    %s28 = scalar_select %p25, %s27, %s18
    %p29 = scmp.ge.s32.totalorder %s28, 2
    %s30 = scalar_select %p29, 0, %s28
    %s31 = ssub.s32 %s18, %s30
    %s32 = ssub.s32 %s19, %s26
    %s33 = sor.u32 %s31, %s32
    %p34 = scmp.eq.s32.totalorder %s33, 0
    %s36 = sadd.s32 %s35, 1
    %s37 = scalar_select %p34, %s35, %s36
    %p40 = pneg %p34
    %p41 = scmp.eq.s32.totalorder %s11, 3
    %p42 = por %p40, %p41
    %p43 = scmp.ne.s32.totalorder %s35, %s38
    %p44 = scmp.eq.s32.totalorder %s11, 0
    %p45 = por %p43, %p44
    %p46 = scmp.ne.s32.totalorder %s35, %s38
    %p47 = scmp.eq.s32.totalorder %s16, 3
    %p48 = por %p46, %p47
    %p49 = scmp.ne.s32.totalorder %s38, %s39
    %p50 = scmp.eq.s32.totalorder %s16, 0
    %p51 = por %p49, %p50
    %p52 = scmp.ne.s32.totalorder %s38, %s39
    %p53 = scmp.eq.s32.totalorder %s17, 3
    %p54 = por %p52, %p53
    %p56 = scmp.ne.s32.totalorder %s39, %s55
    %p57 = scmp.eq.s32.totalorder %s17, 0
    %p58 = por %p56, %p57
    %s60 = sadd.s32 %s59, 1
    %p63 = scmp.eq.s32.totalorder %s11, 3
    %p64 = scmp.ne.s32.totalorder %s59, %s61
    %p65 = scmp.eq.s32.totalorder %s11, 0
    %p66 = por %p64, %p65
    %p67 = scmp.ne.s32.totalorder %s59, %s61
    %p68 = scmp.eq.s32.totalorder %s16, 3
    %p69 = por %p67, %p68
    %p70 = scmp.ne.s32.totalorder %s61, %s62
    %p71 = scmp.eq.s32.totalorder %s16, 0
    %p72 = por %p70, %p71
    %p73 = scmp.ne.s32.totalorder %s61, %s62
    %p74 = scmp.eq.s32.totalorder %s17, 3
    %p75 = por %p73, %p74
    %p77 = scmp.ne.s32.totalorder %s62, %s76
    %p78 = scmp.eq.s32.totalorder %s17, 0
    %p79 = por %p77, %p78
    %s80 = ssub.s32 %s18, %s30
    %s81 = ssub.s32 %s19, %s26
    %s82 = sor.u32 %s80, %s81
    %p83 = scmp.eq.s32.totalorder %s82, 0
    %s85 = sadd.s32 %s84, 1
    %s86 = scalar_select %p83, %s84, %s85
    %p89 = pneg %p83
    %p90 = scmp.eq.s32.totalorder %s11, 3
    %p91 = por %p89, %p90
    %p92 = scmp.ne.s32.totalorder %s84, %s87
    %p93 = scmp.eq.s32.totalorder %s11, 0
    %p94 = por %p92, %p93
    %p95 = scmp.ne.s32.totalorder %s84, %s87
    %p96 = scmp.eq.s32.totalorder %s16, 3
    %p97 = por %p95, %p96
    %p98 = scmp.ne.s32.totalorder %s87, %s88
    %p99 = scmp.eq.s32.totalorder %s16, 0
    %p100 = por %p98, %p99
    %p101 = scmp.ne.s32.totalorder %s87, %s88
    %p102 = scmp.eq.s32.totalorder %s17, 3
    %p103 = por %p101, %p102
    %p105 = scmp.ne.s32.totalorder %s88, %s104
    %p106 = scmp.eq.s32.totalorder %s17, 0
    %p107 = por %p105, %p106
    %s108 = ssub.s32 %s18, %s30
    %s109 = ssub.s32 %s19, %s26
    %s110 = sor.u32 %s108, %s109
    %p111 = scmp.eq.s32.totalorder %s110, 0
    %s113 = sadd.s32 %s112, 1
    %s114 = scalar_select %p111, %s112, %s113
    %p117 = pneg %p111
    %p118 = scmp.eq.s32.totalorder %s11, 3
    %p119 = por %p117, %p118
    %p120 = scmp.ne.s32.totalorder %s112, %s115
    %p121 = scmp.eq.s32.totalorder %s11, 0
    %p122 = por %p120, %p121
    %p123 = scmp.ne.s32.totalorder %s112, %s115
    %p124 = scmp.eq.s32.totalorder %s16, 3
    %p125 = por %p123, %p124
    %p126 = scmp.ne.s32.totalorder %s115, %s116
    %p127 = scmp.eq.s32.totalorder %s16, 0
    %p128 = por %p126, %p127
    %p129 = scmp.ne.s32.totalorder %s115, %s116
    %p130 = scmp.eq.s32.totalorder %s17, 3
    %p131 = por %p129, %p130
    %p133 = scmp.ne.s32.totalorder %s116, %s132
    %p134 = scmp.eq.s32.totalorder %s17, 0
    %p135 = por %p133, %p134
    %s136 = ssub.s32 %s18, %s30
    %s137 = ssub.s32 %s19, %s26
    %s138 = sor.u32 %s136, %s137
    %p139 = scmp.eq.s32.totalorder %s138, 0
    %s141 = sadd.s32 %s140, 1
    %s142 = scalar_select %p139, %s140, %s141
    %p145 = pneg %p139
    %p146 = scmp.eq.s32.totalorder %s11, 3
    %p147 = por %p145, %p146
    %p148 = scmp.ne.s32.totalorder %s140, %s143
    %p149 = scmp.eq.s32.totalorder %s11, 0
    %p150 = por %p148, %p149
    %p151 = scmp.ne.s32.totalorder %s140, %s143
    %p152 = scmp.eq.s32.totalorder %s16, 3
    %p153 = por %p151, %p152
    %p154 = scmp.ne.s32.totalorder %s143, %s144
    %p155 = scmp.eq.s32.totalorder %s16, 0
    %p156 = por %p154, %p155
    %p157 = scmp.ne.s32.totalorder %s143, %s144
    %p158 = scmp.eq.s32.totalorder %s17, 3
    %p159 = por %p157, %p158
    %p161 = scmp.ne.s32.totalorder %s144, %s160
    %p162 = scmp.eq.s32.totalorder %s17, 0
    %p163 = por %p161, %p162
    %p164 = scmp.le.s32.totalorder 1, %s11
    %p165 = scmp.lt.s32.totalorder %s11, 5
    %p166 = pnand %p164, %p165
    %p167 = pneg %p166
    // Predicated region
    $region9: #{basic_layer_transpose.2} parent=5 // pred_check
      _
    $region10: #{basic_layer_transpose.2} parent=5 // pred_check_branch
      %169 = sbr.rel (%p166) target = $region12
    $region11: #{basic_layer_transpose.2} parent=5 // pred_region
      %s170 = ssub.s32 %s11, 1
      // Predicated region
      $region13: #{basic_layer_transpose.2} parent=11 // pred_check
        %p171 = pneg %p72
      $region14: #{basic_layer_transpose.2} parent=11 // pred_check_branch
        %173 = sbr.rel (%p171) target = $region16
      $region15: #{basic_layer_transpose.2} parent=11 // pred_region
        _
      $region16: #{basic_layer_transpose.2} parent=11 // pred_fallthru
        _
    $region12: #{basic_layer_transpose.2} parent=5 // pred_fallthru
      _
    %p174 = scmp.lt.s32.totalorder %s11, 4
    // Predicated region
    $region17: #{basic_layer_transpose.2} parent=5 // pred_check
      %p175 = pneg %p174
    $region18: #{basic_layer_transpose.2} parent=5 // pred_check_branch
      %177 = sbr.rel (%p175) target = $region20
    $region19: #{basic_layer_transpose.2} parent=5 // pred_region
      // Predicated region
      $region21: #{basic_layer_transpose.2} parent=19 // pred_check
        %p178 = pneg %p45
      $region22: #{basic_layer_transpose.2} parent=19 // pred_check_branch
        %180 = sbr.rel (%p178) target = $region24
      $region23: #{basic_layer_transpose.2} parent=19 // pred_region
        %p181 = scmp.lt.s32.totalorder %s18, 1
        %s182 = scalar_select %p181, %s18, 1
        %p183 = scmp.lt.s32.totalorder %s19, 1
        %s184 = scalar_select %p183, %s19, 1
        %s185 = smul.addr %s184, 30
        %s186 = smul.addr %s182, 60
        %s187 = sadd.s32 %s185, %s186
        %s188 = smul.addr %s187, 4
        %s189 = scalar_lea.vmem %s0, %s188
      $region24: #{basic_layer_transpose.2} parent=19 // pred_fallthru
        _
    $region20: #{basic_layer_transpose.2} parent=5 // pred_fallthru
      _
    %p190 = scmp.le.s32.totalorder 1, %s11
    %p191 = scmp.lt.s32.totalorder %s11, 5
    %p192 = pnand %p190, %p191
    %p193 = pneg %p192
    // Predicated region
    $region25: #{basic_layer_transpose.2} parent=5 // pred_check
      _
    $region26: #{basic_layer_transpose.2} parent=5 // pred_check_branch
      %195 = sbr.rel (%p192) target = $region28
    $region27: #{basic_layer_transpose.2} parent=5 // pred_region
      %s196 = ssub.s32 %s11, 1
      %p197 = scmp.lt.s32.totalorder %s20, 1
      %s198 = scalar_select %p197, %s20, 1
      %p199 = scmp.lt.s32.totalorder %s21, 1
      %s200 = scalar_select %p199, %s21, 1
      %s201 = smul.addr %s200, 30
      %s202 = smul.addr %s198, 60
      %s203 = sadd.s32 %s201, %s202
      %s204 = smul.addr %s203, 4
      %s205 = scalar_lea.vmem %s0, %s204
      %p206 = pneg %p51
      %p207 = pneg %p48
      %p208 = pneg %p72
      %p209 = pneg %p69
      %p210 = pneg %p100
      %p211 = pneg %p97
      %s212 = smul.u32 8, %s21
      %p213 = scmp.lt.s32.totalorder %s20, 1
      %s214 = scalar_select %p213, %s20, 1
      %p215 = scmp.lt.s32.totalorder %s212, 15
      %s216 = scalar_select %p215, %s212, 15
      %s217 = smul.addr %s216, 4
      %s218 = smul.addr %s214, 64
      %s219 = sadd.s32 %s217, %s218
      %s220 = smul.addr %s219, 4
      %s221 = scalar_lea.vmem %s2, %s220
      %p222 = pneg %p128
      %p223 = pneg %p125
      %p224 = scmp.lt.s32.totalorder %s20, 1
      %s225 = scalar_select %p224, %s20, 1
      %p226 = scmp.lt.s32.totalorder %s21, 1
      %s227 = scalar_select %p226, %s21, 1
      %s228 = smul.addr %s225, 2
      %s229 = sadd.s32 %s227, %s228
      %s230 = smul.addr %s229, 4
      %s231 = scalar_lea.vmem %s3, %s230
      %p232 = pneg %p156
      %p233 = pneg %p153
      %p234 = scmp.lt.s32.totalorder %s20, 1
      %s235 = scalar_select %p234, %s20, 1
      %p236 = scmp.lt.s32.totalorder %s21, 1
      %s237 = scalar_select %p236, %s21, 1
      %s238 = smul.addr %s235, 2
      %s239 = sadd.s32 %s237, %s238
      %s240 = smul.addr %s239, 4
      %s241 = scalar_lea.vmem %s4, %s240
      %p242 = scmp.lt.s32.totalorder %s20, 1
      %s243 = scalar_select %p242, %s20, 1
      %p244 = scmp.lt.s32.totalorder %s21, 1
      %s245 = scalar_select %p244, %s21, 1
      %s246 = smul.addr %s245, 30
      %s247 = smul.addr %s243, 60
      %s248 = sadd.s32 %s246, %s247
      %s249 = smul.addr %s248, 4
      %s250 = scalar_lea.vmem %s0, %s249
      %s251 = smul.u32 8, %s21
      %p252 = scmp.lt.s32.totalorder %s20, 1
      %s253 = scalar_select %p252, %s20, 1
      %p254 = scmp.lt.s32.totalorder %s251, 15
      %s255 = scalar_select %p254, %s251, 15
      %s256 = smul.addr %s255, 4
      %s257 = smul.addr %s253, 64
      %s258 = sadd.s32 %s256, %s257
      %s259 = smul.addr %s258, 4
      %s260 = scalar_lea.vmem %s2, %s259
      %s261 = smul.u32 8, %s21
      %p262 = scmp.lt.s32.totalorder %s20, 1
      %s263 = scalar_select %p262, %s20, 1
      %p264 = scmp.lt.s32.totalorder %s21, 1
      %s265 = scalar_select %p264, %s21, 1
      %s266 = smul.addr %s263, 2
      %s267 = sadd.s32 %s265, %s266
      %s268 = smul.addr %s267, 4
      %s269 = scalar_lea.vmem %s3, %s268
      %p270 = scmp.lt.s32.totalorder %s20, 1
      %s271 = scalar_select %p270, %s20, 1
      %p272 = scmp.lt.s32.totalorder %s21, 1
      %s273 = scalar_select %p272, %s21, 1
      %s274 = smul.addr %s271, 2
      %s275 = sadd.s32 %s273, %s274
      %s276 = smul.addr %s275, 4
      %s277 = scalar_lea.vmem %s4, %s276
      %v279 = vld [vmem:[%s250] sm:$0xf]
      %v280 = vld [vmem:[%s250 + $0x4] sm:$0xf]
      %v281 = vld [vmem:[%s250 + $0xc] sm:$0xf]
      %v282 = vld [vmem:[%s250 + $0x10] sm:$0xf]
      %v283 = vld [vmem:[%s250 + $0x18] sm:$0xf]
      %v284 = vld [vmem:[%s250 + $0x1c] sm:$0xf]
      %v285 = vld [vmem:[%s250 + $0x24] sm:$0xf]
      %v286 = vld [vmem:[%s250 + $0x28] sm:$0xf]
      %v287 = vld [vmem:[%s250 + $0x30] sm:$0xf]
      %v288 = vld [vmem:[%s250 + $0x34] sm:$0xf]
      %v289 = vld [vmem:[%s250 + $0x3c] sm:$0xf]
      %v290 = vld [vmem:[%s250 + $0x40] sm:$0xf]
      %v291 = vld [vmem:[%s250 + $0x48] sm:$0xf]
      %v292 = vld [vmem:[%s250 + $0x4c] sm:$0xf]
      %v293 = vld [vmem:[%s250 + $0x54] sm:$0xf]
      %v294 = vld [vmem:[%s250 + $0x58] sm:$0xf]
      %v295 = vld [vmem:[%s250 + $0x8] sm:$0x1]
      %v296 = vld [vmem:[%s250 + $0x14] sm:$0x1]
      %v297 = vld [vmem:[%s250 + $0x20] sm:$0x1]
      %v298 = vld [vmem:[%s250 + $0x2c] sm:$0x1]
      %v299 = vld [vmem:[%s250 + $0x38] sm:$0x1]
      %v300 = vld [vmem:[%s250 + $0x44] sm:$0x1]
      %v301 = vld [vmem:[%s250 + $0x50] sm:$0x1]
      %v302 = vld [vmem:[%s250 + $0x5c] sm:$0x1]
      %vm303 = vsmask.f32 3328
      %vm304 = vsmask.f32 7440
      %vm305 = vmor %vm303, %vm304
      %v307 = vshrl.u32 %v279, 16
      %v309 = vrot.slane %v307, 4
      %v310 = vshll.u32 %v279, 16
      %v312 = vrot.slane %v310, 5
      %v313 = vor.u32 %v309, %v312
      %v314 = vrot.slane %v313, 4
      %v316 = vshll.u32 %v280, 16
      %v318 = vrot.slane %v316, 5
      %v319 = vsel %vm305, %v314, %v318
      %v320 = vshrl.u32 %v280, 16
      %v322 = vrot.slane %v320, 4
      %v323 = vor.u32 %v322, %v318
      %v324 = vrot.slane %v323, 4
      %v326 = vshll.u32 %v295, 16
      %v328 = vrot.slane %v326, 5
      %v329 = vsel %vm305, %v324, %v328
      %v331 = vshrl.u32 %v281, 16
      %v333 = vrot.slane %v331, 4
      %v334 = vshll.u32 %v281, 16
      %v336 = vrot.slane %v334, 5
      %v337 = vor.u32 %v333, %v336
      %v338 = vrot.slane %v337, 4
      %v340 = vshll.u32 %v282, 16
      %v342 = vrot.slane %v340, 5
      %v343 = vsel %vm305, %v338, %v342
      %v344 = vshrl.u32 %v282, 16
      %v346 = vrot.slane %v344, 4
      %v347 = vor.u32 %v346, %v342
      %v348 = vrot.slane %v347, 4
      %v350 = vshll.u32 %v296, 16
      %v352 = vrot.slane %v350, 5
      %v353 = vsel %vm305, %v348, %v352
      %v355 = vshrl.u32 %v283, 16
      %v357 = vrot.slane %v355, 4
      %v358 = vshll.u32 %v283, 16
      %v360 = vrot.slane %v358, 5
      %v361 = vor.u32 %v357, %v360
      %v362 = vrot.slane %v361, 4
      %v364 = vshll.u32 %v284, 16
      %v366 = vrot.slane %v364, 5
      %v367 = vsel %vm305, %v362, %v366
      %v368 = vshrl.u32 %v284, 16
      %v370 = vrot.slane %v368, 4
      %v371 = vor.u32 %v370, %v366
      %v372 = vrot.slane %v371, 4
      %v374 = vshll.u32 %v297, 16
      %v376 = vrot.slane %v374, 5
      %v377 = vsel %vm305, %v372, %v376
      %v379 = vshrl.u32 %v285, 16
      %v381 = vrot.slane %v379, 4
      %v382 = vshll.u32 %v285, 16
      %v384 = vrot.slane %v382, 5
      %v385 = vor.u32 %v381, %v384
      %v386 = vrot.slane %v385, 4
      %v388 = vshll.u32 %v286, 16
      %v390 = vrot.slane %v388, 5
      %v391 = vsel %vm305, %v386, %v390
      %v392 = vshrl.u32 %v286, 16
      %v394 = vrot.slane %v392, 4
      %v395 = vor.u32 %v394, %v390
      %v396 = vrot.slane %v395, 4
      %v398 = vshll.u32 %v298, 16
      %v400 = vrot.slane %v398, 5
      %v401 = vsel %vm305, %v396, %v400
      %v403 = vshrl.u32 %v287, 16
      %v405 = vrot.slane %v403, 4
      %v406 = vshll.u32 %v287, 16
      %v408 = vrot.slane %v406, 5
      %v409 = vor.u32 %v405, %v408
      %v410 = vrot.slane %v409, 4
      %v412 = vshll.u32 %v288, 16
      %v414 = vrot.slane %v412, 5
      %v415 = vsel %vm305, %v410, %v414
      %v416 = vshrl.u32 %v288, 16
      %v418 = vrot.slane %v416, 4
      %v419 = vor.u32 %v418, %v414
      %v420 = vrot.slane %v419, 4
      %v422 = vshll.u32 %v299, 16
      %v424 = vrot.slane %v422, 5
      %v425 = vsel %vm305, %v420, %v424
      %v427 = vshrl.u32 %v289, 16
      %v429 = vrot.slane %v427, 4
      %v430 = vshll.u32 %v289, 16
      %v432 = vrot.slane %v430, 5
      %v433 = vor.u32 %v429, %v432
      %v434 = vrot.slane %v433, 4
      %v436 = vshll.u32 %v290, 16
      %v438 = vrot.slane %v436, 5
      %v439 = vsel %vm305, %v434, %v438
      %v440 = vshrl.u32 %v290, 16
      %v442 = vrot.slane %v440, 4
      %v443 = vor.u32 %v442, %v438
      %v444 = vrot.slane %v443, 4
      %v446 = vshll.u32 %v300, 16
      %v448 = vrot.slane %v446, 5
      %v449 = vsel %vm305, %v444, %v448
      %v451 = vshrl.u32 %v291, 16
      %v453 = vrot.slane %v451, 4
      %v454 = vshll.u32 %v291, 16
      %v456 = vrot.slane %v454, 5
      %v457 = vor.u32 %v453, %v456
      %v458 = vrot.slane %v457, 4
      %v460 = vshll.u32 %v292, 16
      %v462 = vrot.slane %v460, 5
      %v463 = vsel %vm305, %v458, %v462
      %v464 = vshrl.u32 %v292, 16
      %v466 = vrot.slane %v464, 4
      %v467 = vor.u32 %v466, %v462
      %v468 = vrot.slane %v467, 4
      %v470 = vshll.u32 %v301, 16
      %v472 = vrot.slane %v470, 5
      %v473 = vsel %vm305, %v468, %v472
      %v475 = vshrl.u32 %v293, 16
      %v477 = vrot.slane %v475, 4
      %v478 = vshll.u32 %v293, 16
      %v480 = vrot.slane %v478, 5
      %v481 = vor.u32 %v477, %v480
      %v482 = vrot.slane %v481, 4
      %v484 = vshll.u32 %v294, 16
      %v486 = vrot.slane %v484, 5
      %v487 = vsel %vm305, %v482, %v486
      %v488 = vshrl.u32 %v294, 16
      %v490 = vrot.slane %v488, 4
      %v491 = vor.u32 %v490, %v486
      %v492 = vrot.slane %v491, 4
      %v494 = vshll.u32 %v302, 16
      %v496 = vrot.slane %v494, 5
      %v497 = vsel %vm305, %v492, %v496
      %v498 = vld [vmem:[%s250] sm:$0xe]
      %v499 = vld [vmem:[%s250 + $0xc] sm:$0xe]
      %v500 = vld [vmem:[%s250 + $0x18] sm:$0xe]
      %v501 = vld [vmem:[%s250 + $0x24] sm:$0xe]
      %v502 = vld [vmem:[%s250 + $0x30] sm:$0xe]
      %v503 = vld [vmem:[%s250 + $0x3c] sm:$0xe]
      %v504 = vld [vmem:[%s250 + $0x48] sm:$0xe]
      %v505 = vld [vmem:[%s250 + $0x54] sm:$0xe]
      %vm530 = vcmask 1042432
      %vm531 = vcmask 1046532
      %vm532 = vmor %vm530, %vm531
      %v533 = vrot.slane %v498, 5
      %v534 = vrot.slane %v533, 4
      %v535 = vrot.slane %v280, 5
      %v536 = vsel %vm532, %v534, %v535
      %v537 = vrot.slane %v535, 4
      %v538 = vrot.slane %v295, 5
      %v539 = vsel %vm532, %v537, %v538
      %v540 = vrot.slane %v499, 5
      %v541 = vrot.slane %v540, 4
      %v542 = vrot.slane %v282, 5
      %v543 = vsel %vm532, %v541, %v542
      %v544 = vrot.slane %v542, 4
      %v545 = vrot.slane %v296, 5
      %v546 = vsel %vm532, %v544, %v545
      %v547 = vrot.slane %v500, 5
      %v548 = vrot.slane %v547, 4
      %v549 = vrot.slane %v284, 5
      %v550 = vsel %vm532, %v548, %v549
      %v551 = vrot.slane %v549, 4
      %v552 = vrot.slane %v297, 5
      %v553 = vsel %vm532, %v551, %v552
      %v554 = vrot.slane %v501, 5
      %v555 = vrot.slane %v554, 4
      %v556 = vrot.slane %v286, 5
      %v557 = vsel %vm532, %v555, %v556
      %v558 = vrot.slane %v556, 4
      %v559 = vrot.slane %v298, 5
      %v560 = vsel %vm532, %v558, %v559
      %v561 = vrot.slane %v502, 5
      %v562 = vrot.slane %v561, 4
      %v563 = vrot.slane %v288, 5
      %v564 = vsel %vm532, %v562, %v563
      %v565 = vrot.slane %v563, 4
      %v566 = vrot.slane %v299, 5
      %v567 = vsel %vm532, %v565, %v566
      %v568 = vrot.slane %v503, 5
      %v569 = vrot.slane %v568, 4
      %v570 = vrot.slane %v290, 5
      %v571 = vsel %vm532, %v569, %v570
      %v572 = vrot.slane %v570, 4
      %v573 = vrot.slane %v300, 5
      %v574 = vsel %vm532, %v572, %v573
      %v575 = vrot.slane %v504, 5
      %v576 = vrot.slane %v575, 4
      %v577 = vrot.slane %v292, 5
      %v578 = vsel %vm532, %v576, %v577
      %v579 = vrot.slane %v577, 4
      %v580 = vrot.slane %v301, 5
      %v581 = vsel %vm532, %v579, %v580
      %v582 = vrot.slane %v505, 5
      %v583 = vrot.slane %v582, 4
      %v584 = vrot.slane %v294, 5
      %v585 = vsel %vm532, %v583, %v584
      %v586 = vrot.slane %v584, 4
      %v587 = vrot.slane %v302, 5
      %v588 = vsel %vm532, %v586, %v587
      %s589 = scalar_lea.vmem %s250, 12
      %v590 = vld [vmem:[%s589] sm:$0xf]
      %v591 = vld [vmem:[%s589 + $0x4] sm:$0xf]
      %v592 = vld [vmem:[%s589 + $0xc] sm:$0xf]
      %v593 = vld [vmem:[%s589 + $0x10] sm:$0xf]
      %v594 = vld [vmem:[%s589 + $0x18] sm:$0xf]
      %v595 = vld [vmem:[%s589 + $0x1c] sm:$0xf]
      %v596 = vld [vmem:[%s589 + $0x24] sm:$0xf]
      %v597 = vld [vmem:[%s589 + $0x28] sm:$0xf]
      %v598 = vld [vmem:[%s589 + $0x30] sm:$0xf]
      %v599 = vld [vmem:[%s589 + $0x34] sm:$0xf]
      %v600 = vld [vmem:[%s589 + $0x3c] sm:$0xf]
      %v601 = vld [vmem:[%s589 + $0x40] sm:$0xf]
      %v602 = vld [vmem:[%s589 + $0x48] sm:$0xf]
      %v603 = vld [vmem:[%s589 + $0x4c] sm:$0xf]
      %v604 = vld [vmem:[%s589 + $0x54] sm:$0xf]
      %v605 = vld [vmem:[%s589 + $0x58] sm:$0xf]
      %v606 = vld [vmem:[%s589 + $0x8] sm:$0x1]
      %v607 = vld [vmem:[%s589 + $0x14] sm:$0x1]
      %v608 = vld [vmem:[%s589 + $0x20] sm:$0x1]
      %v609 = vld [vmem:[%s589 + $0x2c] sm:$0x1]
      %v610 = vld [vmem:[%s589 + $0x38] sm:$0x1]
      %v611 = vld [vmem:[%s589 + $0x44] sm:$0x1]
      %v612 = vld [vmem:[%s589 + $0x50] sm:$0x1]
      %v613 = vld [vmem:[%s589 + $0x5c] sm:$0x1]
      %v615 = vshrl.u32 %v590, 16
      %v617 = vrot.slane %v615, 4
      %v618 = vshll.u32 %v590, 16
      %v620 = vrot.slane %v618, 5
      %v621 = vor.u32 %v617, %v620
      %v622 = vrot.slane %v621, 4
      %v624 = vshll.u32 %v591, 16
      %v626 = vrot.slane %v624, 5
      %v627 = vsel %vm305, %v622, %v626
      %v628 = vshrl.u32 %v591, 16
      %v630 = vrot.slane %v628, 4
      %v631 = vor.u32 %v630, %v626
      %v632 = vrot.slane %v631, 4
      %v634 = vshll.u32 %v606, 16
      %v636 = vrot.slane %v634, 5
      %v637 = vsel %vm305, %v632, %v636
      %v639 = vshrl.u32 %v592, 16
      %v641 = vrot.slane %v639, 4
      %v642 = vshll.u32 %v592, 16
      %v644 = vrot.slane %v642, 5
      %v645 = vor.u32 %v641, %v644
      %v646 = vrot.slane %v645, 4
      %v648 = vshll.u32 %v593, 16
      %v650 = vrot.slane %v648, 5
      %v651 = vsel %vm305, %v646, %v650
      %v652 = vshrl.u32 %v593, 16
      %v654 = vrot.slane %v652, 4
      %v655 = vor.u32 %v654, %v650
      %v656 = vrot.slane %v655, 4
      %v658 = vshll.u32 %v607, 16
      %v660 = vrot.slane %v658, 5
      %v661 = vsel %vm305, %v656, %v660
      %v663 = vshrl.u32 %v594, 16
      %v665 = vrot.slane %v663, 4
      %v666 = vshll.u32 %v594, 16
      %v668 = vrot.slane %v666, 5
      %v669 = vor.u32 %v665, %v668
      %v670 = vrot.slane %v669, 4
      %v672 = vshll.u32 %v595, 16
      %v674 = vrot.slane %v672, 5
      %v675 = vsel %vm305, %v670, %v674
      %v676 = vshrl.u32 %v595, 16
      %v678 = vrot.slane %v676, 4
      %v679 = vor.u32 %v678, %v674
      %v680 = vrot.slane %v679, 4
      %v682 = vshll.u32 %v608, 16
      %v684 = vrot.slane %v682, 5
      %v685 = vsel %vm305, %v680, %v684
      %v687 = vshrl.u32 %v596, 16
      %v689 = vrot.slane %v687, 4
      %v690 = vshll.u32 %v596, 16
      %v692 = vrot.slane %v690, 5
      %v693 = vor.u32 %v689, %v692
      %v694 = vrot.slane %v693, 4
      %v696 = vshll.u32 %v597, 16
      %v698 = vrot.slane %v696, 5
      %v699 = vsel %vm305, %v694, %v698
      %v700 = vshrl.u32 %v597, 16
      %v702 = vrot.slane %v700, 4
      %v703 = vor.u32 %v702, %v698
      %v704 = vrot.slane %v703, 4
      %v706 = vshll.u32 %v609, 16
      %v708 = vrot.slane %v706, 5
      %v709 = vsel %vm305, %v704, %v708
      %v711 = vshrl.u32 %v598, 16
      %v713 = vrot.slane %v711, 4
      %v714 = vshll.u32 %v598, 16
      %v716 = vrot.slane %v714, 5
      %v717 = vor.u32 %v713, %v716
      %v718 = vrot.slane %v717, 4
      %v720 = vshll.u32 %v599, 16
      %v722 = vrot.slane %v720, 5
      %v723 = vsel %vm305, %v718, %v722
      %v724 = vshrl.u32 %v599, 16
      %v726 = vrot.slane %v724, 4
      %v727 = vor.u32 %v726, %v722
      %v728 = vrot.slane %v727, 4
      %v730 = vshll.u32 %v610, 16
      %v732 = vrot.slane %v730, 5
      %v733 = vsel %vm305, %v728, %v732
      %v735 = vshrl.u32 %v600, 16
      %v737 = vrot.slane %v735, 4
      %v738 = vshll.u32 %v600, 16
      %v740 = vrot.slane %v738, 5
      %v741 = vor.u32 %v737, %v740
      %v742 = vrot.slane %v741, 4
      %v744 = vshll.u32 %v601, 16
      %v746 = vrot.slane %v744, 5
      %v747 = vsel %vm305, %v742, %v746
      %v748 = vshrl.u32 %v601, 16
      %v750 = vrot.slane %v748, 4
      %v751 = vor.u32 %v750, %v746
      %v752 = vrot.slane %v751, 4
      %v754 = vshll.u32 %v611, 16
      %v756 = vrot.slane %v754, 5
      %v757 = vsel %vm305, %v752, %v756
      %v759 = vshrl.u32 %v602, 16
      %v761 = vrot.slane %v759, 4
      %v762 = vshll.u32 %v602, 16
      %v764 = vrot.slane %v762, 5
      %v765 = vor.u32 %v761, %v764
      %v766 = vrot.slane %v765, 4
      %v768 = vshll.u32 %v603, 16
      %v770 = vrot.slane %v768, 5
      %v771 = vsel %vm305, %v766, %v770
      %v772 = vshrl.u32 %v603, 16
      %v774 = vrot.slane %v772, 4
      %v775 = vor.u32 %v774, %v770
      %v776 = vrot.slane %v775, 4
      %v778 = vshll.u32 %v612, 16
      %v780 = vrot.slane %v778, 5
      %v781 = vsel %vm305, %v776, %v780
      %v783 = vshrl.u32 %v604, 16
      %v785 = vrot.slane %v783, 4
      %v786 = vshll.u32 %v604, 16
      %v788 = vrot.slane %v786, 5
      %v789 = vor.u32 %v785, %v788
      %v790 = vrot.slane %v789, 4
      %v792 = vshll.u32 %v605, 16
      %v794 = vrot.slane %v792, 5
      %v795 = vsel %vm305, %v790, %v794
      %v796 = vshrl.u32 %v605, 16
      %v798 = vrot.slane %v796, 4
      %v799 = vor.u32 %v798, %v794
      %v800 = vrot.slane %v799, 4
      %v802 = vshll.u32 %v613, 16
      %v804 = vrot.slane %v802, 5
      %v805 = vsel %vm305, %v800, %v804
      %v806 = vld [vmem:[%s589] sm:$0xe]
      %v807 = vld [vmem:[%s589 + $0xc] sm:$0xe]
      %v808 = vld [vmem:[%s589 + $0x18] sm:$0xe]
      %v809 = vld [vmem:[%s589 + $0x24] sm:$0xe]
      %v810 = vld [vmem:[%s589 + $0x30] sm:$0xe]
      %v811 = vld [vmem:[%s589 + $0x3c] sm:$0xe]
      %v812 = vld [vmem:[%s589 + $0x48] sm:$0xe]
      %v813 = vld [vmem:[%s589 + $0x54] sm:$0xe]
      %v838 = vrot.slane %v806, 5
      %v839 = vrot.slane %v838, 4
      %v840 = vrot.slane %v591, 5
      %v841 = vsel %vm532, %v839, %v840
      %v842 = vrot.slane %v840, 4
      %v843 = vrot.slane %v606, 5
      %v844 = vsel %vm532, %v842, %v843
      %v845 = vrot.slane %v807, 5
      %v846 = vrot.slane %v845, 4
      %v847 = vrot.slane %v593, 5
      %v848 = vsel %vm532, %v846, %v847
      %v849 = vrot.slane %v847, 4
      %v850 = vrot.slane %v607, 5
      %v851 = vsel %vm532, %v849, %v850
      %v852 = vrot.slane %v808, 5
      %v853 = vrot.slane %v852, 4
      %v854 = vrot.slane %v595, 5
      %v855 = vsel %vm532, %v853, %v854
      %v856 = vrot.slane %v854, 4
      %v857 = vrot.slane %v608, 5
      %v858 = vsel %vm532, %v856, %v857
      %v859 = vrot.slane %v809, 5
      %v860 = vrot.slane %v859, 4
      %v861 = vrot.slane %v597, 5
      %v862 = vsel %vm532, %v860, %v861
      %v863 = vrot.slane %v861, 4
      %v864 = vrot.slane %v609, 5
      %v865 = vsel %vm532, %v863, %v864
      %v866 = vrot.slane %v810, 5
      %v867 = vrot.slane %v866, 4
      %v868 = vrot.slane %v599, 5
      %v869 = vsel %vm532, %v867, %v868
      %v870 = vrot.slane %v868, 4
      %v871 = vrot.slane %v610, 5
      %v872 = vsel %vm532, %v870, %v871
      %v873 = vrot.slane %v811, 5
      %v874 = vrot.slane %v873, 4
      %v875 = vrot.slane %v601, 5
      %v876 = vsel %vm532, %v874, %v875
      %v877 = vrot.slane %v875, 4
      %v878 = vrot.slane %v611, 5
      %v879 = vsel %vm532, %v877, %v878
      %v880 = vrot.slane %v812, 5
      %v881 = vrot.slane %v880, 4
      %v882 = vrot.slane %v603, 5
      %v883 = vsel %vm532, %v881, %v882
      %v884 = vrot.slane %v882, 4
      %v885 = vrot.slane %v612, 5
      %v886 = vsel %vm532, %v884, %v885
      %v887 = vrot.slane %v813, 5
      %v888 = vrot.slane %v887, 4
      %v889 = vrot.slane %v605, 5
      %v890 = vsel %vm532, %v888, %v889
      %v891 = vrot.slane %v889, 4
      %v892 = vrot.slane %v613, 5
      %v893 = vsel %vm532, %v891, %v892
      %s894 = scalar_lea.vmem %s250, 24
      %v895 = vld [vmem:[%s894] sm:$0xf]
      %v896 = vld [vmem:[%s894 + $0x4] sm:$0xf]
      %v897 = vld [vmem:[%s894 + $0xc] sm:$0xf]
      %v898 = vld [vmem:[%s894 + $0x10] sm:$0xf]
      %v899 = vld [vmem:[%s894 + $0x18] sm:$0xf]
      %v900 = vld [vmem:[%s894 + $0x1c] sm:$0xf]
      %v901 = vld [vmem:[%s894 + $0x24] sm:$0xf]
      %v902 = vld [vmem:[%s894 + $0x28] sm:$0xf]
      %v903 = vld [vmem:[%s894 + $0x30] sm:$0xf]
      %v904 = vld [vmem:[%s894 + $0x34] sm:$0xf]
      %v905 = vld [vmem:[%s894 + $0x3c] sm:$0xf]
      %v906 = vld [vmem:[%s894 + $0x40] sm:$0xf]
      %v907 = vld [vmem:[%s894 + $0x48] sm:$0xf]
      %v908 = vld [vmem:[%s894 + $0x4c] sm:$0xf]
      %v909 = vld [vmem:[%s894 + $0x54] sm:$0xf]
      %v910 = vld [vmem:[%s894 + $0x58] sm:$0xf]
      %v911 = vld [vmem:[%s894 + $0x8] sm:$0x1]
      %v912 = vld [vmem:[%s894 + $0x14] sm:$0x1]
      %v913 = vld [vmem:[%s894 + $0x20] sm:$0x1]
      %v914 = vld [vmem:[%s894 + $0x2c] sm:$0x1]
      %v915 = vld [vmem:[%s894 + $0x38] sm:$0x1]
      %v916 = vld [vmem:[%s894 + $0x44] sm:$0x1]
      %v917 = vld [vmem:[%s894 + $0x50] sm:$0x1]
      %v918 = vld [vmem:[%s894 + $0x5c] sm:$0x1]
      %v920 = vshrl.u32 %v895, 16
      %v922 = vrot.slane %v920, 4
      %v923 = vshll.u32 %v895, 16
      %v925 = vrot.slane %v923, 5
      %v926 = vor.u32 %v922, %v925
      %v927 = vrot.slane %v926, 4
      %v929 = vshll.u32 %v896, 16
      %v931 = vrot.slane %v929, 5
      %v932 = vsel %vm305, %v927, %v931
      %v933 = vshrl.u32 %v896, 16
      %v935 = vrot.slane %v933, 4
      %v936 = vor.u32 %v935, %v931
      %v937 = vrot.slane %v936, 4
      %v939 = vshll.u32 %v911, 16
      %v941 = vrot.slane %v939, 5
      %v942 = vsel %vm305, %v937, %v941
      %v944 = vshrl.u32 %v897, 16
      %v946 = vrot.slane %v944, 4
      %v947 = vshll.u32 %v897, 16
      %v949 = vrot.slane %v947, 5
      %v950 = vor.u32 %v946, %v949
      %v951 = vrot.slane %v950, 4
      %v953 = vshll.u32 %v898, 16
      %v955 = vrot.slane %v953, 5
      %v956 = vsel %vm305, %v951, %v955
      %v957 = vshrl.u32 %v898, 16
      %v959 = vrot.slane %v957, 4
      %v960 = vor.u32 %v959, %v955
      %v961 = vrot.slane %v960, 4
      %v963 = vshll.u32 %v912, 16
      %v965 = vrot.slane %v963, 5
      %v966 = vsel %vm305, %v961, %v965
      %v968 = vshrl.u32 %v899, 16
      %v970 = vrot.slane %v968, 4
      %v971 = vshll.u32 %v899, 16
      %v973 = vrot.slane %v971, 5
      %v974 = vor.u32 %v970, %v973
      %v975 = vrot.slane %v974, 4
      %v977 = vshll.u32 %v900, 16
      %v979 = vrot.slane %v977, 5
      %v980 = vsel %vm305, %v975, %v979
      %v981 = vshrl.u32 %v900, 16
      %v983 = vrot.slane %v981, 4
      %v984 = vor.u32 %v983, %v979
      %v985 = vrot.slane %v984, 4
      %v987 = vshll.u32 %v913, 16
      %v989 = vrot.slane %v987, 5
      %v990 = vsel %vm305, %v985, %v989
      %v992 = vshrl.u32 %v901, 16
      %v994 = vrot.slane %v992, 4
      %v995 = vshll.u32 %v901, 16
      %v997 = vrot.slane %v995, 5
      %v998 = vor.u32 %v994, %v997
      %v999 = vrot.slane %v998, 4
      %v1001 = vshll.u32 %v902, 16
      %v1003 = vrot.slane %v1001, 5
      %v1004 = vsel %vm305, %v999, %v1003
      %v1005 = vshrl.u32 %v902, 16
      %v1007 = vrot.slane %v1005, 4
      %v1008 = vor.u32 %v1007, %v1003
      %v1009 = vrot.slane %v1008, 4
      %v1011 = vshll.u32 %v914, 16
      %v1013 = vrot.slane %v1011, 5
      %v1014 = vsel %vm305, %v1009, %v1013
      %v1016 = vshrl.u32 %v903, 16
      %v1018 = vrot.slane %v1016, 4
      %v1019 = vshll.u32 %v903, 16
      %v1021 = vrot.slane %v1019, 5
      %v1022 = vor.u32 %v1018, %v1021
      %v1023 = vrot.slane %v1022, 4
      %v1025 = vshll.u32 %v904, 16
      %v1027 = vrot.slane %v1025, 5
      %v1028 = vsel %vm305, %v1023, %v1027
      %v1029 = vshrl.u32 %v904, 16
      %v1031 = vrot.slane %v1029, 4
      %v1032 = vor.u32 %v1031, %v1027
      %v1033 = vrot.slane %v1032, 4
      %v1035 = vshll.u32 %v915, 16
      %v1037 = vrot.slane %v1035, 5
      %v1038 = vsel %vm305, %v1033, %v1037
      %v1040 = vshrl.u32 %v905, 16
      %v1042 = vrot.slane %v1040, 4
      %v1043 = vshll.u32 %v905, 16
      %v1045 = vrot.slane %v1043, 5
      %v1046 = vor.u32 %v1042, %v1045
      %v1047 = vrot.slane %v1046, 4
      %v1049 = vshll.u32 %v906, 16
      %v1051 = vrot.slane %v1049, 5
      %v1052 = vsel %vm305, %v1047, %v1051
      %v1053 = vshrl.u32 %v906, 16
      %v1055 = vrot.slane %v1053, 4
      %v1056 = vor.u32 %v1055, %v1051
      %v1057 = vrot.slane %v1056, 4
      %v1059 = vshll.u32 %v916, 16
      %v1061 = vrot.slane %v1059, 5
      %v1062 = vsel %vm305, %v1057, %v1061
      %v1064 = vshrl.u32 %v907, 16
      %v1066 = vrot.slane %v1064, 4
      %v1067 = vshll.u32 %v907, 16
      %v1069 = vrot.slane %v1067, 5
      %v1070 = vor.u32 %v1066, %v1069
      %v1071 = vrot.slane %v1070, 4
      %v1073 = vshll.u32 %v908, 16
      %v1075 = vrot.slane %v1073, 5
      %v1076 = vsel %vm305, %v1071, %v1075
      %v1077 = vshrl.u32 %v908, 16
      %v1079 = vrot.slane %v1077, 4
      %v1080 = vor.u32 %v1079, %v1075
      %v1081 = vrot.slane %v1080, 4
      %v1083 = vshll.u32 %v917, 16
      %v1085 = vrot.slane %v1083, 5
      %v1086 = vsel %vm305, %v1081, %v1085
      %v1088 = vshrl.u32 %v909, 16
      %v1090 = vrot.slane %v1088, 4
      %v1091 = vshll.u32 %v909, 16
      %v1093 = vrot.slane %v1091, 5
      %v1094 = vor.u32 %v1090, %v1093
      %v1095 = vrot.slane %v1094, 4
      %v1097 = vshll.u32 %v910, 16
      %v1099 = vrot.slane %v1097, 5
      %v1100 = vsel %vm305, %v1095, %v1099
      %v1101 = vshrl.u32 %v910, 16
      %v1103 = vrot.slane %v1101, 4
      %v1104 = vor.u32 %v1103, %v1099
      %v1105 = vrot.slane %v1104, 4
      %v1107 = vshll.u32 %v918, 16
      %v1109 = vrot.slane %v1107, 5
      %v1110 = vsel %vm305, %v1105, %v1109
      %v1111 = vld [vmem:[%s894] sm:$0xe]
      %v1112 = vld [vmem:[%s894 + $0xc] sm:$0xe]
      %v1113 = vld [vmem:[%s894 + $0x18] sm:$0xe]
      %v1114 = vld [vmem:[%s894 + $0x24] sm:$0xe]
      %v1115 = vld [vmem:[%s894 + $0x30] sm:$0xe]
      %v1116 = vld [vmem:[%s894 + $0x3c] sm:$0xe]
      %v1117 = vld [vmem:[%s894 + $0x48] sm:$0xe]
      %v1118 = vld [vmem:[%s894 + $0x54] sm:$0xe]
      %v1143 = vrot.slane %v1111, 5
      %v1144 = vrot.slane %v1143, 4
      %v1145 = vrot.slane %v896, 5
      %v1146 = vsel %vm532, %v1144, %v1145
      %v1147 = vrot.slane %v1145, 4
      %v1148 = vrot.slane %v911, 5
      %v1149 = vsel %vm532, %v1147, %v1148
      %v1150 = vrot.slane %v1112, 5
      %v1151 = vrot.slane %v1150, 4
      %v1152 = vrot.slane %v898, 5
      %v1153 = vsel %vm532, %v1151, %v1152
      %v1154 = vrot.slane %v1152, 4
      %v1155 = vrot.slane %v912, 5
      %v1156 = vsel %vm532, %v1154, %v1155
      %v1157 = vrot.slane %v1113, 5
      %v1158 = vrot.slane %v1157, 4
      %v1159 = vrot.slane %v900, 5
      %v1160 = vsel %vm532, %v1158, %v1159
      %v1161 = vrot.slane %v1159, 4
      %v1162 = vrot.slane %v913, 5
      %v1163 = vsel %vm532, %v1161, %v1162
      %v1164 = vrot.slane %v1114, 5
      %v1165 = vrot.slane %v1164, 4
      %v1166 = vrot.slane %v902, 5
      %v1167 = vsel %vm532, %v1165, %v1166
      %v1168 = vrot.slane %v1166, 4
      %v1169 = vrot.slane %v914, 5
      %v1170 = vsel %vm532, %v1168, %v1169
      %v1171 = vrot.slane %v1115, 5
      %v1172 = vrot.slane %v1171, 4
      %v1173 = vrot.slane %v904, 5
      %v1174 = vsel %vm532, %v1172, %v1173
      %v1175 = vrot.slane %v1173, 4
      %v1176 = vrot.slane %v915, 5
      %v1177 = vsel %vm532, %v1175, %v1176
      %v1178 = vrot.slane %v1116, 5
      %v1179 = vrot.slane %v1178, 4
      %v1180 = vrot.slane %v906, 5
      %v1181 = vsel %vm532, %v1179, %v1180
      %v1182 = vrot.slane %v1180, 4
      %v1183 = vrot.slane %v916, 5
      %v1184 = vsel %vm532, %v1182, %v1183
      %v1185 = vrot.slane %v1117, 5
      %v1186 = vrot.slane %v1185, 4
      %v1187 = vrot.slane %v908, 5
      %v1188 = vsel %vm532, %v1186, %v1187
      %v1189 = vrot.slane %v1187, 4
      %v1190 = vrot.slane %v917, 5
      %v1191 = vsel %vm532, %v1189, %v1190
      %v1192 = vrot.slane %v1118, 5
      %v1193 = vrot.slane %v1192, 4
      %v1194 = vrot.slane %v910, 5
      %v1195 = vsel %vm532, %v1193, %v1194
      %v1196 = vrot.slane %v1194, 4
      %v1197 = vrot.slane %v918, 5
      %v1198 = vsel %vm532, %v1196, %v1197
      %v1199 = vld [vmem:[%s1] sm:$0x3]
      %s1200 = scalar_lea.vmem %s1, 2
      %v1201 = vld [vmem:[%s1200] sm:$0x3]
      %v1202 = vunpack.c.l.b16 %v319
      %v1203 = vunpack.c.l.b16 %v329
      %v1204 = vunpack.c.l.b16 %v343
      %v1205 = vunpack.c.l.b16 %v353
      %v1206 = vunpack.c.l.b16 %v367
      %v1207 = vunpack.c.l.b16 %v377
      %v1208 = vunpack.c.l.b16 %v391
      %v1209 = vunpack.c.l.b16 %v401
      %v1210 = vunpack.c.l.b16 %v415
      %v1211 = vunpack.c.l.b16 %v425
      %v1212 = vunpack.c.l.b16 %v439
      %v1213 = vunpack.c.l.b16 %v449
      %v1214 = vunpack.c.l.b16 %v463
      %v1215 = vunpack.c.l.b16 %v473
      %v1216 = vunpack.c.l.b16 %v487
      %v1217 = vunpack.c.l.b16 %v497
      %v1218 = vpack.c.b16 %v1203, %v1202
      %v1219 = vpack.c.b16 %v1205, %v1204
      %v1220 = vpack.c.b16 %v1207, %v1206
      %v1221 = vpack.c.b16 %v1209, %v1208
      %v1222 = vpack.c.b16 %v1211, %v1210
      %v1223 = vpack.c.b16 %v1213, %v1212
      %v1224 = vpack.c.b16 %v1215, %v1214
      %v1225 = vpack.c.b16 %v1217, %v1216
      %vm1226 = vcmask 31744
      %v1228 = vsel %vm1226, %v1218, 0
      %v1231 = vsel %vm1226, %v1219, 0
      %v1234 = vsel %vm1226, %v1220, 0
      %v1237 = vsel %vm1226, %v1221, 0
      %v1240 = vsel %vm1226, %v1222, 0
      %v1243 = vsel %vm1226, %v1223, 0
      %v1246 = vsel %vm1226, %v1224, 0
      %v1249 = vsel %vm1226, %v1225, 0
      %vm1251 = vcmask 1041408
      %v1253 = vsel %vm1251, %v1201, 0
      %1255 = vmatprep.subr.bf16.mxu0 0
      %1256 = vmatpush1.bf16.msra.mxu0 %v1253
      %1257 = vmatprep.subr.bf16.mxu0 0
      %1258 = vmatpush1.bf16.msra.mxu0 0
      %1259 = vmatprep.subr.bf16.mxu0 0
      %1260 = vmatpush1.bf16.msra.mxu0 0
      %1261 = vmatprep.subr.bf16.mxu0 0
      %1262 = vmatpush1.bf16.msra.mxu0 0
      %1263 = vmatprep.subr.bf16.mxu0 0
      %1264 = vmatpush1.bf16.msra.mxu0 0
      %1265 = vmatprep.subr.bf16.mxu0 0
      %1266 = vmatpush1.bf16.msra.mxu0 0
      %1267 = vmatprep.subr.bf16.mxu0 0
      %1268 = vmatpush1.bf16.msra.mxu0 0
      %1269 = vmatprep.subr.bf16.mxu0 0
      %1270 = vmatpush1.bf16.msra.mxu0 0
      %1271 = vmatprep.subr.bf16.mxu0 0
      %1272 = vmatpush1.bf16.msra.mxu0 0
      %1273 = vmatprep.subr.bf16.mxu0 0
      %1274 = vmatpush1.bf16.msra.mxu0 0
      %1275 = vmatprep.subr.bf16.mxu0 0
      %1276 = vmatpush1.bf16.msra.mxu0 0
      %1277 = vmatprep.subr.bf16.mxu0 0
      %1278 = vmatpush1.bf16.msra.mxu0 0
      %1279 = vmatprep.subr.bf16.mxu0 0
      %1280 = vmatpush1.bf16.msra.mxu0 0
      %1281 = vmatprep.subr.bf16.mxu0 0
      %1282 = vmatpush1.bf16.msra.mxu0 0
      %1283 = vmatprep.subr.bf16.mxu0 0
      %1284 = vmatpush1.bf16.msra.mxu0 0
      %1285 = vmatprep.subr.bf16.mxu0 0
      %1286 = vmatpush1.bf16.msra.mxu0 0
      %1287 = vmatprep.mubr.bf16.mxu0 0
      %1288 = vmatmul.mubr.bf16.gmra.mrb[0].mxu0 %v1228
      %v1289 = vpop.f32.mrb[0].mxu0
      %v1290 = vadd.f32 0.0, %v1289
      %v1291 = vpop.f32.mrb[0].mxu0
      %v1292 = vpop.f32.mrb[0].mxu0
      %v1293 = vadd.f32 0.0, %v1292
      %v1294 = vpop.f32.mrb[0].mxu0
      %1295 = vmatprep.mubr.bf16.mxu0 0
      %1296 = vmatmul.mubr.bf16.gmra.mrb[0].mxu0 %v1231
      %v1297 = vpop.f32.mrb[0].mxu0
      %v1298 = vadd.f32 0.0, %v1297
      %v1299 = vpop.f32.mrb[0].mxu0
      %v1300 = vpop.f32.mrb[0].mxu0
      %v1301 = vadd.f32 0.0, %v1300
      %v1302 = vpop.f32.mrb[0].mxu0
      %1303 = vmatprep.mubr.bf16.mxu0 0
      %1304 = vmatmul.mubr.bf16.gmra.mrb[0].mxu0 %v1234
      %v1305 = vpop.f32.mrb[0].mxu0
      %v1306 = vadd.f32 0.0, %v1305
      %v1307 = vpop.f32.mrb[0].mxu0
      %v1308 = vpop.f32.mrb[0].mxu0
      %v1309 = vadd.f32 0.0, %v1308
      %v1310 = vpop.f32.mrb[0].mxu0
      %1311 = vmatprep.mubr.bf16.mxu0 0
      %1312 = vmatmul.mubr.bf16.gmra.mrb[0].mxu0 %v1237
      %v1313 = vpop.f32.mrb[0].mxu0
      %v1314 = vadd.f32 0.0, %v1313
      %v1315 = vpop.f32.mrb[0].mxu0
      %v1316 = vpop.f32.mrb[0].mxu0
      %v1317 = vadd.f32 0.0, %v1316
      %v1318 = vpop.f32.mrb[0].mxu0
      %1319 = vmatprep.mubr.bf16.mxu0 0
      %1320 = vmatmul.mubr.bf16.gmra.mrb[0].mxu0 %v1240
      %v1321 = vpop.f32.mrb[0].mxu0
      %v1322 = vadd.f32 0.0, %v1321
      %v1323 = vpop.f32.mrb[0].mxu0
      %v1324 = vpop.f32.mrb[0].mxu0
      %v1325 = vadd.f32 0.0, %v1324
      %v1326 = vpop.f32.mrb[0].mxu0
      %1327 = vmatprep.mubr.bf16.mxu0 0
      %1328 = vmatmul.mubr.bf16.gmra.mrb[0].mxu0 %v1243
      %v1329 = vpop.f32.mrb[0].mxu0
      %v1330 = vadd.f32 0.0, %v1329
      %v1331 = vpop.f32.mrb[0].mxu0
      %v1332 = vpop.f32.mrb[0].mxu0
      %v1333 = vadd.f32 0.0, %v1332
      %v1334 = vpop.f32.mrb[0].mxu0
      %1335 = vmatprep.mubr.bf16.mxu0 0
      %1336 = vmatmul.mubr.bf16.gmra.mrb[0].mxu0 %v1246
      %v1337 = vpop.f32.mrb[0].mxu0
      %v1338 = vadd.f32 0.0, %v1337
      %v1339 = vpop.f32.mrb[0].mxu0
      %v1340 = vpop.f32.mrb[0].mxu0
      %v1341 = vadd.f32 0.0, %v1340
      %v1342 = vpop.f32.mrb[0].mxu0
      %1343 = vmatprep.mubr.bf16.mxu0 0
      %1344 = vmatmul.mubr.bf16.gmra.mrb[0].mxu0 %v1249
      %v1345 = vpop.f32.mrb[0].mxu0
      %v1346 = vadd.f32 0.0, %v1345
      %v1347 = vpop.f32.mrb[0].mxu0
      %v1348 = vpop.f32.mrb[0].mxu0
      %v1349 = vadd.f32 0.0, %v1348
      %v1350 = vpop.f32.mrb[0].mxu0
      %1351 = vdwg.mxu0
      %v1360 = vunpack.c.l.b16 %v279
      %v1361 = vunpack.c.l.b16 %v280
      %v1362 = vunpack.c.l.b16 %v281
      %v1363 = vunpack.c.l.b16 %v282
      %v1364 = vunpack.c.l.b16 %v283
      %v1365 = vunpack.c.l.b16 %v284
      %v1366 = vunpack.c.l.b16 %v285
      %v1367 = vunpack.c.l.b16 %v286
      %v1368 = vunpack.c.l.b16 %v287
      %v1369 = vunpack.c.l.b16 %v288
      %v1370 = vunpack.c.l.b16 %v289
      %v1371 = vunpack.c.l.b16 %v290
      %v1372 = vunpack.c.l.b16 %v291
      %v1373 = vunpack.c.l.b16 %v292
      %v1374 = vunpack.c.l.b16 %v293
      %v1375 = vunpack.c.l.b16 %v294
      %v1376 = vpack.c.b16 %v1361, %v1360
      %v1377 = vpack.c.b16 %v1363, %v1362
      %v1378 = vpack.c.b16 %v1365, %v1364
      %v1379 = vpack.c.b16 %v1367, %v1366
      %v1380 = vpack.c.b16 %v1369, %v1368
      %v1381 = vpack.c.b16 %v1371, %v1370
      %v1382 = vpack.c.b16 %v1373, %v1372
      %v1383 = vpack.c.b16 %v1375, %v1374
      %v1385 = vsel %vm1226, %v1376, 0
      %v1388 = vsel %vm1226, %v1377, 0
      %v1391 = vsel %vm1226, %v1378, 0
      %v1394 = vsel %vm1226, %v1379, 0
      %v1397 = vsel %vm1226, %v1380, 0
      %v1400 = vsel %vm1226, %v1381, 0
      %v1403 = vsel %vm1226, %v1382, 0
      %v1406 = vsel %vm1226, %v1383, 0
      %v1409 = vsel %vm1251, %v1199, 0
      %1411 = vmatprep.subr.bf16.mxu0 0
      %1412 = vmatpush1.bf16.msra.mxu0 %v1409
      %1413 = vmatprep.subr.bf16.mxu0 0
      %1414 = vmatpush1.bf16.msra.mxu0 0
      %1415 = vmatprep.subr.bf16.mxu0 0
      %1416 = vmatpush1.bf16.msra.mxu0 0
      %1417 = vmatprep.subr.bf16.mxu0 0
      %1418 = vmatpush1.bf16.msra.mxu0 0
      %1419 = vmatprep.subr.bf16.mxu0 0
      %1420 = vmatpush1.bf16.msra.mxu0 0
      %1421 = vmatprep.subr.bf16.mxu0 0
      %1422 = vmatpush1.bf16.msra.mxu0 0
      %1423 = vmatprep.subr.bf16.mxu0 0
      %1424 = vmatpush1.bf16.msra.mxu0 0
      %1425 = vmatprep.subr.bf16.mxu0 0
      %1426 = vmatpush1.bf16.msra.mxu0 0
      %1427 = vmatprep.subr.bf16.mxu0 0
      %1428 = vmatpush1.bf16.msra.mxu0 0
      %1429 = vmatprep.subr.bf16.mxu0 0
      %1430 = vmatpush1.bf16.msra.mxu0 0
      %1431 = vmatprep.subr.bf16.mxu0 0
      %1432 = vmatpush1.bf16.msra.mxu0 0
      %1433 = vmatprep.subr.bf16.mxu0 0
      %1434 = vmatpush1.bf16.msra.mxu0 0
      %1435 = vmatprep.subr.bf16.mxu0 0
      %1436 = vmatpush1.bf16.msra.mxu0 0
      %1437 = vmatprep.subr.bf16.mxu0 0
      %1438 = vmatpush1.bf16.msra.mxu0 0
      %1439 = vmatprep.subr.bf16.mxu0 0
      %1440 = vmatpush1.bf16.msra.mxu0 0
      %1441 = vmatprep.subr.bf16.mxu0 0
      %1442 = vmatpush1.bf16.msra.mxu0 0
      %1443 = vmatprep.mubr.bf16.mxu0 0
      %1444 = vmatmul.mubr.bf16.gmra.mrb[0].mxu0 %v1385
      %v1445 = vpop.f32.mrb[0].mxu0
      %v1446 = vadd.f32 %v1290, %v1445
      %v1447 = vpop.f32.mrb[0].mxu0
      %v1448 = vpop.f32.mrb[0].mxu0
      %v1449 = vadd.f32 %v1293, %v1448
      %v1450 = vpop.f32.mrb[0].mxu0
      %1451 = vmatprep.mubr.bf16.mxu0 0
      %1452 = vmatmul.mubr.bf16.gmra.mrb[0].mxu0 %v1388
      %v1453 = vpop.f32.mrb[0].mxu0
      %v1454 = vadd.f32 %v1298, %v1453
      %v1455 = vpop.f32.mrb[0].mxu0
      %v1456 = vpop.f32.mrb[0].mxu0
      %v1457 = vadd.f32 %v1301, %v1456
      %v1458 = vpop.f32.mrb[0].mxu0
      %1459 = vmatprep.mubr.bf16.mxu0 0
      %1460 = vmatmul.mubr.bf16.gmra.mrb[0].mxu0 %v1391
      %v1461 = vpop.f32.mrb[0].mxu0
      %v1462 = vadd.f32 %v1306, %v1461
      %v1463 = vpop.f32.mrb[0].mxu0
      %v1464 = vpop.f32.mrb[0].mxu0
      %v1465 = vadd.f32 %v1309, %v1464
      %v1466 = vpop.f32.mrb[0].mxu0
      %1467 = vmatprep.mubr.bf16.mxu0 0
      %1468 = vmatmul.mubr.bf16.gmra.mrb[0].mxu0 %v1394
      %v1469 = vpop.f32.mrb[0].mxu0
      %v1470 = vadd.f32 %v1314, %v1469
      %v1471 = vpop.f32.mrb[0].mxu0
      %v1472 = vpop.f32.mrb[0].mxu0
      %v1473 = vadd.f32 %v1317, %v1472
      %v1474 = vpop.f32.mrb[0].mxu0
      %1475 = vmatprep.mubr.bf16.mxu0 0
      %1476 = vmatmul.mubr.bf16.gmra.mrb[0].mxu0 %v1397
      %v1477 = vpop.f32.mrb[0].mxu0
      %v1478 = vadd.f32 %v1322, %v1477
      %v1479 = vpop.f32.mrb[0].mxu0
      %v1480 = vpop.f32.mrb[0].mxu0
      %v1481 = vadd.f32 %v1325, %v1480
      %v1482 = vpop.f32.mrb[0].mxu0
      %1483 = vmatprep.mubr.bf16.mxu0 0
      %1484 = vmatmul.mubr.bf16.gmra.mrb[0].mxu0 %v1400
      %v1485 = vpop.f32.mrb[0].mxu0
      %v1486 = vadd.f32 %v1330, %v1485
      %v1487 = vpop.f32.mrb[0].mxu0
      %v1488 = vpop.f32.mrb[0].mxu0
      %v1489 = vadd.f32 %v1333, %v1488
      %v1490 = vpop.f32.mrb[0].mxu0
      %1491 = vmatprep.mubr.bf16.mxu0 0
      %1492 = vmatmul.mubr.bf16.gmra.mrb[0].mxu0 %v1403
      %v1493 = vpop.f32.mrb[0].mxu0
      %v1494 = vadd.f32 %v1338, %v1493
      %v1495 = vpop.f32.mrb[0].mxu0
      %v1496 = vpop.f32.mrb[0].mxu0
      %v1497 = vadd.f32 %v1341, %v1496
      %v1498 = vpop.f32.mrb[0].mxu0
      %1499 = vmatprep.mubr.bf16.mxu0 0
      %1500 = vmatmul.mubr.bf16.gmra.mrb[0].mxu0 %v1406
      %v1501 = vpop.f32.mrb[0].mxu0
      %v1502 = vadd.f32 %v1346, %v1501
      %v1503 = vpop.f32.mrb[0].mxu0
      %v1504 = vpop.f32.mrb[0].mxu0
      %v1505 = vadd.f32 %v1349, %v1504
      %v1506 = vpop.f32.mrb[0].mxu0
      %1507 = vdwg.mxu0
      %s1508 = scalar_lea.vmem %s1, 4
      %v1509 = vld [vmem:[%s1508] sm:$0x3]
      %v1518 = vunpack.c.l.b16 %v590
      %v1519 = vunpack.c.l.b16 %v591
      %v1520 = vunpack.c.l.b16 %v592
      %v1521 = vunpack.c.l.b16 %v593
      %v1522 = vunpack.c.l.b16 %v594
      %v1523 = vunpack.c.l.b16 %v595
      %v1524 = vunpack.c.l.b16 %v596
      %v1525 = vunpack.c.l.b16 %v597
      %v1526 = vunpack.c.l.b16 %v598
      %v1527 = vunpack.c.l.b16 %v599
      %v1528 = vunpack.c.l.b16 %v600
      %v1529 = vunpack.c.l.b16 %v601
      %v1530 = vunpack.c.l.b16 %v602
      %v1531 = vunpack.c.l.b16 %v603
      %v1532 = vunpack.c.l.b16 %v604
      %v1533 = vunpack.c.l.b16 %v605
      %v1534 = vpack.c.b16 %v1519, %v1518
      %v1535 = vpack.c.b16 %v1521, %v1520
      %v1536 = vpack.c.b16 %v1523, %v1522
      %v1537 = vpack.c.b16 %v1525, %v1524
      %v1538 = vpack.c.b16 %v1527, %v1526
      %v1539 = vpack.c.b16 %v1529, %v1528
      %v1540 = vpack.c.b16 %v1531, %v1530
      %v1541 = vpack.c.b16 %v1533, %v1532
      %v1543 = vsel %vm1226, %v1534, 0
      %v1546 = vsel %vm1226, %v1535, 0
      %v1549 = vsel %vm1226, %v1536, 0
      %v1552 = vsel %vm1226, %v1537, 0
      %v1555 = vsel %vm1226, %v1538, 0
      %v1558 = vsel %vm1226, %v1539, 0
      %v1561 = vsel %vm1226, %v1540, 0
      %v1564 = vsel %vm1226, %v1541, 0
      %v1567 = vsel %vm1251, %v1509, 0
      %1569 = vmatprep.subr.bf16.mxu0 0
      %1570 = vmatpush1.bf16.msra.mxu0 %v1567
      %1571 = vmatprep.subr.bf16.mxu0 0
      %1572 = vmatpush1.bf16.msra.mxu0 0
      %1573 = vmatprep.subr.bf16.mxu0 0
      %1574 = vmatpush1.bf16.msra.mxu0 0
      %1575 = vmatprep.subr.bf16.mxu0 0
      %1576 = vmatpush1.bf16.msra.mxu0 0
      %1577 = vmatprep.subr.bf16.mxu0 0
      %1578 = vmatpush1.bf16.msra.mxu0 0
      %1579 = vmatprep.subr.bf16.mxu0 0
      %1580 = vmatpush1.bf16.msra.mxu0 0
      %1581 = vmatprep.subr.bf16.mxu0 0
      %1582 = vmatpush1.bf16.msra.mxu0 0
      %1583 = vmatprep.subr.bf16.mxu0 0
      %1584 = vmatpush1.bf16.msra.mxu0 0
      %1585 = vmatprep.subr.bf16.mxu0 0
      %1586 = vmatpush1.bf16.msra.mxu0 0
      %1587 = vmatprep.subr.bf16.mxu0 0
      %1588 = vmatpush1.bf16.msra.mxu0 0
      %1589 = vmatprep.subr.bf16.mxu0 0
      %1590 = vmatpush1.bf16.msra.mxu0 0
      %1591 = vmatprep.subr.bf16.mxu0 0
      %1592 = vmatpush1.bf16.msra.mxu0 0
      %1593 = vmatprep.subr.bf16.mxu0 0
      %1594 = vmatpush1.bf16.msra.mxu0 0
      %1595 = vmatprep.subr.bf16.mxu0 0
      %1596 = vmatpush1.bf16.msra.mxu0 0
      %1597 = vmatprep.subr.bf16.mxu0 0
      %1598 = vmatpush1.bf16.msra.mxu0 0
      %1599 = vmatprep.subr.bf16.mxu0 0
      %1600 = vmatpush1.bf16.msra.mxu0 0
      %1601 = vmatprep.mubr.bf16.mxu0 0
      %1602 = vmatmul.mubr.bf16.gmra.mrb[0].mxu0 %v1543
      %v1603 = vpop.f32.mrb[0].mxu0
      %v1604 = vadd.f32 0.0, %v1603
      %v1605 = vpop.f32.mrb[0].mxu0
      %v1606 = vpop.f32.mrb[0].mxu0
      %v1607 = vadd.f32 0.0, %v1606
      %v1608 = vpop.f32.mrb[0].mxu0
      %1609 = vmatprep.mubr.bf16.mxu0 0
      %1610 = vmatmul.mubr.bf16.gmra.mrb[0].mxu0 %v1546
      %v1611 = vpop.f32.mrb[0].mxu0
      %v1612 = vadd.f32 0.0, %v1611
      %v1613 = vpop.f32.mrb[0].mxu0
      %v1614 = vpop.f32.mrb[0].mxu0
      %v1615 = vadd.f32 0.0, %v1614
      %v1616 = vpop.f32.mrb[0].mxu0
      %1617 = vmatprep.mubr.bf16.mxu0 0
      %1618 = vmatmul.mubr.bf16.gmra.mrb[0].mxu0 %v1549
      %v1619 = vpop.f32.mrb[0].mxu0
      %v1620 = vadd.f32 0.0, %v1619
      %v1621 = vpop.f32.mrb[0].mxu0
      %v1622 = vpop.f32.mrb[0].mxu0
      %v1623 = vadd.f32 0.0, %v1622
      %v1624 = vpop.f32.mrb[0].mxu0
      %1625 = vmatprep.mubr.bf16.mxu0 0
      %1626 = vmatmul.mubr.bf16.gmra.mrb[0].mxu0 %v1552
      %v1627 = vpop.f32.mrb[0].mxu0
      %v1628 = vadd.f32 0.0, %v1627
      %v1629 = vpop.f32.mrb[0].mxu0
      %v1630 = vpop.f32.mrb[0].mxu0
      %v1631 = vadd.f32 0.0, %v1630
      %v1632 = vpop.f32.mrb[0].mxu0
      %1633 = vmatprep.mubr.bf16.mxu0 0
      %1634 = vmatmul.mubr.bf16.gmra.mrb[0].mxu0 %v1555
      %v1635 = vpop.f32.mrb[0].mxu0
      %v1636 = vadd.f32 0.0, %v1635
      %v1637 = vpop.f32.mrb[0].mxu0
      %v1638 = vpop.f32.mrb[0].mxu0
      %v1639 = vadd.f32 0.0, %v1638
      %v1640 = vpop.f32.mrb[0].mxu0
      %1641 = vmatprep.mubr.bf16.mxu0 0
      %1642 = vmatmul.mubr.bf16.gmra.mrb[0].mxu0 %v1558
      %v1643 = vpop.f32.mrb[0].mxu0
      %v1644 = vadd.f32 0.0, %v1643
      %v1645 = vpop.f32.mrb[0].mxu0
      %v1646 = vpop.f32.mrb[0].mxu0
      %v1647 = vadd.f32 0.0, %v1646
      %v1648 = vpop.f32.mrb[0].mxu0
      %1649 = vmatprep.mubr.bf16.mxu0 0
      %1650 = vmatmul.mubr.bf16.gmra.mrb[0].mxu0 %v1561
      %v1651 = vpop.f32.mrb[0].mxu0
      %v1652 = vadd.f32 0.0, %v1651
      %v1653 = vpop.f32.mrb[0].mxu0
      %v1654 = vpop.f32.mrb[0].mxu0
      %v1655 = vadd.f32 0.0, %v1654
      %v1656 = vpop.f32.mrb[0].mxu0
      %1657 = vmatprep.mubr.bf16.mxu0 0
      %1658 = vmatmul.mubr.bf16.gmra.mrb[0].mxu0 %v1564
      %v1659 = vpop.f32.mrb[0].mxu0
      %v1660 = vadd.f32 0.0, %v1659
      %v1661 = vpop.f32.mrb[0].mxu0
      %v1662 = vpop.f32.mrb[0].mxu0
      %v1663 = vadd.f32 0.0, %v1662
      %v1664 = vpop.f32.mrb[0].mxu0
      %1665 = vdwg.mxu0
      %v1666 = vadd.f32 %v1446, %v1604
      %v1667 = vadd.f32 %v1449, %v1607
      %v1668 = vadd.f32 %v1454, %v1612
      %v1669 = vadd.f32 %v1457, %v1615
      %v1670 = vadd.f32 %v1462, %v1620
      %v1671 = vadd.f32 %v1465, %v1623
      %v1672 = vadd.f32 %v1470, %v1628
      %v1673 = vadd.f32 %v1473, %v1631
      %v1674 = vadd.f32 %v1478, %v1636
      %v1675 = vadd.f32 %v1481, %v1639
      %v1676 = vadd.f32 %v1486, %v1644
      %v1677 = vadd.f32 %v1489, %v1647
      %v1678 = vadd.f32 %v1494, %v1652
      %v1679 = vadd.f32 %v1497, %v1655
      %v1680 = vadd.f32 %v1502, %v1660
      %v1681 = vadd.f32 %v1505, %v1663
      %s1682 = scalar_lea.vmem %s1, 6
      %v1683 = vld [vmem:[%s1682] sm:$0x3]
      %v1684 = vunpack.c.l.b16 %v627
      %v1685 = vunpack.c.l.b16 %v637
      %v1686 = vunpack.c.l.b16 %v651
      %v1687 = vunpack.c.l.b16 %v661
      %v1688 = vunpack.c.l.b16 %v675
      %v1689 = vunpack.c.l.b16 %v685
      %v1690 = vunpack.c.l.b16 %v699
      %v1691 = vunpack.c.l.b16 %v709
      %v1692 = vunpack.c.l.b16 %v723
      %v1693 = vunpack.c.l.b16 %v733
      %v1694 = vunpack.c.l.b16 %v747
      %v1695 = vunpack.c.l.b16 %v757
      %v1696 = vunpack.c.l.b16 %v771
      %v1697 = vunpack.c.l.b16 %v781
      %v1698 = vunpack.c.l.b16 %v795
      %v1699 = vunpack.c.l.b16 %v805
      %v1700 = vpack.c.b16 %v1685, %v1684
      %v1701 = vpack.c.b16 %v1687, %v1686
      %v1702 = vpack.c.b16 %v1689, %v1688
      %v1703 = vpack.c.b16 %v1691, %v1690
      %v1704 = vpack.c.b16 %v1693, %v1692
      %v1705 = vpack.c.b16 %v1695, %v1694
      %v1706 = vpack.c.b16 %v1697, %v1696
      %v1707 = vpack.c.b16 %v1699, %v1698
      %v1709 = vsel %vm1226, %v1700, 0
      %v1712 = vsel %vm1226, %v1701, 0
      %v1715 = vsel %vm1226, %v1702, 0
      %v1718 = vsel %vm1226, %v1703, 0
      %v1721 = vsel %vm1226, %v1704, 0
      %v1724 = vsel %vm1226, %v1705, 0
      %v1727 = vsel %vm1226, %v1706, 0
      %v1730 = vsel %vm1226, %v1707, 0
      %v1733 = vsel %vm1251, %v1683, 0
      %1735 = vmatprep.subr.bf16.mxu0 0
      %1736 = vmatpush1.bf16.msra.mxu0 %v1733
      %1737 = vmatprep.subr.bf16.mxu0 0
      %1738 = vmatpush1.bf16.msra.mxu0 0
      %1739 = vmatprep.subr.bf16.mxu0 0
      %1740 = vmatpush1.bf16.msra.mxu0 0
      %1741 = vmatprep.subr.bf16.mxu0 0
      %1742 = vmatpush1.bf16.msra.mxu0 0
      %1743 = vmatprep.subr.bf16.mxu0 0
      %1744 = vmatpush1.bf16.msra.mxu0 0
      %1745 = vmatprep.subr.bf16.mxu0 0
      %1746 = vmatpush1.bf16.msra.mxu0 0
      %1747 = vmatprep.subr.bf16.mxu0 0
      %1748 = vmatpush1.bf16.msra.mxu0 0
      %1749 = vmatprep.subr.bf16.mxu0 0
      %1750 = vmatpush1.bf16.msra.mxu0 0
      %1751 = vmatprep.subr.bf16.mxu0 0
      %1752 = vmatpush1.bf16.msra.mxu0 0
      %1753 = vmatprep.subr.bf16.mxu0 0
      %1754 = vmatpush1.bf16.msra.mxu0 0
      %1755 = vmatprep.subr.bf16.mxu0 0
      %1756 = vmatpush1.bf16.msra.mxu0 0
      %1757 = vmatprep.subr.bf16.mxu0 0
      %1758 = vmatpush1.bf16.msra.mxu0 0
      %1759 = vmatprep.subr.bf16.mxu0 0
      %1760 = vmatpush1.bf16.msra.mxu0 0
      %1761 = vmatprep.subr.bf16.mxu0 0
      %1762 = vmatpush1.bf16.msra.mxu0 0
      %1763 = vmatprep.subr.bf16.mxu0 0
      %1764 = vmatpush1.bf16.msra.mxu0 0
      %1765 = vmatprep.subr.bf16.mxu0 0
      %1766 = vmatpush1.bf16.msra.mxu0 0
      %1767 = vmatprep.mubr.bf16.mxu0 0
      %1768 = vmatmul.mubr.bf16.gmra.mrb[0].mxu0 %v1709
      %v1769 = vpop.f32.mrb[0].mxu0
      %v1770 = vadd.f32 0.0, %v1769
      %v1771 = vpop.f32.mrb[0].mxu0
      %v1772 = vpop.f32.mrb[0].mxu0
      %v1773 = vadd.f32 0.0, %v1772
      %v1774 = vpop.f32.mrb[0].mxu0
      %1775 = vmatprep.mubr.bf16.mxu0 0
      %1776 = vmatmul.mubr.bf16.gmra.mrb[0].mxu0 %v1712
      %v1777 = vpop.f32.mrb[0].mxu0
      %v1778 = vadd.f32 0.0, %v1777
      %v1779 = vpop.f32.mrb[0].mxu0
      %v1780 = vpop.f32.mrb[0].mxu0
      %v1781 = vadd.f32 0.0, %v1780
      %v1782 = vpop.f32.mrb[0].mxu0
      %1783 = vmatprep.mubr.bf16.mxu0 0
      %1784 = vmatmul.mubr.bf16.gmra.mrb[0].mxu0 %v1715
      %v1785 = vpop.f32.mrb[0].mxu0
      %v1786 = vadd.f32 0.0, %v1785
      %v1787 = vpop.f32.mrb[0].mxu0
      %v1788 = vpop.f32.mrb[0].mxu0
      %v1789 = vadd.f32 0.0, %v1788
      %v1790 = vpop.f32.mrb[0].mxu0
      %1791 = vmatprep.mubr.bf16.mxu0 0
      %1792 = vmatmul.mubr.bf16.gmra.mrb[0].mxu0 %v1718
      %v1793 = vpop.f32.mrb[0].mxu0
      %v1794 = vadd.f32 0.0, %v1793
      %v1795 = vpop.f32.mrb[0].mxu0
      %v1796 = vpop.f32.mrb[0].mxu0
      %v1797 = vadd.f32 0.0, %v1796
      %v1798 = vpop.f32.mrb[0].mxu0
      %1799 = vmatprep.mubr.bf16.mxu0 0
      %1800 = vmatmul.mubr.bf16.gmra.mrb[0].mxu0 %v1721
      %v1801 = vpop.f32.mrb[0].mxu0
      %v1802 = vadd.f32 0.0, %v1801
      %v1803 = vpop.f32.mrb[0].mxu0
      %v1804 = vpop.f32.mrb[0].mxu0
      %v1805 = vadd.f32 0.0, %v1804
      %v1806 = vpop.f32.mrb[0].mxu0
      %1807 = vmatprep.mubr.bf16.mxu0 0
      %1808 = vmatmul.mubr.bf16.gmra.mrb[0].mxu0 %v1724
      %v1809 = vpop.f32.mrb[0].mxu0
      %v1810 = vadd.f32 0.0, %v1809
      %v1811 = vpop.f32.mrb[0].mxu0
      %v1812 = vpop.f32.mrb[0].mxu0
      %v1813 = vadd.f32 0.0, %v1812
      %v1814 = vpop.f32.mrb[0].mxu0
      %1815 = vmatprep.mubr.bf16.mxu0 0
      %1816 = vmatmul.mubr.bf16.gmra.mrb[0].mxu0 %v1727
      %v1817 = vpop.f32.mrb[0].mxu0
      %v1818 = vadd.f32 0.0, %v1817
      %v1819 = vpop.f32.mrb[0].mxu0
      %v1820 = vpop.f32.mrb[0].mxu0
      %v1821 = vadd.f32 0.0, %v1820
      %v1822 = vpop.f32.mrb[0].mxu0
      %1823 = vmatprep.mubr.bf16.mxu0 0
      %1824 = vmatmul.mubr.bf16.gmra.mrb[0].mxu0 %v1730
      %v1825 = vpop.f32.mrb[0].mxu0
      %v1826 = vadd.f32 0.0, %v1825
      %v1827 = vpop.f32.mrb[0].mxu0
      %v1828 = vpop.f32.mrb[0].mxu0
      %v1829 = vadd.f32 0.0, %v1828
      %v1830 = vpop.f32.mrb[0].mxu0
      %1831 = vdwg.mxu0
      %v1832 = vadd.f32 %v1666, %v1770
      %v1833 = vadd.f32 %v1667, %v1773
      %v1834 = vadd.f32 %v1668, %v1778
      %v1835 = vadd.f32 %v1669, %v1781
      %v1836 = vadd.f32 %v1670, %v1786
      %v1837 = vadd.f32 %v1671, %v1789
      %v1838 = vadd.f32 %v1672, %v1794
      %v1839 = vadd.f32 %v1673, %v1797
      %v1840 = vadd.f32 %v1674, %v1802
      %v1841 = vadd.f32 %v1675, %v1805
      %v1842 = vadd.f32 %v1676, %v1810
      %v1843 = vadd.f32 %v1677, %v1813
      %v1844 = vadd.f32 %v1678, %v1818
      %v1845 = vadd.f32 %v1679, %v1821
      %v1846 = vadd.f32 %v1680, %v1826
      %v1847 = vadd.f32 %v1681, %v1829
      %vm1848 = vcmask 64512
      %v1849 = vsel %vm1848, %v1832, 0.0
      %v1850 = vsel %vm1848, %v1833, 0.0
      %v1851 = vadd.f32 %v1849, %v1850
      %v1852 = vsel %vm1848, %v1834, 0.0
      %v1853 = vadd.f32 %v1851, %v1852
      %v1854 = vsel %vm1848, %v1835, 0.0
      %v1855 = vadd.f32 %v1853, %v1854
      %v1856 = vsel %vm1848, %v1836, 0.0
      %v1857 = vadd.f32 %v1855, %v1856
      %v1858 = vsel %vm1848, %v1837, 0.0
      %v1859 = vadd.f32 %v1857, %v1858
      %v1860 = vsel %vm1848, %v1838, 0.0
      %v1861 = vadd.f32 %v1859, %v1860
      %v1862 = vsel %vm1848, %v1839, 0.0
      %v1863 = vadd.f32 %v1861, %v1862
      %v1864 = vsel %vm1848, %v1840, 0.0
      %v1865 = vadd.f32 %v1863, %v1864
      %v1866 = vsel %vm1848, %v1841, 0.0
      %v1867 = vadd.f32 %v1865, %v1866
      %v1868 = vsel %vm1848, %v1842, 0.0
      %v1869 = vadd.f32 %v1867, %v1868
      %v1870 = vsel %vm1848, %v1843, 0.0
      %v1871 = vadd.f32 %v1869, %v1870
      %v1872 = vsel %vm1848, %v1844, 0.0
      %v1873 = vadd.f32 %v1871, %v1872
      %v1874 = vsel %vm1848, %v1845, 0.0
      %v1875 = vadd.f32 %v1873, %v1874
      %v1876 = vsel %vm1848, %v1846, 0.0
      %v1877 = vadd.f32 %v1875, %v1876
      %v1878 = vsel %vm1848, %v1847, 0.0
      %v1879 = vadd.f32 %v1877, %v1878
      %v1880 = vrot.slane %v1879, 4
      %v1881 = vadd.f32 %v1879, %v1880
      %v1882 = vrot.slane %v1881, 2
      %v1883 = vadd.f32 %v1881, %v1882
      %v1884 = vrot.slane %v1883, 1
      %v1885 = vadd.f32 %v1883, %v1884
      %v1886 = vmul.f32 %v1885, 0.0078125
      %v1887 = vsub.f32 %v1832, %v1886
      %v1888 = vsub.f32 %v1833, %v1886
      %v1889 = vsub.f32 %v1834, %v1886
      %v1890 = vsub.f32 %v1835, %v1886
      %v1891 = vsub.f32 %v1836, %v1886
      %v1892 = vsub.f32 %v1837, %v1886
      %v1893 = vsub.f32 %v1838, %v1886
      %v1894 = vsub.f32 %v1839, %v1886
      %v1895 = vsub.f32 %v1840, %v1886
      %v1896 = vsub.f32 %v1841, %v1886
      %v1897 = vsub.f32 %v1842, %v1886
      %v1898 = vsub.f32 %v1843, %v1886
      %v1899 = vsub.f32 %v1844, %v1886
      %v1900 = vsub.f32 %v1845, %v1886
      %v1901 = vsub.f32 %v1846, %v1886
      %v1902 = vsub.f32 %v1847, %v1886
      %v1903 = vmul.f32 %v1887, %v1887
      %v1904 = vmul.f32 %v1888, %v1888
      %v1905 = vmul.f32 %v1889, %v1889
      %v1906 = vmul.f32 %v1890, %v1890
      %v1907 = vmul.f32 %v1891, %v1891
      %v1908 = vmul.f32 %v1892, %v1892
      %v1909 = vmul.f32 %v1893, %v1893
      %v1910 = vmul.f32 %v1894, %v1894
      %v1911 = vmul.f32 %v1895, %v1895
      %v1912 = vmul.f32 %v1896, %v1896
      %v1913 = vmul.f32 %v1897, %v1897
      %v1914 = vmul.f32 %v1898, %v1898
      %v1915 = vmul.f32 %v1899, %v1899
      %v1916 = vmul.f32 %v1900, %v1900
      %v1917 = vmul.f32 %v1901, %v1901
      %v1918 = vmul.f32 %v1902, %v1902
      %v1919 = vsel %vm1848, %v1903, 0.0
      %v1920 = vsel %vm1848, %v1904, 0.0
      %v1921 = vadd.f32 %v1919, %v1920
      %v1922 = vsel %vm1848, %v1905, 0.0
      %v1923 = vadd.f32 %v1921, %v1922
      %v1924 = vsel %vm1848, %v1906, 0.0
      %v1925 = vadd.f32 %v1923, %v1924
      %v1926 = vsel %vm1848, %v1907, 0.0
      %v1927 = vadd.f32 %v1925, %v1926
      %v1928 = vsel %vm1848, %v1908, 0.0
      %v1929 = vadd.f32 %v1927, %v1928
      %v1930 = vsel %vm1848, %v1909, 0.0
      %v1931 = vadd.f32 %v1929, %v1930
      %v1932 = vsel %vm1848, %v1910, 0.0
      %v1933 = vadd.f32 %v1931, %v1932
      %v1934 = vsel %vm1848, %v1911, 0.0
      %v1935 = vadd.f32 %v1933, %v1934
      %v1936 = vsel %vm1848, %v1912, 0.0
      %v1937 = vadd.f32 %v1935, %v1936
      %v1938 = vsel %vm1848, %v1913, 0.0
      %v1939 = vadd.f32 %v1937, %v1938
      %v1940 = vsel %vm1848, %v1914, 0.0
      %v1941 = vadd.f32 %v1939, %v1940
      %v1942 = vsel %vm1848, %v1915, 0.0
      %v1943 = vadd.f32 %v1941, %v1942
      %v1944 = vsel %vm1848, %v1916, 0.0
      %v1945 = vadd.f32 %v1943, %v1944
      %v1946 = vsel %vm1848, %v1917, 0.0
      %v1947 = vadd.f32 %v1945, %v1946
      %v1948 = vsel %vm1848, %v1918, 0.0
      %v1949 = vadd.f32 %v1947, %v1948
      %v1950 = vrot.slane %v1949, 4
      %v1951 = vadd.f32 %v1949, %v1950
      %v1952 = vrot.slane %v1951, 2
      %v1953 = vadd.f32 %v1951, %v1952
      %v1954 = vrot.slane %v1953, 1
      %v1955 = vadd.f32 %v1953, %v1954
      %vm1956 = vcmask 57344
      %1957 = vst.msk [vmem:[%s269] sm:$0x1] %vm1956, %v1885
      %1958 = vst.msk [vmem:[%s277] sm:$0x1] %vm1956, %v1955
      %v1959 = vpack.c.bf16 %v1833, %v1832
      %v1960 = vpack.c.bf16 %v1835, %v1834
      %v1961 = vpack.c.bf16 %v1837, %v1836
      %v1962 = vpack.c.bf16 %v1839, %v1838
      %v1963 = vpack.c.bf16 %v1841, %v1840
      %v1964 = vpack.c.bf16 %v1843, %v1842
      %v1965 = vpack.c.bf16 %v1845, %v1844
      %v1966 = vpack.c.bf16 %v1847, %v1846
      %v1975 = vunpack.c.l.b16 %v1959
      %v1976 = vunpack.c.h.b16 %v1959
      %v1977 = vunpack.c.l.b16 %v1960
      %v1978 = vunpack.c.h.b16 %v1960
      %v1979 = vunpack.c.l.b16 %v1961
      %v1980 = vunpack.c.h.b16 %v1961
      %v1981 = vunpack.c.l.b16 %v1962
      %v1982 = vunpack.c.h.b16 %v1962
      %v1983 = vunpack.c.l.b16 %v1963
      %v1984 = vunpack.c.h.b16 %v1963
      %v1985 = vunpack.c.l.b16 %v1964
      %v1986 = vunpack.c.h.b16 %v1964
      %v1987 = vunpack.c.l.b16 %v1965
      %v1988 = vunpack.c.h.b16 %v1965
      %v1989 = vunpack.c.l.b16 %v1966
      %v1990 = vunpack.c.h.b16 %v1966
      %v1991 = vpack.c.b16 %v1975, %v1975
      %v1992 = vpack.c.b16 %v1976, %v1976
      %v1993 = vpack.c.b16 %v1977, %v1977
      %v1994 = vpack.c.b16 %v1978, %v1978
      %v1995 = vpack.c.b16 %v1979, %v1979
      %v1996 = vpack.c.b16 %v1980, %v1980
      %v1997 = vpack.c.b16 %v1981, %v1981
      %v1998 = vpack.c.b16 %v1982, %v1982
      %v1999 = vpack.c.b16 %v1983, %v1983
      %v2000 = vpack.c.b16 %v1984, %v1984
      %v2001 = vpack.c.b16 %v1985, %v1985
      %v2002 = vpack.c.b16 %v1986, %v1986
      %v2003 = vpack.c.b16 %v1987, %v1987
      %v2004 = vpack.c.b16 %v1988, %v1988
      %v2005 = vpack.c.b16 %v1989, %v1989
      %v2006 = vpack.c.b16 %v1990, %v1990
      %vm2023 = vcmask 60416
      %2024 = vst.msk [vmem:[%s260] sm:$0xf] %vm2023, %v1991
      %2025 = vst.msk [vmem:[%s260 + $0x4] sm:$0xf] %vm2023, %v1992
      %2026 = vst.msk [vmem:[%s260 + $0x10] sm:$0xf] %vm2023, %v1993
      %2027 = vst.msk [vmem:[%s260 + $0x14] sm:$0xf] %vm2023, %v1994
      %2028 = vst.msk [vmem:[%s260 + $0x20] sm:$0xf] %vm2023, %v1995
      %2029 = vst.msk [vmem:[%s260 + $0x24] sm:$0xf] %vm2023, %v1996
      %2030 = vst.msk [vmem:[%s260 + $0x30] sm:$0xf] %vm2023, %v1997
      %2031 = vst.msk [vmem:[%s260 + $0x34] sm:$0xf] %vm2023, %v1998
      %2032 = vst.msk [vmem:[%s260 + $0x40] sm:$0xf] %vm2023, %v1999
      %2033 = vst.msk [vmem:[%s260 + $0x44] sm:$0xf] %vm2023, %v2000
      %2034 = vst.msk [vmem:[%s260 + $0x50] sm:$0xf] %vm2023, %v2001
      %2035 = vst.msk [vmem:[%s260 + $0x54] sm:$0xf] %vm2023, %v2002
      %2036 = vst.msk [vmem:[%s260 + $0x60] sm:$0xf] %vm2023, %v2003
      %2037 = vst.msk [vmem:[%s260 + $0x64] sm:$0xf] %vm2023, %v2004
      %2038 = vst.msk [vmem:[%s260 + $0x70] sm:$0xf] %vm2023, %v2005
      %2039 = vst.msk [vmem:[%s260 + $0x74] sm:$0xf] %vm2023, %v2006
      %s2040 = scalar_lea.vmem %s1, 8
      %v2041 = vld [vmem:[%s2040] sm:$0x3]
      %s2042 = scalar_lea.vmem %s1, 10
      %v2043 = vld [vmem:[%s2042] sm:$0x3]
      %v2044 = vunpack.c.l.b16 %v536
      %v2045 = vunpack.c.l.b16 %v539
      %v2046 = vunpack.c.l.b16 %v543
      %v2047 = vunpack.c.l.b16 %v546
      %v2048 = vunpack.c.l.b16 %v550
      %v2049 = vunpack.c.l.b16 %v553
      %v2050 = vunpack.c.l.b16 %v557
      %v2051 = vunpack.c.l.b16 %v560
      %v2052 = vunpack.c.l.b16 %v564
      %v2053 = vunpack.c.l.b16 %v567
      %v2054 = vunpack.c.l.b16 %v571
      %v2055 = vunpack.c.l.b16 %v574
      %v2056 = vunpack.c.l.b16 %v578
      %v2057 = vunpack.c.l.b16 %v581
      %v2058 = vunpack.c.l.b16 %v585
      %v2059 = vunpack.c.l.b16 %v588
      %v2060 = vpack.c.b16 %v2045, %v2044
      %v2061 = vpack.c.b16 %v2047, %v2046
      %v2062 = vpack.c.b16 %v2049, %v2048
      %v2063 = vpack.c.b16 %v2051, %v2050
      %v2064 = vpack.c.b16 %v2053, %v2052
      %v2065 = vpack.c.b16 %v2055, %v2054
      %v2066 = vpack.c.b16 %v2057, %v2056
      %v2067 = vpack.c.b16 %v2059, %v2058
      %v2069 = vsel %vm1226, %v2060, 0
      %v2072 = vsel %vm1226, %v2061, 0
      %v2075 = vsel %vm1226, %v2062, 0
      %v2078 = vsel %vm1226, %v2063, 0
      %v2081 = vsel %vm1226, %v2064, 0
      %v2084 = vsel %vm1226, %v2065, 0
      %v2087 = vsel %vm1226, %v2066, 0
      %v2090 = vsel %vm1226, %v2067, 0
      %v2093 = vsel %vm1251, %v2043, 0
      %2095 = vmatprep.subr.bf16.mxu0 0
      %2096 = vmatpush1.bf16.msra.mxu0 %v2093
      %2097 = vmatprep.subr.bf16.mxu0 0
      %2098 = vmatpush1.bf16.msra.mxu0 0
      %2099 = vmatprep.subr.bf16.mxu0 0
      %2100 = vmatpush1.bf16.msra.mxu0 0
      %2101 = vmatprep.subr.bf16.mxu0 0
      %2102 = vmatpush1.bf16.msra.mxu0 0
      %2103 = vmatprep.subr.bf16.mxu0 0
      %2104 = vmatpush1.bf16.msra.mxu0 0
      %2105 = vmatprep.subr.bf16.mxu0 0
      %2106 = vmatpush1.bf16.msra.mxu0 0
      %2107 = vmatprep.subr.bf16.mxu0 0
      %2108 = vmatpush1.bf16.msra.mxu0 0
      %2109 = vmatprep.subr.bf16.mxu0 0
      %2110 = vmatpush1.bf16.msra.mxu0 0
      %2111 = vmatprep.subr.bf16.mxu0 0
      %2112 = vmatpush1.bf16.msra.mxu0 0
      %2113 = vmatprep.subr.bf16.mxu0 0
      %2114 = vmatpush1.bf16.msra.mxu0 0
      %2115 = vmatprep.subr.bf16.mxu0 0
      %2116 = vmatpush1.bf16.msra.mxu0 0
      %2117 = vmatprep.subr.bf16.mxu0 0
      %2118 = vmatpush1.bf16.msra.mxu0 0
      %2119 = vmatprep.subr.bf16.mxu0 0
      %2120 = vmatpush1.bf16.msra.mxu0 0
      %2121 = vmatprep.subr.bf16.mxu0 0
      %2122 = vmatpush1.bf16.msra.mxu0 0
      %2123 = vmatprep.subr.bf16.mxu0 0
      %2124 = vmatpush1.bf16.msra.mxu0 0
      %2125 = vmatprep.subr.bf16.mxu0 0
      %2126 = vmatpush1.bf16.msra.mxu0 0
      %2127 = vmatprep.mubr.bf16.mxu0 0
      %2128 = vmatmul.mubr.bf16.gmra.mrb[0].mxu0 %v2069
      %v2129 = vpop.f32.mrb[0].mxu0
      %v2130 = vadd.f32 0.0, %v2129
      %v2131 = vpop.f32.mrb[0].mxu0
      %v2132 = vpop.f32.mrb[0].mxu0
      %v2133 = vadd.f32 0.0, %v2132
      %v2134 = vpop.f32.mrb[0].mxu0
      %2135 = vmatprep.mubr.bf16.mxu0 0
      %2136 = vmatmul.mubr.bf16.gmra.mrb[0].mxu0 %v2072
      %v2137 = vpop.f32.mrb[0].mxu0
      %v2138 = vadd.f32 0.0, %v2137
      %v2139 = vpop.f32.mrb[0].mxu0
      %v2140 = vpop.f32.mrb[0].mxu0
      %v2141 = vadd.f32 0.0, %v2140
      %v2142 = vpop.f32.mrb[0].mxu0
      %2143 = vmatprep.mubr.bf16.mxu0 0
      %2144 = vmatmul.mubr.bf16.gmra.mrb[0].mxu0 %v2075
      %v2145 = vpop.f32.mrb[0].mxu0
      %v2146 = vadd.f32 0.0, %v2145
      %v2147 = vpop.f32.mrb[0].mxu0
      %v2148 = vpop.f32.mrb[0].mxu0
      %v2149 = vadd.f32 0.0, %v2148
      %v2150 = vpop.f32.mrb[0].mxu0
      %2151 = vmatprep.mubr.bf16.mxu0 0
      %2152 = vmatmul.mubr.bf16.gmra.mrb[0].mxu0 %v2078
      %v2153 = vpop.f32.mrb[0].mxu0
      %v2154 = vadd.f32 0.0, %v2153
      %v2155 = vpop.f32.mrb[0].mxu0
      %v2156 = vpop.f32.mrb[0].mxu0
      %v2157 = vadd.f32 0.0, %v2156
      %v2158 = vpop.f32.mrb[0].mxu0
      %2159 = vmatprep.mubr.bf16.mxu0 0
      %2160 = vmatmul.mubr.bf16.gmra.mrb[0].mxu0 %v2081
      %v2161 = vpop.f32.mrb[0].mxu0
      %v2162 = vadd.f32 0.0, %v2161
      %v2163 = vpop.f32.mrb[0].mxu0
      %v2164 = vpop.f32.mrb[0].mxu0
      %v2165 = vadd.f32 0.0, %v2164
      %v2166 = vpop.f32.mrb[0].mxu0
      %2167 = vmatprep.mubr.bf16.mxu0 0
      %2168 = vmatmul.mubr.bf16.gmra.mrb[0].mxu0 %v2084
      %v2169 = vpop.f32.mrb[0].mxu0
      %v2170 = vadd.f32 0.0, %v2169
      %v2171 = vpop.f32.mrb[0].mxu0
      %v2172 = vpop.f32.mrb[0].mxu0
      %v2173 = vadd.f32 0.0, %v2172
      %v2174 = vpop.f32.mrb[0].mxu0
      %2175 = vmatprep.mubr.bf16.mxu0 0
      %2176 = vmatmul.mubr.bf16.gmra.mrb[0].mxu0 %v2087
      %v2177 = vpop.f32.mrb[0].mxu0
      %v2178 = vadd.f32 0.0, %v2177
      %v2179 = vpop.f32.mrb[0].mxu0
      %v2180 = vpop.f32.mrb[0].mxu0
      %v2181 = vadd.f32 0.0, %v2180
      %v2182 = vpop.f32.mrb[0].mxu0
      %2183 = vmatprep.mubr.bf16.mxu0 0
      %2184 = vmatmul.mubr.bf16.gmra.mrb[0].mxu0 %v2090
      %v2185 = vpop.f32.mrb[0].mxu0
      %v2186 = vadd.f32 0.0, %v2185
      %v2187 = vpop.f32.mrb[0].mxu0
      %v2188 = vpop.f32.mrb[0].mxu0
      %v2189 = vadd.f32 0.0, %v2188
      %v2190 = vpop.f32.mrb[0].mxu0
      %2191 = vdwg.mxu0
      %v2193 = vsel %vm1251, %v2041, 0
      %2195 = vmatprep.subr.bf16.mxu0 0
      %2196 = vmatpush1.bf16.msra.mxu0 %v2193
      %2197 = vmatprep.subr.bf16.mxu0 0
      %2198 = vmatpush1.bf16.msra.mxu0 0
      %2199 = vmatprep.subr.bf16.mxu0 0
      %2200 = vmatpush1.bf16.msra.mxu0 0
      %2201 = vmatprep.subr.bf16.mxu0 0
      %2202 = vmatpush1.bf16.msra.mxu0 0
      %2203 = vmatprep.subr.bf16.mxu0 0
      %2204 = vmatpush1.bf16.msra.mxu0 0
      %2205 = vmatprep.subr.bf16.mxu0 0
      %2206 = vmatpush1.bf16.msra.mxu0 0
      %2207 = vmatprep.subr.bf16.mxu0 0
      %2208 = vmatpush1.bf16.msra.mxu0 0
      %2209 = vmatprep.subr.bf16.mxu0 0
      %2210 = vmatpush1.bf16.msra.mxu0 0
      %2211 = vmatprep.subr.bf16.mxu0 0
      %2212 = vmatpush1.bf16.msra.mxu0 0
      %2213 = vmatprep.subr.bf16.mxu0 0
      %2214 = vmatpush1.bf16.msra.mxu0 0
      %2215 = vmatprep.subr.bf16.mxu0 0
      %2216 = vmatpush1.bf16.msra.mxu0 0
      %2217 = vmatprep.subr.bf16.mxu0 0
      %2218 = vmatpush1.bf16.msra.mxu0 0
      %2219 = vmatprep.subr.bf16.mxu0 0
      %2220 = vmatpush1.bf16.msra.mxu0 0
      %2221 = vmatprep.subr.bf16.mxu0 0
      %2222 = vmatpush1.bf16.msra.mxu0 0
      %2223 = vmatprep.subr.bf16.mxu0 0
      %2224 = vmatpush1.bf16.msra.mxu0 0
      %2225 = vmatprep.subr.bf16.mxu0 0
      %2226 = vmatpush1.bf16.msra.mxu0 0
      %2227 = vmatprep.mubr.bf16.mxu0 0
      %2228 = vmatmul.mubr.bf16.gmra.mrb[0].mxu0 %v1228
      %v2229 = vpop.f32.mrb[0].mxu0
      %v2230 = vadd.f32 %v2130, %v2229
      %v2231 = vpop.f32.mrb[0].mxu0
      %v2232 = vpop.f32.mrb[0].mxu0
      %v2233 = vadd.f32 %v2133, %v2232
      %v2234 = vpop.f32.mrb[0].mxu0
      %2235 = vmatprep.mubr.bf16.mxu0 0
      %2236 = vmatmul.mubr.bf16.gmra.mrb[0].mxu0 %v1231
      %v2237 = vpop.f32.mrb[0].mxu0
      %v2238 = vadd.f32 %v2138, %v2237
      %v2239 = vpop.f32.mrb[0].mxu0
      %v2240 = vpop.f32.mrb[0].mxu0
      %v2241 = vadd.f32 %v2141, %v2240
      %v2242 = vpop.f32.mrb[0].mxu0
      %2243 = vmatprep.mubr.bf16.mxu0 0
      %2244 = vmatmul.mubr.bf16.gmra.mrb[0].mxu0 %v1234
      %v2245 = vpop.f32.mrb[0].mxu0
      %v2246 = vadd.f32 %v2146, %v2245
      %v2247 = vpop.f32.mrb[0].mxu0
      %v2248 = vpop.f32.mrb[0].mxu0
      %v2249 = vadd.f32 %v2149, %v2248
      %v2250 = vpop.f32.mrb[0].mxu0
      %2251 = vmatprep.mubr.bf16.mxu0 0
      %2252 = vmatmul.mubr.bf16.gmra.mrb[0].mxu0 %v1237
      %v2253 = vpop.f32.mrb[0].mxu0
      %v2254 = vadd.f32 %v2154, %v2253
      %v2255 = vpop.f32.mrb[0].mxu0
      %v2256 = vpop.f32.mrb[0].mxu0
      %v2257 = vadd.f32 %v2157, %v2256
      %v2258 = vpop.f32.mrb[0].mxu0
      %2259 = vmatprep.mubr.bf16.mxu0 0
      %2260 = vmatmul.mubr.bf16.gmra.mrb[0].mxu0 %v1240
      %v2261 = vpop.f32.mrb[0].mxu0
      %v2262 = vadd.f32 %v2162, %v2261
      %v2263 = vpop.f32.mrb[0].mxu0
      %v2264 = vpop.f32.mrb[0].mxu0
      %v2265 = vadd.f32 %v2165, %v2264
      %v2266 = vpop.f32.mrb[0].mxu0
      %2267 = vmatprep.mubr.bf16.mxu0 0
      %2268 = vmatmul.mubr.bf16.gmra.mrb[0].mxu0 %v1243
      %v2269 = vpop.f32.mrb[0].mxu0
      %v2270 = vadd.f32 %v2170, %v2269
      %v2271 = vpop.f32.mrb[0].mxu0
      %v2272 = vpop.f32.mrb[0].mxu0
      %v2273 = vadd.f32 %v2173, %v2272
      %v2274 = vpop.f32.mrb[0].mxu0
      %2275 = vmatprep.mubr.bf16.mxu0 0
      %2276 = vmatmul.mubr.bf16.gmra.mrb[0].mxu0 %v1246
      %v2277 = vpop.f32.mrb[0].mxu0
      %v2278 = vadd.f32 %v2178, %v2277
      %v2279 = vpop.f32.mrb[0].mxu0
      %v2280 = vpop.f32.mrb[0].mxu0
      %v2281 = vadd.f32 %v2181, %v2280
      %v2282 = vpop.f32.mrb[0].mxu0
      %2283 = vmatprep.mubr.bf16.mxu0 0
      %2284 = vmatmul.mubr.bf16.gmra.mrb[0].mxu0 %v1249
      %v2285 = vpop.f32.mrb[0].mxu0
      %v2286 = vadd.f32 %v2186, %v2285
      %v2287 = vpop.f32.mrb[0].mxu0
      %v2288 = vpop.f32.mrb[0].mxu0
      %v2289 = vadd.f32 %v2189, %v2288
      %v2290 = vpop.f32.mrb[0].mxu0
      %2291 = vdwg.mxu0
      %s2292 = scalar_lea.vmem %s1, 12
      %v2293 = vld [vmem:[%s2292] sm:$0x3]
      %v2295 = vsel %vm1251, %v2293, 0
      %2297 = vmatprep.subr.bf16.mxu0 0
      %2298 = vmatpush1.bf16.msra.mxu0 %v2295
      %2299 = vmatprep.subr.bf16.mxu0 0
      %2300 = vmatpush1.bf16.msra.mxu0 0
      %2301 = vmatprep.subr.bf16.mxu0 0
      %2302 = vmatpush1.bf16.msra.mxu0 0
      %2303 = vmatprep.subr.bf16.mxu0 0
      %2304 = vmatpush1.bf16.msra.mxu0 0
      %2305 = vmatprep.subr.bf16.mxu0 0
      %2306 = vmatpush1.bf16.msra.mxu0 0
      %2307 = vmatprep.subr.bf16.mxu0 0
      %2308 = vmatpush1.bf16.msra.mxu0 0
      %2309 = vmatprep.subr.bf16.mxu0 0
      %2310 = vmatpush1.bf16.msra.mxu0 0
      %2311 = vmatprep.subr.bf16.mxu0 0
      %2312 = vmatpush1.bf16.msra.mxu0 0
      %2313 = vmatprep.subr.bf16.mxu0 0
      %2314 = vmatpush1.bf16.msra.mxu0 0
      %2315 = vmatprep.subr.bf16.mxu0 0
      %2316 = vmatpush1.bf16.msra.mxu0 0
      %2317 = vmatprep.subr.bf16.mxu0 0
      %2318 = vmatpush1.bf16.msra.mxu0 0
      %2319 = vmatprep.subr.bf16.mxu0 0
      %2320 = vmatpush1.bf16.msra.mxu0 0
      %2321 = vmatprep.subr.bf16.mxu0 0
      %2322 = vmatpush1.bf16.msra.mxu0 0
      %2323 = vmatprep.subr.bf16.mxu0 0
      %2324 = vmatpush1.bf16.msra.mxu0 0
      %2325 = vmatprep.subr.bf16.mxu0 0
      %2326 = vmatpush1.bf16.msra.mxu0 0
      %2327 = vmatprep.subr.bf16.mxu0 0
      %2328 = vmatpush1.bf16.msra.mxu0 0
      %2329 = vmatprep.mubr.bf16.mxu0 0
      %2330 = vmatmul.mubr.bf16.gmra.mrb[0].mxu0 %v1709
      %v2331 = vpop.f32.mrb[0].mxu0
      %v2332 = vadd.f32 0.0, %v2331
      %v2333 = vpop.f32.mrb[0].mxu0
      %v2334 = vpop.f32.mrb[0].mxu0
      %v2335 = vadd.f32 0.0, %v2334
      %v2336 = vpop.f32.mrb[0].mxu0
      %2337 = vmatprep.mubr.bf16.mxu0 0
      %2338 = vmatmul.mubr.bf16.gmra.mrb[0].mxu0 %v1712
      %v2339 = vpop.f32.mrb[0].mxu0
      %v2340 = vadd.f32 0.0, %v2339
      %v2341 = vpop.f32.mrb[0].mxu0
      %v2342 = vpop.f32.mrb[0].mxu0
      %v2343 = vadd.f32 0.0, %v2342
      %v2344 = vpop.f32.mrb[0].mxu0
      %2345 = vmatprep.mubr.bf16.mxu0 0
      %2346 = vmatmul.mubr.bf16.gmra.mrb[0].mxu0 %v1715
      %v2347 = vpop.f32.mrb[0].mxu0
      %v2348 = vadd.f32 0.0, %v2347
      %v2349 = vpop.f32.mrb[0].mxu0
      %v2350 = vpop.f32.mrb[0].mxu0
      %v2351 = vadd.f32 0.0, %v2350
      %v2352 = vpop.f32.mrb[0].mxu0
      %2353 = vmatprep.mubr.bf16.mxu0 0
      %2354 = vmatmul.mubr.bf16.gmra.mrb[0].mxu0 %v1718
      %v2355 = vpop.f32.mrb[0].mxu0
      %v2356 = vadd.f32 0.0, %v2355
      %v2357 = vpop.f32.mrb[0].mxu0
      %v2358 = vpop.f32.mrb[0].mxu0
      %v2359 = vadd.f32 0.0, %v2358
      %v2360 = vpop.f32.mrb[0].mxu0
      %2361 = vmatprep.mubr.bf16.mxu0 0
      %2362 = vmatmul.mubr.bf16.gmra.mrb[0].mxu0 %v1721
      %v2363 = vpop.f32.mrb[0].mxu0
      %v2364 = vadd.f32 0.0, %v2363
      %v2365 = vpop.f32.mrb[0].mxu0
      %v2366 = vpop.f32.mrb[0].mxu0
      %v2367 = vadd.f32 0.0, %v2366
      %v2368 = vpop.f32.mrb[0].mxu0
      %2369 = vmatprep.mubr.bf16.mxu0 0
      %2370 = vmatmul.mubr.bf16.gmra.mrb[0].mxu0 %v1724
      %v2371 = vpop.f32.mrb[0].mxu0
      %v2372 = vadd.f32 0.0, %v2371
      %v2373 = vpop.f32.mrb[0].mxu0
      %v2374 = vpop.f32.mrb[0].mxu0
      %v2375 = vadd.f32 0.0, %v2374
      %v2376 = vpop.f32.mrb[0].mxu0
      %2377 = vmatprep.mubr.bf16.mxu0 0
      %2378 = vmatmul.mubr.bf16.gmra.mrb[0].mxu0 %v1727
      %v2379 = vpop.f32.mrb[0].mxu0
      %v2380 = vadd.f32 0.0, %v2379
      %v2381 = vpop.f32.mrb[0].mxu0
      %v2382 = vpop.f32.mrb[0].mxu0
      %v2383 = vadd.f32 0.0, %v2382
      %v2384 = vpop.f32.mrb[0].mxu0
      %2385 = vmatprep.mubr.bf16.mxu0 0
      %2386 = vmatmul.mubr.bf16.gmra.mrb[0].mxu0 %v1730
      %v2387 = vpop.f32.mrb[0].mxu0
      %v2388 = vadd.f32 0.0, %v2387
      %v2389 = vpop.f32.mrb[0].mxu0
      %v2390 = vpop.f32.mrb[0].mxu0
      %v2391 = vadd.f32 0.0, %v2390
      %v2392 = vpop.f32.mrb[0].mxu0
      %2393 = vdwg.mxu0
      %v2394 = vadd.f32 %v2230, %v2332
      %v2395 = vadd.f32 %v2233, %v2335
      %v2396 = vadd.f32 %v2238, %v2340
      %v2397 = vadd.f32 %v2241, %v2343
      %v2398 = vadd.f32 %v2246, %v2348
      %v2399 = vadd.f32 %v2249, %v2351
      %v2400 = vadd.f32 %v2254, %v2356
      %v2401 = vadd.f32 %v2257, %v2359
      %v2402 = vadd.f32 %v2262, %v2364
      %v2403 = vadd.f32 %v2265, %v2367
      %v2404 = vadd.f32 %v2270, %v2372
      %v2405 = vadd.f32 %v2273, %v2375
      %v2406 = vadd.f32 %v2278, %v2380
      %v2407 = vadd.f32 %v2281, %v2383
      %v2408 = vadd.f32 %v2286, %v2388
      %v2409 = vadd.f32 %v2289, %v2391
      %s2410 = scalar_lea.vmem %s1, 14
      %v2411 = vld [vmem:[%s2410] sm:$0x3]
      %v2412 = vunpack.c.l.b16 %v841
      %v2413 = vunpack.c.l.b16 %v844
      %v2414 = vunpack.c.l.b16 %v848
      %v2415 = vunpack.c.l.b16 %v851
      %v2416 = vunpack.c.l.b16 %v855
      %v2417 = vunpack.c.l.b16 %v858
      %v2418 = vunpack.c.l.b16 %v862
      %v2419 = vunpack.c.l.b16 %v865
      %v2420 = vunpack.c.l.b16 %v869
      %v2421 = vunpack.c.l.b16 %v872
      %v2422 = vunpack.c.l.b16 %v876
      %v2423 = vunpack.c.l.b16 %v879
      %v2424 = vunpack.c.l.b16 %v883
      %v2425 = vunpack.c.l.b16 %v886
      %v2426 = vunpack.c.l.b16 %v890
      %v2427 = vunpack.c.l.b16 %v893
      %v2428 = vpack.c.b16 %v2413, %v2412
      %v2429 = vpack.c.b16 %v2415, %v2414
      %v2430 = vpack.c.b16 %v2417, %v2416
      %v2431 = vpack.c.b16 %v2419, %v2418
      %v2432 = vpack.c.b16 %v2421, %v2420
      %v2433 = vpack.c.b16 %v2423, %v2422
      %v2434 = vpack.c.b16 %v2425, %v2424
      %v2435 = vpack.c.b16 %v2427, %v2426
      %v2437 = vsel %vm1226, %v2428, 0
      %v2440 = vsel %vm1226, %v2429, 0
      %v2443 = vsel %vm1226, %v2430, 0
      %v2446 = vsel %vm1226, %v2431, 0
      %v2449 = vsel %vm1226, %v2432, 0
      %v2452 = vsel %vm1226, %v2433, 0
      %v2455 = vsel %vm1226, %v2434, 0
      %v2458 = vsel %vm1226, %v2435, 0
      %v2461 = vsel %vm1251, %v2411, 0
      %2463 = vmatprep.subr.bf16.mxu0 0
      %2464 = vmatpush1.bf16.msra.mxu0 %v2461
      %2465 = vmatprep.subr.bf16.mxu0 0
      %2466 = vmatpush1.bf16.msra.mxu0 0
      %2467 = vmatprep.subr.bf16.mxu0 0
      %2468 = vmatpush1.bf16.msra.mxu0 0
      %2469 = vmatprep.subr.bf16.mxu0 0
      %2470 = vmatpush1.bf16.msra.mxu0 0
      %2471 = vmatprep.subr.bf16.mxu0 0
      %2472 = vmatpush1.bf16.msra.mxu0 0
      %2473 = vmatprep.subr.bf16.mxu0 0
      %2474 = vmatpush1.bf16.msra.mxu0 0
      %2475 = vmatprep.subr.bf16.mxu0 0
      %2476 = vmatpush1.bf16.msra.mxu0 0
      %2477 = vmatprep.subr.bf16.mxu0 0
      %2478 = vmatpush1.bf16.msra.mxu0 0
      %2479 = vmatprep.subr.bf16.mxu0 0
      %2480 = vmatpush1.bf16.msra.mxu0 0
      %2481 = vmatprep.subr.bf16.mxu0 0
      %2482 = vmatpush1.bf16.msra.mxu0 0
      %2483 = vmatprep.subr.bf16.mxu0 0
      %2484 = vmatpush1.bf16.msra.mxu0 0
      %2485 = vmatprep.subr.bf16.mxu0 0
      %2486 = vmatpush1.bf16.msra.mxu0 0
      %2487 = vmatprep.subr.bf16.mxu0 0
      %2488 = vmatpush1.bf16.msra.mxu0 0
      %2489 = vmatprep.subr.bf16.mxu0 0
      %2490 = vmatpush1.bf16.msra.mxu0 0
      %2491 = vmatprep.subr.bf16.mxu0 0
      %2492 = vmatpush1.bf16.msra.mxu0 0
      %2493 = vmatprep.subr.bf16.mxu0 0
      %2494 = vmatpush1.bf16.msra.mxu0 0
      %2495 = vmatprep.mubr.bf16.mxu0 0
      %2496 = vmatmul.mubr.bf16.gmra.mrb[0].mxu0 %v2437
      %v2497 = vpop.f32.mrb[0].mxu0
      %v2498 = vadd.f32 0.0, %v2497
      %v2499 = vpop.f32.mrb[0].mxu0
      %v2500 = vpop.f32.mrb[0].mxu0
      %v2501 = vadd.f32 0.0, %v2500
      %v2502 = vpop.f32.mrb[0].mxu0
      %2503 = vmatprep.mubr.bf16.mxu0 0
      %2504 = vmatmul.mubr.bf16.gmra.mrb[0].mxu0 %v2440
      %v2505 = vpop.f32.mrb[0].mxu0
      %v2506 = vadd.f32 0.0, %v2505
      %v2507 = vpop.f32.mrb[0].mxu0
      %v2508 = vpop.f32.mrb[0].mxu0
      %v2509 = vadd.f32 0.0, %v2508
      %v2510 = vpop.f32.mrb[0].mxu0
      %2511 = vmatprep.mubr.bf16.mxu0 0
      %2512 = vmatmul.mubr.bf16.gmra.mrb[0].mxu0 %v2443
      %v2513 = vpop.f32.mrb[0].mxu0
      %v2514 = vadd.f32 0.0, %v2513
      %v2515 = vpop.f32.mrb[0].mxu0
      %v2516 = vpop.f32.mrb[0].mxu0
      %v2517 = vadd.f32 0.0, %v2516
      %v2518 = vpop.f32.mrb[0].mxu0
      %2519 = vmatprep.mubr.bf16.mxu0 0
      %2520 = vmatmul.mubr.bf16.gmra.mrb[0].mxu0 %v2446
      %v2521 = vpop.f32.mrb[0].mxu0
      %v2522 = vadd.f32 0.0, %v2521
      %v2523 = vpop.f32.mrb[0].mxu0
      %v2524 = vpop.f32.mrb[0].mxu0
      %v2525 = vadd.f32 0.0, %v2524
      %v2526 = vpop.f32.mrb[0].mxu0
      %2527 = vmatprep.mubr.bf16.mxu0 0
      %2528 = vmatmul.mubr.bf16.gmra.mrb[0].mxu0 %v2449
      %v2529 = vpop.f32.mrb[0].mxu0
      %v2530 = vadd.f32 0.0, %v2529
      %v2531 = vpop.f32.mrb[0].mxu0
      %v2532 = vpop.f32.mrb[0].mxu0
      %v2533 = vadd.f32 0.0, %v2532
      %v2534 = vpop.f32.mrb[0].mxu0
      %2535 = vmatprep.mubr.bf16.mxu0 0
      %2536 = vmatmul.mubr.bf16.gmra.mrb[0].mxu0 %v2452
      %v2537 = vpop.f32.mrb[0].mxu0
      %v2538 = vadd.f32 0.0, %v2537
      %v2539 = vpop.f32.mrb[0].mxu0
      %v2540 = vpop.f32.mrb[0].mxu0
      %v2541 = vadd.f32 0.0, %v2540
      %v2542 = vpop.f32.mrb[0].mxu0
      %2543 = vmatprep.mubr.bf16.mxu0 0
      %2544 = vmatmul.mubr.bf16.gmra.mrb[0].mxu0 %v2455
      %v2545 = vpop.f32.mrb[0].mxu0
      %v2546 = vadd.f32 0.0, %v2545
      %v2547 = vpop.f32.mrb[0].mxu0
      %v2548 = vpop.f32.mrb[0].mxu0
      %v2549 = vadd.f32 0.0, %v2548
      %v2550 = vpop.f32.mrb[0].mxu0
      %2551 = vmatprep.mubr.bf16.mxu0 0
      %2552 = vmatmul.mubr.bf16.gmra.mrb[0].mxu0 %v2458
      %v2553 = vpop.f32.mrb[0].mxu0
      %v2554 = vadd.f32 0.0, %v2553
      %v2555 = vpop.f32.mrb[0].mxu0
      %v2556 = vpop.f32.mrb[0].mxu0
      %v2557 = vadd.f32 0.0, %v2556
      %v2558 = vpop.f32.mrb[0].mxu0
      %2559 = vdwg.mxu0
      %v2560 = vadd.f32 %v2394, %v2498
      %v2561 = vadd.f32 %v2395, %v2501
      %v2562 = vadd.f32 %v2396, %v2506
      %v2563 = vadd.f32 %v2397, %v2509
      %v2564 = vadd.f32 %v2398, %v2514
      %v2565 = vadd.f32 %v2399, %v2517
      %v2566 = vadd.f32 %v2400, %v2522
      %v2567 = vadd.f32 %v2401, %v2525
      %v2568 = vadd.f32 %v2402, %v2530
      %v2569 = vadd.f32 %v2403, %v2533
      %v2570 = vadd.f32 %v2404, %v2538
      %v2571 = vadd.f32 %v2405, %v2541
      %v2572 = vadd.f32 %v2406, %v2546
      %v2573 = vadd.f32 %v2407, %v2549
      %v2574 = vadd.f32 %v2408, %v2554
      %v2575 = vadd.f32 %v2409, %v2557
      %v2576 = vsel %vm1848, %v2560, 0.0
      %v2577 = vsel %vm1848, %v2561, 0.0
      %v2578 = vadd.f32 %v2576, %v2577
      %v2579 = vsel %vm1848, %v2562, 0.0
      %v2580 = vadd.f32 %v2578, %v2579
      %v2581 = vsel %vm1848, %v2563, 0.0
      %v2582 = vadd.f32 %v2580, %v2581
      %v2583 = vsel %vm1848, %v2564, 0.0
      %v2584 = vadd.f32 %v2582, %v2583
      %v2585 = vsel %vm1848, %v2565, 0.0
      %v2586 = vadd.f32 %v2584, %v2585
      %v2587 = vsel %vm1848, %v2566, 0.0
      %v2588 = vadd.f32 %v2586, %v2587
      %v2589 = vsel %vm1848, %v2567, 0.0
      %v2590 = vadd.f32 %v2588, %v2589
      %v2591 = vsel %vm1848, %v2568, 0.0
      %v2592 = vadd.f32 %v2590, %v2591
      %v2593 = vsel %vm1848, %v2569, 0.0
      %v2594 = vadd.f32 %v2592, %v2593
      %v2595 = vsel %vm1848, %v2570, 0.0
      %v2596 = vadd.f32 %v2594, %v2595
      %v2597 = vsel %vm1848, %v2571, 0.0
      %v2598 = vadd.f32 %v2596, %v2597
      %v2599 = vsel %vm1848, %v2572, 0.0
      %v2600 = vadd.f32 %v2598, %v2599
      %v2601 = vsel %vm1848, %v2573, 0.0
      %v2602 = vadd.f32 %v2600, %v2601
      %v2603 = vsel %vm1848, %v2574, 0.0
      %v2604 = vadd.f32 %v2602, %v2603
      %v2605 = vsel %vm1848, %v2575, 0.0
      %v2606 = vadd.f32 %v2604, %v2605
      %v2607 = vrot.slane %v2606, 4
      %v2608 = vadd.f32 %v2606, %v2607
      %v2609 = vrot.slane %v2608, 2
      %v2610 = vadd.f32 %v2608, %v2609
      %v2611 = vrot.slane %v2610, 1
      %v2612 = vadd.f32 %v2610, %v2611
      %v2613 = vmul.f32 %v2612, 0.0078125
      %v2614 = vsub.f32 %v2560, %v2613
      %v2615 = vsub.f32 %v2561, %v2613
      %v2616 = vsub.f32 %v2562, %v2613
      %v2617 = vsub.f32 %v2563, %v2613
      %v2618 = vsub.f32 %v2564, %v2613
      %v2619 = vsub.f32 %v2565, %v2613
      %v2620 = vsub.f32 %v2566, %v2613
      %v2621 = vsub.f32 %v2567, %v2613
      %v2622 = vsub.f32 %v2568, %v2613
      %v2623 = vsub.f32 %v2569, %v2613
      %v2624 = vsub.f32 %v2570, %v2613
      %v2625 = vsub.f32 %v2571, %v2613
      %v2626 = vsub.f32 %v2572, %v2613
      %v2627 = vsub.f32 %v2573, %v2613
      %v2628 = vsub.f32 %v2574, %v2613
      %v2629 = vsub.f32 %v2575, %v2613
      %v2630 = vmul.f32 %v2614, %v2614
      %v2631 = vmul.f32 %v2615, %v2615
      %v2632 = vmul.f32 %v2616, %v2616
      %v2633 = vmul.f32 %v2617, %v2617
      %v2634 = vmul.f32 %v2618, %v2618
      %v2635 = vmul.f32 %v2619, %v2619
      %v2636 = vmul.f32 %v2620, %v2620
      %v2637 = vmul.f32 %v2621, %v2621
      %v2638 = vmul.f32 %v2622, %v2622
      %v2639 = vmul.f32 %v2623, %v2623
      %v2640 = vmul.f32 %v2624, %v2624
      %v2641 = vmul.f32 %v2625, %v2625
      %v2642 = vmul.f32 %v2626, %v2626
      %v2643 = vmul.f32 %v2627, %v2627
      %v2644 = vmul.f32 %v2628, %v2628
      %v2645 = vmul.f32 %v2629, %v2629
      %v2646 = vsel %vm1848, %v2630, 0.0
      %v2647 = vsel %vm1848, %v2631, 0.0
      %v2648 = vadd.f32 %v2646, %v2647
      %v2649 = vsel %vm1848, %v2632, 0.0
      %v2650 = vadd.f32 %v2648, %v2649
      %v2651 = vsel %vm1848, %v2633, 0.0
      %v2652 = vadd.f32 %v2650, %v2651
      %v2653 = vsel %vm1848, %v2634, 0.0
      %v2654 = vadd.f32 %v2652, %v2653
      %v2655 = vsel %vm1848, %v2635, 0.0
      %v2656 = vadd.f32 %v2654, %v2655
      %v2657 = vsel %vm1848, %v2636, 0.0
      %v2658 = vadd.f32 %v2656, %v2657
      %v2659 = vsel %vm1848, %v2637, 0.0
      %v2660 = vadd.f32 %v2658, %v2659
      %v2661 = vsel %vm1848, %v2638, 0.0
      %v2662 = vadd.f32 %v2660, %v2661
      %v2663 = vsel %vm1848, %v2639, 0.0
      %v2664 = vadd.f32 %v2662, %v2663
      %v2665 = vsel %vm1848, %v2640, 0.0
      %v2666 = vadd.f32 %v2664, %v2665
      %v2667 = vsel %vm1848, %v2641, 0.0
      %v2668 = vadd.f32 %v2666, %v2667
      %v2669 = vsel %vm1848, %v2642, 0.0
      %v2670 = vadd.f32 %v2668, %v2669
      %v2671 = vsel %vm1848, %v2643, 0.0
      %v2672 = vadd.f32 %v2670, %v2671
      %v2673 = vsel %vm1848, %v2644, 0.0
      %v2674 = vadd.f32 %v2672, %v2673
      %v2675 = vsel %vm1848, %v2645, 0.0
      %v2676 = vadd.f32 %v2674, %v2675
      %v2677 = vrot.slane %v2676, 4
      %v2678 = vadd.f32 %v2676, %v2677
      %v2679 = vrot.slane %v2678, 2
      %v2680 = vadd.f32 %v2678, %v2679
      %v2681 = vrot.slane %v2680, 1
      %v2682 = vadd.f32 %v2680, %v2681
      %2683 = vst.msk [vmem:[%s269 + $0x1] sm:$0x1] %vm1956, %v2612
      %2684 = vst.msk [vmem:[%s277 + $0x1] sm:$0x1] %vm1956, %v2682
      %v2685 = vpack.c.bf16 %v2561, %v2560
      %v2686 = vpack.c.bf16 %v2563, %v2562
      %v2687 = vpack.c.bf16 %v2565, %v2564
      %v2688 = vpack.c.bf16 %v2567, %v2566
      %v2689 = vpack.c.bf16 %v2569, %v2568
      %v2690 = vpack.c.bf16 %v2571, %v2570
      %v2691 = vpack.c.bf16 %v2573, %v2572
      %v2692 = vpack.c.bf16 %v2575, %v2574
      %v2701 = vunpack.c.l.b16 %v2685
      %v2702 = vunpack.c.h.b16 %v2685
      %v2703 = vunpack.c.l.b16 %v2686
      %v2704 = vunpack.c.h.b16 %v2686
      %v2705 = vunpack.c.l.b16 %v2687
      %v2706 = vunpack.c.h.b16 %v2687
      %v2707 = vunpack.c.l.b16 %v2688
      %v2708 = vunpack.c.h.b16 %v2688
      %v2709 = vunpack.c.l.b16 %v2689
      %v2710 = vunpack.c.h.b16 %v2689
      %v2711 = vunpack.c.l.b16 %v2690
      %v2712 = vunpack.c.h.b16 %v2690
      %v2713 = vunpack.c.l.b16 %v2691
      %v2714 = vunpack.c.h.b16 %v2691
      %v2715 = vunpack.c.l.b16 %v2692
      %v2716 = vunpack.c.h.b16 %v2692
      %v2717 = vpack.c.b16 %v2701, %v2701
      %v2718 = vpack.c.b16 %v2702, %v2702
      %v2719 = vpack.c.b16 %v2703, %v2703
      %v2720 = vpack.c.b16 %v2704, %v2704
      %v2721 = vpack.c.b16 %v2705, %v2705
      %v2722 = vpack.c.b16 %v2706, %v2706
      %v2723 = vpack.c.b16 %v2707, %v2707
      %v2724 = vpack.c.b16 %v2708, %v2708
      %v2725 = vpack.c.b16 %v2709, %v2709
      %v2726 = vpack.c.b16 %v2710, %v2710
      %v2727 = vpack.c.b16 %v2711, %v2711
      %v2728 = vpack.c.b16 %v2712, %v2712
      %v2729 = vpack.c.b16 %v2713, %v2713
      %v2730 = vpack.c.b16 %v2714, %v2714
      %v2731 = vpack.c.b16 %v2715, %v2715
      %v2732 = vpack.c.b16 %v2716, %v2716
      %2733 = vrot.lane.b32.xlu0 %v2717, 8
      %v2734 = vpop.permute.xlu0 %2733
      %2735 = vrot.lane.b32.xlu0 %v2718, 8
      %v2736 = vpop.permute.xlu0 %2735
      %2737 = vrot.lane.b32.xlu0 %v2719, 8
      %v2738 = vpop.permute.xlu0 %2737
      %2739 = vrot.lane.b32.xlu0 %v2720, 8
      %v2740 = vpop.permute.xlu0 %2739
      %2741 = vrot.lane.b32.xlu0 %v2721, 8
      %v2742 = vpop.permute.xlu0 %2741
      %2743 = vrot.lane.b32.xlu0 %v2722, 8
      %v2744 = vpop.permute.xlu0 %2743
      %2745 = vrot.lane.b32.xlu0 %v2723, 8
      %v2746 = vpop.permute.xlu0 %2745
      %2747 = vrot.lane.b32.xlu0 %v2724, 8
      %v2748 = vpop.permute.xlu0 %2747
      %2749 = vrot.lane.b32.xlu0 %v2725, 8
      %v2750 = vpop.permute.xlu0 %2749
      %2751 = vrot.lane.b32.xlu0 %v2726, 8
      %v2752 = vpop.permute.xlu0 %2751
      %2753 = vrot.lane.b32.xlu0 %v2727, 8
      %v2754 = vpop.permute.xlu0 %2753
      %2755 = vrot.lane.b32.xlu0 %v2728, 8
      %v2756 = vpop.permute.xlu0 %2755
      %2757 = vrot.lane.b32.xlu0 %v2729, 8
      %v2758 = vpop.permute.xlu0 %2757
      %2759 = vrot.lane.b32.xlu0 %v2730, 8
      %v2760 = vpop.permute.xlu0 %2759
      %2761 = vrot.lane.b32.xlu0 %v2731, 8
      %v2762 = vpop.permute.xlu0 %2761
      %2763 = vrot.lane.b32.xlu0 %v2732, 8
      %v2764 = vpop.permute.xlu0 %2763
      %vm2781 = vcmask 126016
      %2782 = vst.msk [vmem:[%s260] sm:$0xf] %vm2781, %v2734
      %2783 = vst.msk [vmem:[%s260 + $0x4] sm:$0xf] %vm2781, %v2736
      %2784 = vst.msk [vmem:[%s260 + $0x10] sm:$0xf] %vm2781, %v2738
      %2785 = vst.msk [vmem:[%s260 + $0x14] sm:$0xf] %vm2781, %v2740
      %2786 = vst.msk [vmem:[%s260 + $0x20] sm:$0xf] %vm2781, %v2742
      %2787 = vst.msk [vmem:[%s260 + $0x24] sm:$0xf] %vm2781, %v2744
      %2788 = vst.msk [vmem:[%s260 + $0x30] sm:$0xf] %vm2781, %v2746
      %2789 = vst.msk [vmem:[%s260 + $0x34] sm:$0xf] %vm2781, %v2748
      %2790 = vst.msk [vmem:[%s260 + $0x40] sm:$0xf] %vm2781, %v2750
      %2791 = vst.msk [vmem:[%s260 + $0x44] sm:$0xf] %vm2781, %v2752
      %2792 = vst.msk [vmem:[%s260 + $0x50] sm:$0xf] %vm2781, %v2754
      %2793 = vst.msk [vmem:[%s260 + $0x54] sm:$0xf] %vm2781, %v2756
      %2794 = vst.msk [vmem:[%s260 + $0x60] sm:$0xf] %vm2781, %v2758
      %2795 = vst.msk [vmem:[%s260 + $0x64] sm:$0xf] %vm2781, %v2760
      %2796 = vst.msk [vmem:[%s260 + $0x70] sm:$0xf] %vm2781, %v2762
      %2797 = vst.msk [vmem:[%s260 + $0x74] sm:$0xf] %vm2781, %v2764
      %s2798 = scalar_lea.vmem %s1, 16
      %v2799 = vld [vmem:[%s2798] sm:$0x3]
      %s2800 = scalar_lea.vmem %s1, 18
      %v2801 = vld [vmem:[%s2800] sm:$0x3]
      %v2803 = vsel %vm1251, %v2801, 0
      %2805 = vmatprep.subr.bf16.mxu0 0
      %2806 = vmatpush1.bf16.msra.mxu0 %v2803
      %2807 = vmatprep.subr.bf16.mxu0 0
      %2808 = vmatpush1.bf16.msra.mxu0 0
      %2809 = vmatprep.subr.bf16.mxu0 0
      %2810 = vmatpush1.bf16.msra.mxu0 0
      %2811 = vmatprep.subr.bf16.mxu0 0
      %2812 = vmatpush1.bf16.msra.mxu0 0
      %2813 = vmatprep.subr.bf16.mxu0 0
      %2814 = vmatpush1.bf16.msra.mxu0 0
      %2815 = vmatprep.subr.bf16.mxu0 0
      %2816 = vmatpush1.bf16.msra.mxu0 0
      %2817 = vmatprep.subr.bf16.mxu0 0
      %2818 = vmatpush1.bf16.msra.mxu0 0
      %2819 = vmatprep.subr.bf16.mxu0 0
      %2820 = vmatpush1.bf16.msra.mxu0 0
      %2821 = vmatprep.subr.bf16.mxu0 0
      %2822 = vmatpush1.bf16.msra.mxu0 0
      %2823 = vmatprep.subr.bf16.mxu0 0
      %2824 = vmatpush1.bf16.msra.mxu0 0
      %2825 = vmatprep.subr.bf16.mxu0 0
      %2826 = vmatpush1.bf16.msra.mxu0 0
      %2827 = vmatprep.subr.bf16.mxu0 0
      %2828 = vmatpush1.bf16.msra.mxu0 0
      %2829 = vmatprep.subr.bf16.mxu0 0
      %2830 = vmatpush1.bf16.msra.mxu0 0
      %2831 = vmatprep.subr.bf16.mxu0 0
      %2832 = vmatpush1.bf16.msra.mxu0 0
      %2833 = vmatprep.subr.bf16.mxu0 0
      %2834 = vmatpush1.bf16.msra.mxu0 0
      %2835 = vmatprep.subr.bf16.mxu0 0
      %2836 = vmatpush1.bf16.msra.mxu0 0
      %2837 = vmatprep.mubr.bf16.mxu0 0
      %2838 = vmatmul.mubr.bf16.gmra.mrb[0].mxu0 %v1709
      %v2839 = vpop.f32.mrb[0].mxu0
      %v2840 = vadd.f32 0.0, %v2839
      %v2841 = vpop.f32.mrb[0].mxu0
      %v2842 = vpop.f32.mrb[0].mxu0
      %v2843 = vadd.f32 0.0, %v2842
      %v2844 = vpop.f32.mrb[0].mxu0
      %2845 = vmatprep.mubr.bf16.mxu0 0
      %2846 = vmatmul.mubr.bf16.gmra.mrb[0].mxu0 %v1712
      %v2847 = vpop.f32.mrb[0].mxu0
      %v2848 = vadd.f32 0.0, %v2847
      %v2849 = vpop.f32.mrb[0].mxu0
      %v2850 = vpop.f32.mrb[0].mxu0
      %v2851 = vadd.f32 0.0, %v2850
      %v2852 = vpop.f32.mrb[0].mxu0
      %2853 = vmatprep.mubr.bf16.mxu0 0
      %2854 = vmatmul.mubr.bf16.gmra.mrb[0].mxu0 %v1715
      %v2855 = vpop.f32.mrb[0].mxu0
      %v2856 = vadd.f32 0.0, %v2855
      %v2857 = vpop.f32.mrb[0].mxu0
      %v2858 = vpop.f32.mrb[0].mxu0
      %v2859 = vadd.f32 0.0, %v2858
      %v2860 = vpop.f32.mrb[0].mxu0
      %2861 = vmatprep.mubr.bf16.mxu0 0
      %2862 = vmatmul.mubr.bf16.gmra.mrb[0].mxu0 %v1718
      %v2863 = vpop.f32.mrb[0].mxu0
      %v2864 = vadd.f32 0.0, %v2863
      %v2865 = vpop.f32.mrb[0].mxu0
      %v2866 = vpop.f32.mrb[0].mxu0
      %v2867 = vadd.f32 0.0, %v2866
      %v2868 = vpop.f32.mrb[0].mxu0
      %2869 = vmatprep.mubr.bf16.mxu0 0
      %2870 = vmatmul.mubr.bf16.gmra.mrb[0].mxu0 %v1721
      %v2871 = vpop.f32.mrb[0].mxu0
      %v2872 = vadd.f32 0.0, %v2871
      %v2873 = vpop.f32.mrb[0].mxu0
      %v2874 = vpop.f32.mrb[0].mxu0
      %v2875 = vadd.f32 0.0, %v2874
      %v2876 = vpop.f32.mrb[0].mxu0
      %2877 = vmatprep.mubr.bf16.mxu0 0
      %2878 = vmatmul.mubr.bf16.gmra.mrb[0].mxu0 %v1724
      %v2879 = vpop.f32.mrb[0].mxu0
      %v2880 = vadd.f32 0.0, %v2879
      %v2881 = vpop.f32.mrb[0].mxu0
      %v2882 = vpop.f32.mrb[0].mxu0
      %v2883 = vadd.f32 0.0, %v2882
      %v2884 = vpop.f32.mrb[0].mxu0
      %2885 = vmatprep.mubr.bf16.mxu0 0
      %2886 = vmatmul.mubr.bf16.gmra.mrb[0].mxu0 %v1727
      %v2887 = vpop.f32.mrb[0].mxu0
      %v2888 = vadd.f32 0.0, %v2887
      %v2889 = vpop.f32.mrb[0].mxu0
      %v2890 = vpop.f32.mrb[0].mxu0
      %v2891 = vadd.f32 0.0, %v2890
      %v2892 = vpop.f32.mrb[0].mxu0
      %2893 = vmatprep.mubr.bf16.mxu0 0
      %2894 = vmatmul.mubr.bf16.gmra.mrb[0].mxu0 %v1730
      %v2895 = vpop.f32.mrb[0].mxu0
      %v2896 = vadd.f32 0.0, %v2895
      %v2897 = vpop.f32.mrb[0].mxu0
      %v2898 = vpop.f32.mrb[0].mxu0
      %v2899 = vadd.f32 0.0, %v2898
      %v2900 = vpop.f32.mrb[0].mxu0
      %2901 = vdwg.mxu0
      %v2903 = vsel %vm1251, %v2799, 0
      %2905 = vmatprep.subr.bf16.mxu0 0
      %2906 = vmatpush1.bf16.msra.mxu0 %v2903
      %2907 = vmatprep.subr.bf16.mxu0 0
      %2908 = vmatpush1.bf16.msra.mxu0 0
      %2909 = vmatprep.subr.bf16.mxu0 0
      %2910 = vmatpush1.bf16.msra.mxu0 0
      %2911 = vmatprep.subr.bf16.mxu0 0
      %2912 = vmatpush1.bf16.msra.mxu0 0
      %2913 = vmatprep.subr.bf16.mxu0 0
      %2914 = vmatpush1.bf16.msra.mxu0 0
      %2915 = vmatprep.subr.bf16.mxu0 0
      %2916 = vmatpush1.bf16.msra.mxu0 0
      %2917 = vmatprep.subr.bf16.mxu0 0
      %2918 = vmatpush1.bf16.msra.mxu0 0
      %2919 = vmatprep.subr.bf16.mxu0 0
      %2920 = vmatpush1.bf16.msra.mxu0 0
      %2921 = vmatprep.subr.bf16.mxu0 0
      %2922 = vmatpush1.bf16.msra.mxu0 0
      %2923 = vmatprep.subr.bf16.mxu0 0
      %2924 = vmatpush1.bf16.msra.mxu0 0
      %2925 = vmatprep.subr.bf16.mxu0 0
      %2926 = vmatpush1.bf16.msra.mxu0 0
      %2927 = vmatprep.subr.bf16.mxu0 0
      %2928 = vmatpush1.bf16.msra.mxu0 0
      %2929 = vmatprep.subr.bf16.mxu0 0
      %2930 = vmatpush1.bf16.msra.mxu0 0
      %2931 = vmatprep.subr.bf16.mxu0 0
      %2932 = vmatpush1.bf16.msra.mxu0 0
      %2933 = vmatprep.subr.bf16.mxu0 0
      %2934 = vmatpush1.bf16.msra.mxu0 0
      %2935 = vmatprep.subr.bf16.mxu0 0
      %2936 = vmatpush1.bf16.msra.mxu0 0
      %2937 = vmatprep.mubr.bf16.mxu0 0
      %2938 = vmatmul.mubr.bf16.gmra.mrb[0].mxu0 %v1543
      %v2939 = vpop.f32.mrb[0].mxu0
      %v2940 = vadd.f32 %v2840, %v2939
      %v2941 = vpop.f32.mrb[0].mxu0
      %v2942 = vpop.f32.mrb[0].mxu0
      %v2943 = vadd.f32 %v2843, %v2942
      %v2944 = vpop.f32.mrb[0].mxu0
      %2945 = vmatprep.mubr.bf16.mxu0 0
      %2946 = vmatmul.mubr.bf16.gmra.mrb[0].mxu0 %v1546
      %v2947 = vpop.f32.mrb[0].mxu0
      %v2948 = vadd.f32 %v2848, %v2947
      %v2949 = vpop.f32.mrb[0].mxu0
      %v2950 = vpop.f32.mrb[0].mxu0
      %v2951 = vadd.f32 %v2851, %v2950
      %v2952 = vpop.f32.mrb[0].mxu0
      %2953 = vmatprep.mubr.bf16.mxu0 0
      %2954 = vmatmul.mubr.bf16.gmra.mrb[0].mxu0 %v1549
      %v2955 = vpop.f32.mrb[0].mxu0
      %v2956 = vadd.f32 %v2856, %v2955
      %v2957 = vpop.f32.mrb[0].mxu0
      %v2958 = vpop.f32.mrb[0].mxu0
      %v2959 = vadd.f32 %v2859, %v2958
      %v2960 = vpop.f32.mrb[0].mxu0
      %2961 = vmatprep.mubr.bf16.mxu0 0
      %2962 = vmatmul.mubr.bf16.gmra.mrb[0].mxu0 %v1552
      %v2963 = vpop.f32.mrb[0].mxu0
      %v2964 = vadd.f32 %v2864, %v2963
      %v2965 = vpop.f32.mrb[0].mxu0
      %v2966 = vpop.f32.mrb[0].mxu0
      %v2967 = vadd.f32 %v2867, %v2966
      %v2968 = vpop.f32.mrb[0].mxu0
      %2969 = vmatprep.mubr.bf16.mxu0 0
      %2970 = vmatmul.mubr.bf16.gmra.mrb[0].mxu0 %v1555
      %v2971 = vpop.f32.mrb[0].mxu0
      %v2972 = vadd.f32 %v2872, %v2971
      %v2973 = vpop.f32.mrb[0].mxu0
      %v2974 = vpop.f32.mrb[0].mxu0
      %v2975 = vadd.f32 %v2875, %v2974
      %v2976 = vpop.f32.mrb[0].mxu0
      %2977 = vmatprep.mubr.bf16.mxu0 0
      %2978 = vmatmul.mubr.bf16.gmra.mrb[0].mxu0 %v1558
      %v2979 = vpop.f32.mrb[0].mxu0
      %v2980 = vadd.f32 %v2880, %v2979
      %v2981 = vpop.f32.mrb[0].mxu0
      %v2982 = vpop.f32.mrb[0].mxu0
      %v2983 = vadd.f32 %v2883, %v2982
      %v2984 = vpop.f32.mrb[0].mxu0
      %2985 = vmatprep.mubr.bf16.mxu0 0
      %2986 = vmatmul.mubr.bf16.gmra.mrb[0].mxu0 %v1561
      %v2987 = vpop.f32.mrb[0].mxu0
      %v2988 = vadd.f32 %v2888, %v2987
      %v2989 = vpop.f32.mrb[0].mxu0
      %v2990 = vpop.f32.mrb[0].mxu0
      %v2991 = vadd.f32 %v2891, %v2990
      %v2992 = vpop.f32.mrb[0].mxu0
      %2993 = vmatprep.mubr.bf16.mxu0 0
      %2994 = vmatmul.mubr.bf16.gmra.mrb[0].mxu0 %v1564
      %v2995 = vpop.f32.mrb[0].mxu0
      %v2996 = vadd.f32 %v2896, %v2995
      %v2997 = vpop.f32.mrb[0].mxu0
      %v2998 = vpop.f32.mrb[0].mxu0
      %v2999 = vadd.f32 %v2899, %v2998
      %v3000 = vpop.f32.mrb[0].mxu0
      %3001 = vdwg.mxu0
      %s3002 = scalar_lea.vmem %s1, 20
      %v3003 = vld [vmem:[%s3002] sm:$0x3]
      %v3012 = vunpack.c.l.b16 %v895
      %v3013 = vunpack.c.l.b16 %v896
      %v3014 = vunpack.c.l.b16 %v897
      %v3015 = vunpack.c.l.b16 %v898
      %v3016 = vunpack.c.l.b16 %v899
      %v3017 = vunpack.c.l.b16 %v900
      %v3018 = vunpack.c.l.b16 %v901
      %v3019 = vunpack.c.l.b16 %v902
      %v3020 = vunpack.c.l.b16 %v903
      %v3021 = vunpack.c.l.b16 %v904
      %v3022 = vunpack.c.l.b16 %v905
      %v3023 = vunpack.c.l.b16 %v906
      %v3024 = vunpack.c.l.b16 %v907
      %v3025 = vunpack.c.l.b16 %v908
      %v3026 = vunpack.c.l.b16 %v909
      %v3027 = vunpack.c.l.b16 %v910
      %v3028 = vpack.c.b16 %v3013, %v3012
      %v3029 = vpack.c.b16 %v3015, %v3014
      %v3030 = vpack.c.b16 %v3017, %v3016
      %v3031 = vpack.c.b16 %v3019, %v3018
      %v3032 = vpack.c.b16 %v3021, %v3020
      %v3033 = vpack.c.b16 %v3023, %v3022
      %v3034 = vpack.c.b16 %v3025, %v3024
      %v3035 = vpack.c.b16 %v3027, %v3026
      %v3037 = vsel %vm1226, %v3028, 0
      %v3040 = vsel %vm1226, %v3029, 0
      %v3043 = vsel %vm1226, %v3030, 0
      %v3046 = vsel %vm1226, %v3031, 0
      %v3049 = vsel %vm1226, %v3032, 0
      %v3052 = vsel %vm1226, %v3033, 0
      %v3055 = vsel %vm1226, %v3034, 0
      %v3058 = vsel %vm1226, %v3035, 0
      %v3061 = vsel %vm1251, %v3003, 0
      %3063 = vmatprep.subr.bf16.mxu0 0
      %3064 = vmatpush1.bf16.msra.mxu0 %v3061
      %3065 = vmatprep.subr.bf16.mxu0 0
      %3066 = vmatpush1.bf16.msra.mxu0 0
      %3067 = vmatprep.subr.bf16.mxu0 0
      %3068 = vmatpush1.bf16.msra.mxu0 0
      %3069 = vmatprep.subr.bf16.mxu0 0
      %3070 = vmatpush1.bf16.msra.mxu0 0
      %3071 = vmatprep.subr.bf16.mxu0 0
      %3072 = vmatpush1.bf16.msra.mxu0 0
      %3073 = vmatprep.subr.bf16.mxu0 0
      %3074 = vmatpush1.bf16.msra.mxu0 0
      %3075 = vmatprep.subr.bf16.mxu0 0
      %3076 = vmatpush1.bf16.msra.mxu0 0
      %3077 = vmatprep.subr.bf16.mxu0 0
      %3078 = vmatpush1.bf16.msra.mxu0 0
      %3079 = vmatprep.subr.bf16.mxu0 0
      %3080 = vmatpush1.bf16.msra.mxu0 0
      %3081 = vmatprep.subr.bf16.mxu0 0
      %3082 = vmatpush1.bf16.msra.mxu0 0
      %3083 = vmatprep.subr.bf16.mxu0 0
      %3084 = vmatpush1.bf16.msra.mxu0 0
      %3085 = vmatprep.subr.bf16.mxu0 0
      %3086 = vmatpush1.bf16.msra.mxu0 0
      %3087 = vmatprep.subr.bf16.mxu0 0
      %3088 = vmatpush1.bf16.msra.mxu0 0
      %3089 = vmatprep.subr.bf16.mxu0 0
      %3090 = vmatpush1.bf16.msra.mxu0 0
      %3091 = vmatprep.subr.bf16.mxu0 0
      %3092 = vmatpush1.bf16.msra.mxu0 0
      %3093 = vmatprep.subr.bf16.mxu0 0
      %3094 = vmatpush1.bf16.msra.mxu0 0
      %3095 = vmatprep.mubr.bf16.mxu0 0
      %3096 = vmatmul.mubr.bf16.gmra.mrb[0].mxu0 %v3037
      %v3097 = vpop.f32.mrb[0].mxu0
      %v3098 = vadd.f32 0.0, %v3097
      %v3099 = vpop.f32.mrb[0].mxu0
      %v3100 = vpop.f32.mrb[0].mxu0
      %v3101 = vadd.f32 0.0, %v3100
      %v3102 = vpop.f32.mrb[0].mxu0
      %3103 = vmatprep.mubr.bf16.mxu0 0
      %3104 = vmatmul.mubr.bf16.gmra.mrb[0].mxu0 %v3040
      %v3105 = vpop.f32.mrb[0].mxu0
      %v3106 = vadd.f32 0.0, %v3105
      %v3107 = vpop.f32.mrb[0].mxu0
      %v3108 = vpop.f32.mrb[0].mxu0
      %v3109 = vadd.f32 0.0, %v3108
      %v3110 = vpop.f32.mrb[0].mxu0
      %3111 = vmatprep.mubr.bf16.mxu0 0
      %3112 = vmatmul.mubr.bf16.gmra.mrb[0].mxu0 %v3043
      %v3113 = vpop.f32.mrb[0].mxu0
      %v3114 = vadd.f32 0.0, %v3113
      %v3115 = vpop.f32.mrb[0].mxu0
      %v3116 = vpop.f32.mrb[0].mxu0
      %v3117 = vadd.f32 0.0, %v3116
      %v3118 = vpop.f32.mrb[0].mxu0
      %3119 = vmatprep.mubr.bf16.mxu0 0
      %3120 = vmatmul.mubr.bf16.gmra.mrb[0].mxu0 %v3046
      %v3121 = vpop.f32.mrb[0].mxu0
      %v3122 = vadd.f32 0.0, %v3121
      %v3123 = vpop.f32.mrb[0].mxu0
      %v3124 = vpop.f32.mrb[0].mxu0
      %v3125 = vadd.f32 0.0, %v3124
      %v3126 = vpop.f32.mrb[0].mxu0
      %3127 = vmatprep.mubr.bf16.mxu0 0
      %3128 = vmatmul.mubr.bf16.gmra.mrb[0].mxu0 %v3049
      %v3129 = vpop.f32.mrb[0].mxu0
      %v3130 = vadd.f32 0.0, %v3129
      %v3131 = vpop.f32.mrb[0].mxu0
      %v3132 = vpop.f32.mrb[0].mxu0
      %v3133 = vadd.f32 0.0, %v3132
      %v3134 = vpop.f32.mrb[0].mxu0
      %3135 = vmatprep.mubr.bf16.mxu0 0
      %3136 = vmatmul.mubr.bf16.gmra.mrb[0].mxu0 %v3052
      %v3137 = vpop.f32.mrb[0].mxu0
      %v3138 = vadd.f32 0.0, %v3137
      %v3139 = vpop.f32.mrb[0].mxu0
      %v3140 = vpop.f32.mrb[0].mxu0
      %v3141 = vadd.f32 0.0, %v3140
      %v3142 = vpop.f32.mrb[0].mxu0
      %3143 = vmatprep.mubr.bf16.mxu0 0
      %3144 = vmatmul.mubr.bf16.gmra.mrb[0].mxu0 %v3055
      %v3145 = vpop.f32.mrb[0].mxu0
      %v3146 = vadd.f32 0.0, %v3145
      %v3147 = vpop.f32.mrb[0].mxu0
      %v3148 = vpop.f32.mrb[0].mxu0
      %v3149 = vadd.f32 0.0, %v3148
      %v3150 = vpop.f32.mrb[0].mxu0
      %3151 = vmatprep.mubr.bf16.mxu0 0
      %3152 = vmatmul.mubr.bf16.gmra.mrb[0].mxu0 %v3058
      %v3153 = vpop.f32.mrb[0].mxu0
      %v3154 = vadd.f32 0.0, %v3153
      %v3155 = vpop.f32.mrb[0].mxu0
      %v3156 = vpop.f32.mrb[0].mxu0
      %v3157 = vadd.f32 0.0, %v3156
      %v3158 = vpop.f32.mrb[0].mxu0
      %3159 = vdwg.mxu0
      %v3160 = vadd.f32 %v2940, %v3098
      %v3161 = vadd.f32 %v2943, %v3101
      %v3162 = vadd.f32 %v2948, %v3106
      %v3163 = vadd.f32 %v2951, %v3109
      %v3164 = vadd.f32 %v2956, %v3114
      %v3165 = vadd.f32 %v2959, %v3117
      %v3166 = vadd.f32 %v2964, %v3122
      %v3167 = vadd.f32 %v2967, %v3125
      %v3168 = vadd.f32 %v2972, %v3130
      %v3169 = vadd.f32 %v2975, %v3133
      %v3170 = vadd.f32 %v2980, %v3138
      %v3171 = vadd.f32 %v2983, %v3141
      %v3172 = vadd.f32 %v2988, %v3146
      %v3173 = vadd.f32 %v2991, %v3149
      %v3174 = vadd.f32 %v2996, %v3154
      %v3175 = vadd.f32 %v2999, %v3157
      %s3176 = scalar_lea.vmem %s1, 22
      %v3177 = vld [vmem:[%s3176] sm:$0x3]
      %v3178 = vunpack.c.l.b16 %v932
      %v3179 = vunpack.c.l.b16 %v942
      %v3180 = vunpack.c.l.b16 %v956
      %v3181 = vunpack.c.l.b16 %v966
      %v3182 = vunpack.c.l.b16 %v980
      %v3183 = vunpack.c.l.b16 %v990
      %v3184 = vunpack.c.l.b16 %v1004
      %v3185 = vunpack.c.l.b16 %v1014
      %v3186 = vunpack.c.l.b16 %v1028
      %v3187 = vunpack.c.l.b16 %v1038
      %v3188 = vunpack.c.l.b16 %v1052
      %v3189 = vunpack.c.l.b16 %v1062
      %v3190 = vunpack.c.l.b16 %v1076
      %v3191 = vunpack.c.l.b16 %v1086
      %v3192 = vunpack.c.l.b16 %v1100
      %v3193 = vunpack.c.l.b16 %v1110
      %v3194 = vpack.c.b16 %v3179, %v3178
      %v3195 = vpack.c.b16 %v3181, %v3180
      %v3196 = vpack.c.b16 %v3183, %v3182
      %v3197 = vpack.c.b16 %v3185, %v3184
      %v3198 = vpack.c.b16 %v3187, %v3186
      %v3199 = vpack.c.b16 %v3189, %v3188
      %v3200 = vpack.c.b16 %v3191, %v3190
      %v3201 = vpack.c.b16 %v3193, %v3192
      %v3203 = vsel %vm1226, %v3194, 0
      %v3206 = vsel %vm1226, %v3195, 0
      %v3209 = vsel %vm1226, %v3196, 0
      %v3212 = vsel %vm1226, %v3197, 0
      %v3215 = vsel %vm1226, %v3198, 0
      %v3218 = vsel %vm1226, %v3199, 0
      %v3221 = vsel %vm1226, %v3200, 0
      %v3224 = vsel %vm1226, %v3201, 0
      %v3227 = vsel %vm1251, %v3177, 0
      %3229 = vmatprep.subr.bf16.mxu0 0
      %3230 = vmatpush1.bf16.msra.mxu0 %v3227
      %3231 = vmatprep.subr.bf16.mxu0 0
      %3232 = vmatpush1.bf16.msra.mxu0 0
      %3233 = vmatprep.subr.bf16.mxu0 0
      %3234 = vmatpush1.bf16.msra.mxu0 0
      %3235 = vmatprep.subr.bf16.mxu0 0
      %3236 = vmatpush1.bf16.msra.mxu0 0
      %3237 = vmatprep.subr.bf16.mxu0 0
      %3238 = vmatpush1.bf16.msra.mxu0 0
      %3239 = vmatprep.subr.bf16.mxu0 0
      %3240 = vmatpush1.bf16.msra.mxu0 0
      %3241 = vmatprep.subr.bf16.mxu0 0
      %3242 = vmatpush1.bf16.msra.mxu0 0
      %3243 = vmatprep.subr.bf16.mxu0 0
      %3244 = vmatpush1.bf16.msra.mxu0 0
      %3245 = vmatprep.subr.bf16.mxu0 0
      %3246 = vmatpush1.bf16.msra.mxu0 0
      %3247 = vmatprep.subr.bf16.mxu0 0
      %3248 = vmatpush1.bf16.msra.mxu0 0
      %3249 = vmatprep.subr.bf16.mxu0 0
      %3250 = vmatpush1.bf16.msra.mxu0 0
      %3251 = vmatprep.subr.bf16.mxu0 0
      %3252 = vmatpush1.bf16.msra.mxu0 0
      %3253 = vmatprep.subr.bf16.mxu0 0
      %3254 = vmatpush1.bf16.msra.mxu0 0
      %3255 = vmatprep.subr.bf16.mxu0 0
      %3256 = vmatpush1.bf16.msra.mxu0 0
      %3257 = vmatprep.subr.bf16.mxu0 0
      %3258 = vmatpush1.bf16.msra.mxu0 0
      %3259 = vmatprep.subr.bf16.mxu0 0
      %3260 = vmatpush1.bf16.msra.mxu0 0
      %3261 = vmatprep.mubr.bf16.mxu0 0
      %3262 = vmatmul.mubr.bf16.gmra.mrb[0].mxu0 %v3203
      %v3263 = vpop.f32.mrb[0].mxu0
      %v3264 = vadd.f32 0.0, %v3263
      %v3265 = vpop.f32.mrb[0].mxu0
      %v3266 = vpop.f32.mrb[0].mxu0
      %v3267 = vadd.f32 0.0, %v3266
      %v3268 = vpop.f32.mrb[0].mxu0
      %3269 = vmatprep.mubr.bf16.mxu0 0
      %3270 = vmatmul.mubr.bf16.gmra.mrb[0].mxu0 %v3206
      %v3271 = vpop.f32.mrb[0].mxu0
      %v3272 = vadd.f32 0.0, %v3271
      %v3273 = vpop.f32.mrb[0].mxu0
      %v3274 = vpop.f32.mrb[0].mxu0
      %v3275 = vadd.f32 0.0, %v3274
      %v3276 = vpop.f32.mrb[0].mxu0
      %3277 = vmatprep.mubr.bf16.mxu0 0
      %3278 = vmatmul.mubr.bf16.gmra.mrb[0].mxu0 %v3209
      %v3279 = vpop.f32.mrb[0].mxu0
      %v3280 = vadd.f32 0.0, %v3279
      %v3281 = vpop.f32.mrb[0].mxu0
      %v3282 = vpop.f32.mrb[0].mxu0
      %v3283 = vadd.f32 0.0, %v3282
      %v3284 = vpop.f32.mrb[0].mxu0
      %3285 = vmatprep.mubr.bf16.mxu0 0
      %3286 = vmatmul.mubr.bf16.gmra.mrb[0].mxu0 %v3212
      %v3287 = vpop.f32.mrb[0].mxu0
      %v3288 = vadd.f32 0.0, %v3287
      %v3289 = vpop.f32.mrb[0].mxu0
      %v3290 = vpop.f32.mrb[0].mxu0
      %v3291 = vadd.f32 0.0, %v3290
      %v3292 = vpop.f32.mrb[0].mxu0
      %3293 = vmatprep.mubr.bf16.mxu0 0
      %3294 = vmatmul.mubr.bf16.gmra.mrb[0].mxu0 %v3215
      %v3295 = vpop.f32.mrb[0].mxu0
      %v3296 = vadd.f32 0.0, %v3295
      %v3297 = vpop.f32.mrb[0].mxu0
      %v3298 = vpop.f32.mrb[0].mxu0
      %v3299 = vadd.f32 0.0, %v3298
      %v3300 = vpop.f32.mrb[0].mxu0
      %3301 = vmatprep.mubr.bf16.mxu0 0
      %3302 = vmatmul.mubr.bf16.gmra.mrb[0].mxu0 %v3218
      %v3303 = vpop.f32.mrb[0].mxu0
      %v3304 = vadd.f32 0.0, %v3303
      %v3305 = vpop.f32.mrb[0].mxu0
      %v3306 = vpop.f32.mrb[0].mxu0
      %v3307 = vadd.f32 0.0, %v3306
      %v3308 = vpop.f32.mrb[0].mxu0
      %3309 = vmatprep.mubr.bf16.mxu0 0
      %3310 = vmatmul.mubr.bf16.gmra.mrb[0].mxu0 %v3221
      %v3311 = vpop.f32.mrb[0].mxu0
      %v3312 = vadd.f32 0.0, %v3311
      %v3313 = vpop.f32.mrb[0].mxu0
      %v3314 = vpop.f32.mrb[0].mxu0
      %v3315 = vadd.f32 0.0, %v3314
      %v3316 = vpop.f32.mrb[0].mxu0
      %3317 = vmatprep.mubr.bf16.mxu0 0
      %3318 = vmatmul.mubr.bf16.gmra.mrb[0].mxu0 %v3224
      %v3319 = vpop.f32.mrb[0].mxu0
      %v3320 = vadd.f32 0.0, %v3319
      %v3321 = vpop.f32.mrb[0].mxu0
      %v3322 = vpop.f32.mrb[0].mxu0
      %v3323 = vadd.f32 0.0, %v3322
      %v3324 = vpop.f32.mrb[0].mxu0
      %3325 = vdwg.mxu0
      %v3326 = vadd.f32 %v3160, %v3264
      %v3327 = vadd.f32 %v3161, %v3267
      %v3328 = vadd.f32 %v3162, %v3272
      %v3329 = vadd.f32 %v3163, %v3275
      %v3330 = vadd.f32 %v3164, %v3280
      %v3331 = vadd.f32 %v3165, %v3283
      %v3332 = vadd.f32 %v3166, %v3288
      %v3333 = vadd.f32 %v3167, %v3291
      %v3334 = vadd.f32 %v3168, %v3296
      %v3335 = vadd.f32 %v3169, %v3299
      %v3336 = vadd.f32 %v3170, %v3304
      %v3337 = vadd.f32 %v3171, %v3307
      %v3338 = vadd.f32 %v3172, %v3312
      %v3339 = vadd.f32 %v3173, %v3315
      %v3340 = vadd.f32 %v3174, %v3320
      %v3341 = vadd.f32 %v3175, %v3323
      %v3342 = vsel %vm1848, %v3326, 0.0
      %v3343 = vsel %vm1848, %v3327, 0.0
      %v3344 = vadd.f32 %v3342, %v3343
      %v3345 = vsel %vm1848, %v3328, 0.0
      %v3346 = vadd.f32 %v3344, %v3345
      %v3347 = vsel %vm1848, %v3329, 0.0
      %v3348 = vadd.f32 %v3346, %v3347
      %v3349 = vsel %vm1848, %v3330, 0.0
      %v3350 = vadd.f32 %v3348, %v3349
      %v3351 = vsel %vm1848, %v3331, 0.0
      %v3352 = vadd.f32 %v3350, %v3351
      %v3353 = vsel %vm1848, %v3332, 0.0
      %v3354 = vadd.f32 %v3352, %v3353
      %v3355 = vsel %vm1848, %v3333, 0.0
      %v3356 = vadd.f32 %v3354, %v3355
      %v3357 = vsel %vm1848, %v3334, 0.0
      %v3358 = vadd.f32 %v3356, %v3357
      %v3359 = vsel %vm1848, %v3335, 0.0
      %v3360 = vadd.f32 %v3358, %v3359
      %v3361 = vsel %vm1848, %v3336, 0.0
      %v3362 = vadd.f32 %v3360, %v3361
      %v3363 = vsel %vm1848, %v3337, 0.0
      %v3364 = vadd.f32 %v3362, %v3363
      %v3365 = vsel %vm1848, %v3338, 0.0
      %v3366 = vadd.f32 %v3364, %v3365
      %v3367 = vsel %vm1848, %v3339, 0.0
      %v3368 = vadd.f32 %v3366, %v3367
      %v3369 = vsel %vm1848, %v3340, 0.0
      %v3370 = vadd.f32 %v3368, %v3369
      %v3371 = vsel %vm1848, %v3341, 0.0
      %v3372 = vadd.f32 %v3370, %v3371
      %v3373 = vrot.slane %v3372, 4
      %v3374 = vadd.f32 %v3372, %v3373
      %v3375 = vrot.slane %v3374, 2
      %v3376 = vadd.f32 %v3374, %v3375
      %v3377 = vrot.slane %v3376, 1
      %v3378 = vadd.f32 %v3376, %v3377
      %v3379 = vmul.f32 %v3378, 0.0078125
      %v3380 = vsub.f32 %v3326, %v3379
      %v3381 = vsub.f32 %v3327, %v3379
      %v3382 = vsub.f32 %v3328, %v3379
      %v3383 = vsub.f32 %v3329, %v3379
      %v3384 = vsub.f32 %v3330, %v3379
      %v3385 = vsub.f32 %v3331, %v3379
      %v3386 = vsub.f32 %v3332, %v3379
      %v3387 = vsub.f32 %v3333, %v3379
      %v3388 = vsub.f32 %v3334, %v3379
      %v3389 = vsub.f32 %v3335, %v3379
      %v3390 = vsub.f32 %v3336, %v3379
      %v3391 = vsub.f32 %v3337, %v3379
      %v3392 = vsub.f32 %v3338, %v3379
      %v3393 = vsub.f32 %v3339, %v3379
      %v3394 = vsub.f32 %v3340, %v3379
      %v3395 = vsub.f32 %v3341, %v3379
      %v3396 = vmul.f32 %v3380, %v3380
      %v3397 = vmul.f32 %v3381, %v3381
      %v3398 = vmul.f32 %v3382, %v3382
      %v3399 = vmul.f32 %v3383, %v3383
      %v3400 = vmul.f32 %v3384, %v3384
      %v3401 = vmul.f32 %v3385, %v3385
      %v3402 = vmul.f32 %v3386, %v3386
      %v3403 = vmul.f32 %v3387, %v3387
      %v3404 = vmul.f32 %v3388, %v3388
      %v3405 = vmul.f32 %v3389, %v3389
      %v3406 = vmul.f32 %v3390, %v3390
      %v3407 = vmul.f32 %v3391, %v3391
      %v3408 = vmul.f32 %v3392, %v3392
      %v3409 = vmul.f32 %v3393, %v3393
      %v3410 = vmul.f32 %v3394, %v3394
      %v3411 = vmul.f32 %v3395, %v3395
      %v3412 = vsel %vm1848, %v3396, 0.0
      %v3413 = vsel %vm1848, %v3397, 0.0
      %v3414 = vadd.f32 %v3412, %v3413
      %v3415 = vsel %vm1848, %v3398, 0.0
      %v3416 = vadd.f32 %v3414, %v3415
      %v3417 = vsel %vm1848, %v3399, 0.0
      %v3418 = vadd.f32 %v3416, %v3417
      %v3419 = vsel %vm1848, %v3400, 0.0
      %v3420 = vadd.f32 %v3418, %v3419
      %v3421 = vsel %vm1848, %v3401, 0.0
      %v3422 = vadd.f32 %v3420, %v3421
      %v3423 = vsel %vm1848, %v3402, 0.0
      %v3424 = vadd.f32 %v3422, %v3423
      %v3425 = vsel %vm1848, %v3403, 0.0
      %v3426 = vadd.f32 %v3424, %v3425
      %v3427 = vsel %vm1848, %v3404, 0.0
      %v3428 = vadd.f32 %v3426, %v3427
      %v3429 = vsel %vm1848, %v3405, 0.0
      %v3430 = vadd.f32 %v3428, %v3429
      %v3431 = vsel %vm1848, %v3406, 0.0
      %v3432 = vadd.f32 %v3430, %v3431
      %v3433 = vsel %vm1848, %v3407, 0.0
      %v3434 = vadd.f32 %v3432, %v3433
      %v3435 = vsel %vm1848, %v3408, 0.0
      %v3436 = vadd.f32 %v3434, %v3435
      %v3437 = vsel %vm1848, %v3409, 0.0
      %v3438 = vadd.f32 %v3436, %v3437
      %v3439 = vsel %vm1848, %v3410, 0.0
      %v3440 = vadd.f32 %v3438, %v3439
      %v3441 = vsel %vm1848, %v3411, 0.0
      %v3442 = vadd.f32 %v3440, %v3441
      %v3443 = vrot.slane %v3442, 4
      %v3444 = vadd.f32 %v3442, %v3443
      %v3445 = vrot.slane %v3444, 2
      %v3446 = vadd.f32 %v3444, %v3445
      %v3447 = vrot.slane %v3446, 1
      %v3448 = vadd.f32 %v3446, %v3447
      %3449 = vst.msk [vmem:[%s269 + $0x2] sm:$0x1] %vm1956, %v3378
      %3450 = vst.msk [vmem:[%s277 + $0x2] sm:$0x1] %vm1956, %v3448
      %v3451 = vpack.c.bf16 %v3327, %v3326
      %v3452 = vpack.c.bf16 %v3329, %v3328
      %v3453 = vpack.c.bf16 %v3331, %v3330
      %v3454 = vpack.c.bf16 %v3333, %v3332
      %v3455 = vpack.c.bf16 %v3335, %v3334
      %v3456 = vpack.c.bf16 %v3337, %v3336
      %v3457 = vpack.c.bf16 %v3339, %v3338
      %v3458 = vpack.c.bf16 %v3341, %v3340
      %v3467 = vunpack.c.l.b16 %v3451
      %v3468 = vunpack.c.h.b16 %v3451
      %v3469 = vunpack.c.l.b16 %v3452
      %v3470 = vunpack.c.h.b16 %v3452
      %v3471 = vunpack.c.l.b16 %v3453
      %v3472 = vunpack.c.h.b16 %v3453
      %v3473 = vunpack.c.l.b16 %v3454
      %v3474 = vunpack.c.h.b16 %v3454
      %v3475 = vunpack.c.l.b16 %v3455
      %v3476 = vunpack.c.h.b16 %v3455
      %v3477 = vunpack.c.l.b16 %v3456
      %v3478 = vunpack.c.h.b16 %v3456
      %v3479 = vunpack.c.l.b16 %v3457
      %v3480 = vunpack.c.h.b16 %v3457
      %v3481 = vunpack.c.l.b16 %v3458
      %v3482 = vunpack.c.h.b16 %v3458
      %v3483 = vpack.c.b16 %v3467, %v3467
      %v3484 = vpack.c.b16 %v3468, %v3468
      %v3485 = vpack.c.b16 %v3469, %v3469
      %v3486 = vpack.c.b16 %v3470, %v3470
      %v3487 = vpack.c.b16 %v3471, %v3471
      %v3488 = vpack.c.b16 %v3472, %v3472
      %v3489 = vpack.c.b16 %v3473, %v3473
      %v3490 = vpack.c.b16 %v3474, %v3474
      %v3491 = vpack.c.b16 %v3475, %v3475
      %v3492 = vpack.c.b16 %v3476, %v3476
      %v3493 = vpack.c.b16 %v3477, %v3477
      %v3494 = vpack.c.b16 %v3478, %v3478
      %v3495 = vpack.c.b16 %v3479, %v3479
      %v3496 = vpack.c.b16 %v3480, %v3480
      %v3497 = vpack.c.b16 %v3481, %v3481
      %v3498 = vpack.c.b16 %v3482, %v3482
      %s3515 = scalar_lea.vmem %s260, 8
      %3516 = vst.msk [vmem:[%s3515] sm:$0xf] %vm2023, %v3483
      %3517 = vst.msk [vmem:[%s3515 + $0x4] sm:$0xf] %vm2023, %v3484
      %3518 = vst.msk [vmem:[%s3515 + $0x10] sm:$0xf] %vm2023, %v3485
      %3519 = vst.msk [vmem:[%s3515 + $0x14] sm:$0xf] %vm2023, %v3486
      %3520 = vst.msk [vmem:[%s3515 + $0x20] sm:$0xf] %vm2023, %v3487
      %3521 = vst.msk [vmem:[%s3515 + $0x24] sm:$0xf] %vm2023, %v3488
      %3522 = vst.msk [vmem:[%s3515 + $0x30] sm:$0xf] %vm2023, %v3489
      %3523 = vst.msk [vmem:[%s3515 + $0x34] sm:$0xf] %vm2023, %v3490
      %3524 = vst.msk [vmem:[%s3515 + $0x40] sm:$0xf] %vm2023, %v3491
      %3525 = vst.msk [vmem:[%s3515 + $0x44] sm:$0xf] %vm2023, %v3492
      %3526 = vst.msk [vmem:[%s3515 + $0x50] sm:$0xf] %vm2023, %v3493
      %3527 = vst.msk [vmem:[%s3515 + $0x54] sm:$0xf] %vm2023, %v3494
      %3528 = vst.msk [vmem:[%s3515 + $0x60] sm:$0xf] %vm2023, %v3495
      %3529 = vst.msk [vmem:[%s3515 + $0x64] sm:$0xf] %vm2023, %v3496
      %3530 = vst.msk [vmem:[%s3515 + $0x70] sm:$0xf] %vm2023, %v3497
      %3531 = vst.msk [vmem:[%s3515 + $0x74] sm:$0xf] %vm2023, %v3498
      %s3532 = scalar_lea.vmem %s1, 24
      %v3533 = vld [vmem:[%s3532] sm:$0x3]
      %s3534 = scalar_lea.vmem %s1, 26
      %v3535 = vld [vmem:[%s3534] sm:$0x3]
      %v3537 = vsel %vm1251, %v3535, 0
      %3539 = vmatprep.subr.bf16.mxu0 0
      %3540 = vmatpush1.bf16.msra.mxu0 %v3537
      %3541 = vmatprep.subr.bf16.mxu0 0
      %3542 = vmatpush1.bf16.msra.mxu0 0
      %3543 = vmatprep.subr.bf16.mxu0 0
      %3544 = vmatpush1.bf16.msra.mxu0 0
      %3545 = vmatprep.subr.bf16.mxu0 0
      %3546 = vmatpush1.bf16.msra.mxu0 0
      %3547 = vmatprep.subr.bf16.mxu0 0
      %3548 = vmatpush1.bf16.msra.mxu0 0
      %3549 = vmatprep.subr.bf16.mxu0 0
      %3550 = vmatpush1.bf16.msra.mxu0 0
      %3551 = vmatprep.subr.bf16.mxu0 0
      %3552 = vmatpush1.bf16.msra.mxu0 0
      %3553 = vmatprep.subr.bf16.mxu0 0
      %3554 = vmatpush1.bf16.msra.mxu0 0
      %3555 = vmatprep.subr.bf16.mxu0 0
      %3556 = vmatpush1.bf16.msra.mxu0 0
      %3557 = vmatprep.subr.bf16.mxu0 0
      %3558 = vmatpush1.bf16.msra.mxu0 0
      %3559 = vmatprep.subr.bf16.mxu0 0
      %3560 = vmatpush1.bf16.msra.mxu0 0
      %3561 = vmatprep.subr.bf16.mxu0 0
      %3562 = vmatpush1.bf16.msra.mxu0 0
      %3563 = vmatprep.subr.bf16.mxu0 0
      %3564 = vmatpush1.bf16.msra.mxu0 0
      %3565 = vmatprep.subr.bf16.mxu0 0
      %3566 = vmatpush1.bf16.msra.mxu0 0
      %3567 = vmatprep.subr.bf16.mxu0 0
      %3568 = vmatpush1.bf16.msra.mxu0 0
      %3569 = vmatprep.subr.bf16.mxu0 0
      %3570 = vmatpush1.bf16.msra.mxu0 0
      %3571 = vmatprep.mubr.bf16.mxu0 0
      %3572 = vmatmul.mubr.bf16.gmra.mrb[0].mxu0 %v2437
      %v3573 = vpop.f32.mrb[0].mxu0
      %v3574 = vadd.f32 0.0, %v3573
      %v3575 = vpop.f32.mrb[0].mxu0
      %v3576 = vpop.f32.mrb[0].mxu0
      %v3577 = vadd.f32 0.0, %v3576
      %v3578 = vpop.f32.mrb[0].mxu0
      %3579 = vmatprep.mubr.bf16.mxu0 0
      %3580 = vmatmul.mubr.bf16.gmra.mrb[0].mxu0 %v2440
      %v3581 = vpop.f32.mrb[0].mxu0
      %v3582 = vadd.f32 0.0, %v3581
      %v3583 = vpop.f32.mrb[0].mxu0
      %v3584 = vpop.f32.mrb[0].mxu0
      %v3585 = vadd.f32 0.0, %v3584
      %v3586 = vpop.f32.mrb[0].mxu0
      %3587 = vmatprep.mubr.bf16.mxu0 0
      %3588 = vmatmul.mubr.bf16.gmra.mrb[0].mxu0 %v2443
      %v3589 = vpop.f32.mrb[0].mxu0
      %v3590 = vadd.f32 0.0, %v3589
      %v3591 = vpop.f32.mrb[0].mxu0
      %v3592 = vpop.f32.mrb[0].mxu0
      %v3593 = vadd.f32 0.0, %v3592
      %v3594 = vpop.f32.mrb[0].mxu0
      %3595 = vmatprep.mubr.bf16.mxu0 0
      %3596 = vmatmul.mubr.bf16.gmra.mrb[0].mxu0 %v2446
      %v3597 = vpop.f32.mrb[0].mxu0
      %v3598 = vadd.f32 0.0, %v3597
      %v3599 = vpop.f32.mrb[0].mxu0
      %v3600 = vpop.f32.mrb[0].mxu0
      %v3601 = vadd.f32 0.0, %v3600
      %v3602 = vpop.f32.mrb[0].mxu0
      %3603 = vmatprep.mubr.bf16.mxu0 0
      %3604 = vmatmul.mubr.bf16.gmra.mrb[0].mxu0 %v2449
      %v3605 = vpop.f32.mrb[0].mxu0
      %v3606 = vadd.f32 0.0, %v3605
      %v3607 = vpop.f32.mrb[0].mxu0
      %v3608 = vpop.f32.mrb[0].mxu0
      %v3609 = vadd.f32 0.0, %v3608
      %v3610 = vpop.f32.mrb[0].mxu0
      %3611 = vmatprep.mubr.bf16.mxu0 0
      %3612 = vmatmul.mubr.bf16.gmra.mrb[0].mxu0 %v2452
      %v3613 = vpop.f32.mrb[0].mxu0
      %v3614 = vadd.f32 0.0, %v3613
      %v3615 = vpop.f32.mrb[0].mxu0
      %v3616 = vpop.f32.mrb[0].mxu0
      %v3617 = vadd.f32 0.0, %v3616
      %v3618 = vpop.f32.mrb[0].mxu0
      %3619 = vmatprep.mubr.bf16.mxu0 0
      %3620 = vmatmul.mubr.bf16.gmra.mrb[0].mxu0 %v2455
      %v3621 = vpop.f32.mrb[0].mxu0
      %v3622 = vadd.f32 0.0, %v3621
      %v3623 = vpop.f32.mrb[0].mxu0
      %v3624 = vpop.f32.mrb[0].mxu0
      %v3625 = vadd.f32 0.0, %v3624
      %v3626 = vpop.f32.mrb[0].mxu0
      %3627 = vmatprep.mubr.bf16.mxu0 0
      %3628 = vmatmul.mubr.bf16.gmra.mrb[0].mxu0 %v2458
      %v3629 = vpop.f32.mrb[0].mxu0
      %v3630 = vadd.f32 0.0, %v3629
      %v3631 = vpop.f32.mrb[0].mxu0
      %v3632 = vpop.f32.mrb[0].mxu0
      %v3633 = vadd.f32 0.0, %v3632
      %v3634 = vpop.f32.mrb[0].mxu0
      %3635 = vdwg.mxu0
      %v3637 = vsel %vm1251, %v3533, 0
      %3639 = vmatprep.subr.bf16.mxu0 0
      %3640 = vmatpush1.bf16.msra.mxu0 %v3637
      %3641 = vmatprep.subr.bf16.mxu0 0
      %3642 = vmatpush1.bf16.msra.mxu0 0
      %3643 = vmatprep.subr.bf16.mxu0 0
      %3644 = vmatpush1.bf16.msra.mxu0 0
      %3645 = vmatprep.subr.bf16.mxu0 0
      %3646 = vmatpush1.bf16.msra.mxu0 0
      %3647 = vmatprep.subr.bf16.mxu0 0
      %3648 = vmatpush1.bf16.msra.mxu0 0
      %3649 = vmatprep.subr.bf16.mxu0 0
      %3650 = vmatpush1.bf16.msra.mxu0 0
      %3651 = vmatprep.subr.bf16.mxu0 0
      %3652 = vmatpush1.bf16.msra.mxu0 0
      %3653 = vmatprep.subr.bf16.mxu0 0
      %3654 = vmatpush1.bf16.msra.mxu0 0
      %3655 = vmatprep.subr.bf16.mxu0 0
      %3656 = vmatpush1.bf16.msra.mxu0 0
      %3657 = vmatprep.subr.bf16.mxu0 0
      %3658 = vmatpush1.bf16.msra.mxu0 0
      %3659 = vmatprep.subr.bf16.mxu0 0
      %3660 = vmatpush1.bf16.msra.mxu0 0
      %3661 = vmatprep.subr.bf16.mxu0 0
      %3662 = vmatpush1.bf16.msra.mxu0 0
      %3663 = vmatprep.subr.bf16.mxu0 0
      %3664 = vmatpush1.bf16.msra.mxu0 0
      %3665 = vmatprep.subr.bf16.mxu0 0
      %3666 = vmatpush1.bf16.msra.mxu0 0
      %3667 = vmatprep.subr.bf16.mxu0 0
      %3668 = vmatpush1.bf16.msra.mxu0 0
      %3669 = vmatprep.subr.bf16.mxu0 0
      %3670 = vmatpush1.bf16.msra.mxu0 0
      %3671 = vmatprep.mubr.bf16.mxu0 0
      %3672 = vmatmul.mubr.bf16.gmra.mrb[0].mxu0 %v1709
      %v3673 = vpop.f32.mrb[0].mxu0
      %v3674 = vadd.f32 %v3574, %v3673
      %v3675 = vpop.f32.mrb[0].mxu0
      %v3676 = vpop.f32.mrb[0].mxu0
      %v3677 = vadd.f32 %v3577, %v3676
      %v3678 = vpop.f32.mrb[0].mxu0
      %3679 = vmatprep.mubr.bf16.mxu0 0
      %3680 = vmatmul.mubr.bf16.gmra.mrb[0].mxu0 %v1712
      %v3681 = vpop.f32.mrb[0].mxu0
      %v3682 = vadd.f32 %v3582, %v3681
      %v3683 = vpop.f32.mrb[0].mxu0
      %v3684 = vpop.f32.mrb[0].mxu0
      %v3685 = vadd.f32 %v3585, %v3684
      %v3686 = vpop.f32.mrb[0].mxu0
      %3687 = vmatprep.mubr.bf16.mxu0 0
      %3688 = vmatmul.mubr.bf16.gmra.mrb[0].mxu0 %v1715
      %v3689 = vpop.f32.mrb[0].mxu0
      %v3690 = vadd.f32 %v3590, %v3689
      %v3691 = vpop.f32.mrb[0].mxu0
      %v3692 = vpop.f32.mrb[0].mxu0
      %v3693 = vadd.f32 %v3593, %v3692
      %v3694 = vpop.f32.mrb[0].mxu0
      %3695 = vmatprep.mubr.bf16.mxu0 0
      %3696 = vmatmul.mubr.bf16.gmra.mrb[0].mxu0 %v1718
      %v3697 = vpop.f32.mrb[0].mxu0
      %v3698 = vadd.f32 %v3598, %v3697
      %v3699 = vpop.f32.mrb[0].mxu0
      %v3700 = vpop.f32.mrb[0].mxu0
      %v3701 = vadd.f32 %v3601, %v3700
      %v3702 = vpop.f32.mrb[0].mxu0
      %3703 = vmatprep.mubr.bf16.mxu0 0
      %3704 = vmatmul.mubr.bf16.gmra.mrb[0].mxu0 %v1721
      %v3705 = vpop.f32.mrb[0].mxu0
      %v3706 = vadd.f32 %v3606, %v3705
      %v3707 = vpop.f32.mrb[0].mxu0
      %v3708 = vpop.f32.mrb[0].mxu0
      %v3709 = vadd.f32 %v3609, %v3708
      %v3710 = vpop.f32.mrb[0].mxu0
      %3711 = vmatprep.mubr.bf16.mxu0 0
      %3712 = vmatmul.mubr.bf16.gmra.mrb[0].mxu0 %v1724
      %v3713 = vpop.f32.mrb[0].mxu0
      %v3714 = vadd.f32 %v3614, %v3713
      %v3715 = vpop.f32.mrb[0].mxu0
      %v3716 = vpop.f32.mrb[0].mxu0
      %v3717 = vadd.f32 %v3617, %v3716
      %v3718 = vpop.f32.mrb[0].mxu0
      %3719 = vmatprep.mubr.bf16.mxu0 0
      %3720 = vmatmul.mubr.bf16.gmra.mrb[0].mxu0 %v1727
      %v3721 = vpop.f32.mrb[0].mxu0
      %v3722 = vadd.f32 %v3622, %v3721
      %v3723 = vpop.f32.mrb[0].mxu0
      %v3724 = vpop.f32.mrb[0].mxu0
      %v3725 = vadd.f32 %v3625, %v3724
      %v3726 = vpop.f32.mrb[0].mxu0
      %3727 = vmatprep.mubr.bf16.mxu0 0
      %3728 = vmatmul.mubr.bf16.gmra.mrb[0].mxu0 %v1730
      %v3729 = vpop.f32.mrb[0].mxu0
      %v3730 = vadd.f32 %v3630, %v3729
      %v3731 = vpop.f32.mrb[0].mxu0
      %v3732 = vpop.f32.mrb[0].mxu0
      %v3733 = vadd.f32 %v3633, %v3732
      %v3734 = vpop.f32.mrb[0].mxu0
      %3735 = vdwg.mxu0
      %s3736 = scalar_lea.vmem %s1, 28
      %v3737 = vld [vmem:[%s3736] sm:$0x3]
      %v3739 = vsel %vm1251, %v3737, 0
      %3741 = vmatprep.subr.bf16.mxu0 0
      %3742 = vmatpush1.bf16.msra.mxu0 %v3739
      %3743 = vmatprep.subr.bf16.mxu0 0
      %3744 = vmatpush1.bf16.msra.mxu0 0
      %3745 = vmatprep.subr.bf16.mxu0 0
      %3746 = vmatpush1.bf16.msra.mxu0 0
      %3747 = vmatprep.subr.bf16.mxu0 0
      %3748 = vmatpush1.bf16.msra.mxu0 0
      %3749 = vmatprep.subr.bf16.mxu0 0
      %3750 = vmatpush1.bf16.msra.mxu0 0
      %3751 = vmatprep.subr.bf16.mxu0 0
      %3752 = vmatpush1.bf16.msra.mxu0 0
      %3753 = vmatprep.subr.bf16.mxu0 0
      %3754 = vmatpush1.bf16.msra.mxu0 0
      %3755 = vmatprep.subr.bf16.mxu0 0
      %3756 = vmatpush1.bf16.msra.mxu0 0
      %3757 = vmatprep.subr.bf16.mxu0 0
      %3758 = vmatpush1.bf16.msra.mxu0 0
      %3759 = vmatprep.subr.bf16.mxu0 0
      %3760 = vmatpush1.bf16.msra.mxu0 0
      %3761 = vmatprep.subr.bf16.mxu0 0
      %3762 = vmatpush1.bf16.msra.mxu0 0
      %3763 = vmatprep.subr.bf16.mxu0 0
      %3764 = vmatpush1.bf16.msra.mxu0 0
      %3765 = vmatprep.subr.bf16.mxu0 0
      %3766 = vmatpush1.bf16.msra.mxu0 0
      %3767 = vmatprep.subr.bf16.mxu0 0
      %3768 = vmatpush1.bf16.msra.mxu0 0
      %3769 = vmatprep.subr.bf16.mxu0 0
      %3770 = vmatpush1.bf16.msra.mxu0 0
      %3771 = vmatprep.subr.bf16.mxu0 0
      %3772 = vmatpush1.bf16.msra.mxu0 0
      %3773 = vmatprep.mubr.bf16.mxu0 0
      %3774 = vmatmul.mubr.bf16.gmra.mrb[0].mxu0 %v3203
      %v3775 = vpop.f32.mrb[0].mxu0
      %v3776 = vadd.f32 0.0, %v3775
      %v3777 = vpop.f32.mrb[0].mxu0
      %v3778 = vpop.f32.mrb[0].mxu0
      %v3779 = vadd.f32 0.0, %v3778
      %v3780 = vpop.f32.mrb[0].mxu0
      %3781 = vmatprep.mubr.bf16.mxu0 0
      %3782 = vmatmul.mubr.bf16.gmra.mrb[0].mxu0 %v3206
      %v3783 = vpop.f32.mrb[0].mxu0
      %v3784 = vadd.f32 0.0, %v3783
      %v3785 = vpop.f32.mrb[0].mxu0
      %v3786 = vpop.f32.mrb[0].mxu0
      %v3787 = vadd.f32 0.0, %v3786
      %v3788 = vpop.f32.mrb[0].mxu0
      %3789 = vmatprep.mubr.bf16.mxu0 0
      %3790 = vmatmul.mubr.bf16.gmra.mrb[0].mxu0 %v3209
      %v3791 = vpop.f32.mrb[0].mxu0
      %v3792 = vadd.f32 0.0, %v3791
      %v3793 = vpop.f32.mrb[0].mxu0
      %v3794 = vpop.f32.mrb[0].mxu0
      %v3795 = vadd.f32 0.0, %v3794
      %v3796 = vpop.f32.mrb[0].mxu0
      %3797 = vmatprep.mubr.bf16.mxu0 0
      %3798 = vmatmul.mubr.bf16.gmra.mrb[0].mxu0 %v3212
      %v3799 = vpop.f32.mrb[0].mxu0
      %v3800 = vadd.f32 0.0, %v3799
      %v3801 = vpop.f32.mrb[0].mxu0
      %v3802 = vpop.f32.mrb[0].mxu0
      %v3803 = vadd.f32 0.0, %v3802
      %v3804 = vpop.f32.mrb[0].mxu0
      %3805 = vmatprep.mubr.bf16.mxu0 0
      %3806 = vmatmul.mubr.bf16.gmra.mrb[0].mxu0 %v3215
      %v3807 = vpop.f32.mrb[0].mxu0
      %v3808 = vadd.f32 0.0, %v3807
      %v3809 = vpop.f32.mrb[0].mxu0
      %v3810 = vpop.f32.mrb[0].mxu0
      %v3811 = vadd.f32 0.0, %v3810
      %v3812 = vpop.f32.mrb[0].mxu0
      %3813 = vmatprep.mubr.bf16.mxu0 0
      %3814 = vmatmul.mubr.bf16.gmra.mrb[0].mxu0 %v3218
      %v3815 = vpop.f32.mrb[0].mxu0
      %v3816 = vadd.f32 0.0, %v3815
      %v3817 = vpop.f32.mrb[0].mxu0
      %v3818 = vpop.f32.mrb[0].mxu0
      %v3819 = vadd.f32 0.0, %v3818
      %v3820 = vpop.f32.mrb[0].mxu0
      %3821 = vmatprep.mubr.bf16.mxu0 0
      %3822 = vmatmul.mubr.bf16.gmra.mrb[0].mxu0 %v3221
      %v3823 = vpop.f32.mrb[0].mxu0
      %v3824 = vadd.f32 0.0, %v3823
      %v3825 = vpop.f32.mrb[0].mxu0
      %v3826 = vpop.f32.mrb[0].mxu0
      %v3827 = vadd.f32 0.0, %v3826
      %v3828 = vpop.f32.mrb[0].mxu0
      %3829 = vmatprep.mubr.bf16.mxu0 0
      %3830 = vmatmul.mubr.bf16.gmra.mrb[0].mxu0 %v3224
      %v3831 = vpop.f32.mrb[0].mxu0
      %v3832 = vadd.f32 0.0, %v3831
      %v3833 = vpop.f32.mrb[0].mxu0
      %v3834 = vpop.f32.mrb[0].mxu0
      %v3835 = vadd.f32 0.0, %v3834
      %v3836 = vpop.f32.mrb[0].mxu0
      %3837 = vdwg.mxu0
      %v3838 = vadd.f32 %v3674, %v3776
      %v3839 = vadd.f32 %v3677, %v3779
      %v3840 = vadd.f32 %v3682, %v3784
      %v3841 = vadd.f32 %v3685, %v3787
      %v3842 = vadd.f32 %v3690, %v3792
      %v3843 = vadd.f32 %v3693, %v3795
      %v3844 = vadd.f32 %v3698, %v3800
      %v3845 = vadd.f32 %v3701, %v3803
      %v3846 = vadd.f32 %v3706, %v3808
      %v3847 = vadd.f32 %v3709, %v3811
      %v3848 = vadd.f32 %v3714, %v3816
      %v3849 = vadd.f32 %v3717, %v3819
      %v3850 = vadd.f32 %v3722, %v3824
      %v3851 = vadd.f32 %v3725, %v3827
      %v3852 = vadd.f32 %v3730, %v3832
      %v3853 = vadd.f32 %v3733, %v3835
      %s3854 = scalar_lea.vmem %s1, 30
      %v3855 = vld [vmem:[%s3854] sm:$0x3]
      %v3856 = vunpack.c.l.b16 %v1146
      %v3857 = vunpack.c.l.b16 %v1149
      %v3858 = vunpack.c.l.b16 %v1153
      %v3859 = vunpack.c.l.b16 %v1156
      %v3860 = vunpack.c.l.b16 %v1160
      %v3861 = vunpack.c.l.b16 %v1163
      %v3862 = vunpack.c.l.b16 %v1167
      %v3863 = vunpack.c.l.b16 %v1170
      %v3864 = vunpack.c.l.b16 %v1174
      %v3865 = vunpack.c.l.b16 %v1177
      %v3866 = vunpack.c.l.b16 %v1181
      %v3867 = vunpack.c.l.b16 %v1184
      %v3868 = vunpack.c.l.b16 %v1188
      %v3869 = vunpack.c.l.b16 %v1191
      %v3870 = vunpack.c.l.b16 %v1195
      %v3871 = vunpack.c.l.b16 %v1198
      %v3872 = vpack.c.b16 %v3857, %v3856
      %v3873 = vpack.c.b16 %v3859, %v3858
      %v3874 = vpack.c.b16 %v3861, %v3860
      %v3875 = vpack.c.b16 %v3863, %v3862
      %v3876 = vpack.c.b16 %v3865, %v3864
      %v3877 = vpack.c.b16 %v3867, %v3866
      %v3878 = vpack.c.b16 %v3869, %v3868
      %v3879 = vpack.c.b16 %v3871, %v3870
      %v3881 = vsel %vm1226, %v3872, 0
      %v3884 = vsel %vm1226, %v3873, 0
      %v3887 = vsel %vm1226, %v3874, 0
      %v3890 = vsel %vm1226, %v3875, 0
      %v3893 = vsel %vm1226, %v3876, 0
      %v3896 = vsel %vm1226, %v3877, 0
      %v3899 = vsel %vm1226, %v3878, 0
      %v3902 = vsel %vm1226, %v3879, 0
      %v3905 = vsel %vm1251, %v3855, 0
      %3907 = vmatprep.subr.bf16.mxu0 0
      %3908 = vmatpush1.bf16.msra.mxu0 %v3905
      %3909 = vmatprep.subr.bf16.mxu0 0
      %3910 = vmatpush1.bf16.msra.mxu0 0
      %3911 = vmatprep.subr.bf16.mxu0 0
      %3912 = vmatpush1.bf16.msra.mxu0 0
      %3913 = vmatprep.subr.bf16.mxu0 0
      %3914 = vmatpush1.bf16.msra.mxu0 0
      %3915 = vmatprep.subr.bf16.mxu0 0
      %3916 = vmatpush1.bf16.msra.mxu0 0
      %3917 = vmatprep.subr.bf16.mxu0 0
      %3918 = vmatpush1.bf16.msra.mxu0 0
      %3919 = vmatprep.subr.bf16.mxu0 0
      %3920 = vmatpush1.bf16.msra.mxu0 0
      %3921 = vmatprep.subr.bf16.mxu0 0
      %3922 = vmatpush1.bf16.msra.mxu0 0
      %3923 = vmatprep.subr.bf16.mxu0 0
      %3924 = vmatpush1.bf16.msra.mxu0 0
      %3925 = vmatprep.subr.bf16.mxu0 0
      %3926 = vmatpush1.bf16.msra.mxu0 0
      %3927 = vmatprep.subr.bf16.mxu0 0
      %3928 = vmatpush1.bf16.msra.mxu0 0
      %3929 = vmatprep.subr.bf16.mxu0 0
      %3930 = vmatpush1.bf16.msra.mxu0 0
      %3931 = vmatprep.subr.bf16.mxu0 0
      %3932 = vmatpush1.bf16.msra.mxu0 0
      %3933 = vmatprep.subr.bf16.mxu0 0
      %3934 = vmatpush1.bf16.msra.mxu0 0
      %3935 = vmatprep.subr.bf16.mxu0 0
      %3936 = vmatpush1.bf16.msra.mxu0 0
      %3937 = vmatprep.subr.bf16.mxu0 0
      %3938 = vmatpush1.bf16.msra.mxu0 0
      %3939 = vmatprep.mubr.bf16.mxu0 0
      %3940 = vmatmul.mubr.bf16.gmra.mrb[0].mxu0 %v3881
      %v3941 = vpop.f32.mrb[0].mxu0
      %v3942 = vadd.f32 0.0, %v3941
      %v3943 = vpop.f32.mrb[0].mxu0
      %v3944 = vpop.f32.mrb[0].mxu0
      %v3945 = vadd.f32 0.0, %v3944
      %v3946 = vpop.f32.mrb[0].mxu0
      %3947 = vmatprep.mubr.bf16.mxu0 0
      %3948 = vmatmul.mubr.bf16.gmra.mrb[0].mxu0 %v3884
      %v3949 = vpop.f32.mrb[0].mxu0
      %v3950 = vadd.f32 0.0, %v3949
      %v3951 = vpop.f32.mrb[0].mxu0
      %v3952 = vpop.f32.mrb[0].mxu0
      %v3953 = vadd.f32 0.0, %v3952
      %v3954 = vpop.f32.mrb[0].mxu0
      %3955 = vmatprep.mubr.bf16.mxu0 0
      %3956 = vmatmul.mubr.bf16.gmra.mrb[0].mxu0 %v3887
      %v3957 = vpop.f32.mrb[0].mxu0
      %v3958 = vadd.f32 0.0, %v3957
      %v3959 = vpop.f32.mrb[0].mxu0
      %v3960 = vpop.f32.mrb[0].mxu0
      %v3961 = vadd.f32 0.0, %v3960
      %v3962 = vpop.f32.mrb[0].mxu0
      %3963 = vmatprep.mubr.bf16.mxu0 0
      %3964 = vmatmul.mubr.bf16.gmra.mrb[0].mxu0 %v3890
      %v3965 = vpop.f32.mrb[0].mxu0
      %v3966 = vadd.f32 0.0, %v3965
      %v3967 = vpop.f32.mrb[0].mxu0
      %v3968 = vpop.f32.mrb[0].mxu0
      %v3969 = vadd.f32 0.0, %v3968
      %v3970 = vpop.f32.mrb[0].mxu0
      %3971 = vmatprep.mubr.bf16.mxu0 0
      %3972 = vmatmul.mubr.bf16.gmra.mrb[0].mxu0 %v3893
      %v3973 = vpop.f32.mrb[0].mxu0
      %v3974 = vadd.f32 0.0, %v3973
      %v3975 = vpop.f32.mrb[0].mxu0
      %v3976 = vpop.f32.mrb[0].mxu0
      %v3977 = vadd.f32 0.0, %v3976
      %v3978 = vpop.f32.mrb[0].mxu0
      %3979 = vmatprep.mubr.bf16.mxu0 0
      %3980 = vmatmul.mubr.bf16.gmra.mrb[0].mxu0 %v3896
      %v3981 = vpop.f32.mrb[0].mxu0
      %v3982 = vadd.f32 0.0, %v3981
      %v3983 = vpop.f32.mrb[0].mxu0
      %v3984 = vpop.f32.mrb[0].mxu0
      %v3985 = vadd.f32 0.0, %v3984
      %v3986 = vpop.f32.mrb[0].mxu0
      %3987 = vmatprep.mubr.bf16.mxu0 0
      %3988 = vmatmul.mubr.bf16.gmra.mrb[0].mxu0 %v3899
      %v3989 = vpop.f32.mrb[0].mxu0
      %v3990 = vadd.f32 0.0, %v3989
      %v3991 = vpop.f32.mrb[0].mxu0
      %v3992 = vpop.f32.mrb[0].mxu0
      %v3993 = vadd.f32 0.0, %v3992
      %v3994 = vpop.f32.mrb[0].mxu0
      %3995 = vmatprep.mubr.bf16.mxu0 0
      %3996 = vmatmul.mubr.bf16.gmra.mrb[0].mxu0 %v3902
      %v3997 = vpop.f32.mrb[0].mxu0
      %v3998 = vadd.f32 0.0, %v3997
      %v3999 = vpop.f32.mrb[0].mxu0
      %v4000 = vpop.f32.mrb[0].mxu0
      %v4001 = vadd.f32 0.0, %v4000
      %v4002 = vpop.f32.mrb[0].mxu0
      %4003 = vdwg.mxu0
      %v4004 = vadd.f32 %v3838, %v3942
      %v4005 = vadd.f32 %v3839, %v3945
      %v4006 = vadd.f32 %v3840, %v3950
      %v4007 = vadd.f32 %v3841, %v3953
      %v4008 = vadd.f32 %v3842, %v3958
      %v4009 = vadd.f32 %v3843, %v3961
      %v4010 = vadd.f32 %v3844, %v3966
      %v4011 = vadd.f32 %v3845, %v3969
      %v4012 = vadd.f32 %v3846, %v3974
      %v4013 = vadd.f32 %v3847, %v3977
      %v4014 = vadd.f32 %v3848, %v3982
      %v4015 = vadd.f32 %v3849, %v3985
      %v4016 = vadd.f32 %v3850, %v3990
      %v4017 = vadd.f32 %v3851, %v3993
      %v4018 = vadd.f32 %v3852, %v3998
      %v4019 = vadd.f32 %v3853, %v4001
      %v4020 = vsel %vm1848, %v4004, 0.0
      %v4021 = vsel %vm1848, %v4005, 0.0
      %v4022 = vadd.f32 %v4020, %v4021
      %v4023 = vsel %vm1848, %v4006, 0.0
      %v4024 = vadd.f32 %v4022, %v4023
      %v4025 = vsel %vm1848, %v4007, 0.0
      %v4026 = vadd.f32 %v4024, %v4025
      %v4027 = vsel %vm1848, %v4008, 0.0
      %v4028 = vadd.f32 %v4026, %v4027
      %v4029 = vsel %vm1848, %v4009, 0.0
      %v4030 = vadd.f32 %v4028, %v4029
      %v4031 = vsel %vm1848, %v4010, 0.0
      %v4032 = vadd.f32 %v4030, %v4031
      %v4033 = vsel %vm1848, %v4011, 0.0
      %v4034 = vadd.f32 %v4032, %v4033
      %v4035 = vsel %vm1848, %v4012, 0.0
      %v4036 = vadd.f32 %v4034, %v4035
      %v4037 = vsel %vm1848, %v4013, 0.0
      %v4038 = vadd.f32 %v4036, %v4037
      %v4039 = vsel %vm1848, %v4014, 0.0
      %v4040 = vadd.f32 %v4038, %v4039
      %v4041 = vsel %vm1848, %v4015, 0.0
      %v4042 = vadd.f32 %v4040, %v4041
      %v4043 = vsel %vm1848, %v4016, 0.0
      %v4044 = vadd.f32 %v4042, %v4043
      %v4045 = vsel %vm1848, %v4017, 0.0
      %v4046 = vadd.f32 %v4044, %v4045
      %v4047 = vsel %vm1848, %v4018, 0.0
      %v4048 = vadd.f32 %v4046, %v4047
      %v4049 = vsel %vm1848, %v4019, 0.0
      %v4050 = vadd.f32 %v4048, %v4049
      %v4051 = vrot.slane %v4050, 4
      %v4052 = vadd.f32 %v4050, %v4051
      %v4053 = vrot.slane %v4052, 2
      %v4054 = vadd.f32 %v4052, %v4053
      %v4055 = vrot.slane %v4054, 1
      %v4056 = vadd.f32 %v4054, %v4055
      %v4057 = vmul.f32 %v4056, 0.0078125
      %v4058 = vsub.f32 %v4004, %v4057
      %v4059 = vsub.f32 %v4005, %v4057
      %v4060 = vsub.f32 %v4006, %v4057
      %v4061 = vsub.f32 %v4007, %v4057
      %v4062 = vsub.f32 %v4008, %v4057
      %v4063 = vsub.f32 %v4009, %v4057
      %v4064 = vsub.f32 %v4010, %v4057
      %v4065 = vsub.f32 %v4011, %v4057
      %v4066 = vsub.f32 %v4012, %v4057
      %v4067 = vsub.f32 %v4013, %v4057
      %v4068 = vsub.f32 %v4014, %v4057
      %v4069 = vsub.f32 %v4015, %v4057
      %v4070 = vsub.f32 %v4016, %v4057
      %v4071 = vsub.f32 %v4017, %v4057
      %v4072 = vsub.f32 %v4018, %v4057
      %v4073 = vsub.f32 %v4019, %v4057
      %v4074 = vmul.f32 %v4058, %v4058
      %v4075 = vmul.f32 %v4059, %v4059
      %v4076 = vmul.f32 %v4060, %v4060
      %v4077 = vmul.f32 %v4061, %v4061
      %v4078 = vmul.f32 %v4062, %v4062
      %v4079 = vmul.f32 %v4063, %v4063
      %v4080 = vmul.f32 %v4064, %v4064
      %v4081 = vmul.f32 %v4065, %v4065
      %v4082 = vmul.f32 %v4066, %v4066
      %v4083 = vmul.f32 %v4067, %v4067
      %v4084 = vmul.f32 %v4068, %v4068
      %v4085 = vmul.f32 %v4069, %v4069
      %v4086 = vmul.f32 %v4070, %v4070
      %v4087 = vmul.f32 %v4071, %v4071
      %v4088 = vmul.f32 %v4072, %v4072
      %v4089 = vmul.f32 %v4073, %v4073
      %v4090 = vsel %vm1848, %v4074, 0.0
      %v4091 = vsel %vm1848, %v4075, 0.0
      %v4092 = vadd.f32 %v4090, %v4091
      %v4093 = vsel %vm1848, %v4076, 0.0
      %v4094 = vadd.f32 %v4092, %v4093
      %v4095 = vsel %vm1848, %v4077, 0.0
      %v4096 = vadd.f32 %v4094, %v4095
      %v4097 = vsel %vm1848, %v4078, 0.0
      %v4098 = vadd.f32 %v4096, %v4097
      %v4099 = vsel %vm1848, %v4079, 0.0
      %v4100 = vadd.f32 %v4098, %v4099
      %v4101 = vsel %vm1848, %v4080, 0.0
      %v4102 = vadd.f32 %v4100, %v4101
      %v4103 = vsel %vm1848, %v4081, 0.0
      %v4104 = vadd.f32 %v4102, %v4103
      %v4105 = vsel %vm1848, %v4082, 0.0
      %v4106 = vadd.f32 %v4104, %v4105
      %v4107 = vsel %vm1848, %v4083, 0.0
      %v4108 = vadd.f32 %v4106, %v4107
      %v4109 = vsel %vm1848, %v4084, 0.0
      %v4110 = vadd.f32 %v4108, %v4109
      %v4111 = vsel %vm1848, %v4085, 0.0
      %v4112 = vadd.f32 %v4110, %v4111
      %v4113 = vsel %vm1848, %v4086, 0.0
      %v4114 = vadd.f32 %v4112, %v4113
      %v4115 = vsel %vm1848, %v4087, 0.0
      %v4116 = vadd.f32 %v4114, %v4115
      %v4117 = vsel %vm1848, %v4088, 0.0
      %v4118 = vadd.f32 %v4116, %v4117
      %v4119 = vsel %vm1848, %v4089, 0.0
      %v4120 = vadd.f32 %v4118, %v4119
      %v4121 = vrot.slane %v4120, 4
      %v4122 = vadd.f32 %v4120, %v4121
      %v4123 = vrot.slane %v4122, 2
      %v4124 = vadd.f32 %v4122, %v4123
      %v4125 = vrot.slane %v4124, 1
      %v4126 = vadd.f32 %v4124, %v4125
      %4127 = vst.msk [vmem:[%s269 + $0x3] sm:$0x1] %vm1956, %v4056
      %4128 = vst.msk [vmem:[%s277 + $0x3] sm:$0x1] %vm1956, %v4126
      %v4129 = vpack.c.bf16 %v4005, %v4004
      %v4130 = vpack.c.bf16 %v4007, %v4006
      %v4131 = vpack.c.bf16 %v4009, %v4008
      %v4132 = vpack.c.bf16 %v4011, %v4010
      %v4133 = vpack.c.bf16 %v4013, %v4012
      %v4134 = vpack.c.bf16 %v4015, %v4014
      %v4135 = vpack.c.bf16 %v4017, %v4016
      %v4136 = vpack.c.bf16 %v4019, %v4018
      %v4145 = vunpack.c.l.b16 %v4129
      %v4146 = vunpack.c.h.b16 %v4129
      %v4147 = vunpack.c.l.b16 %v4130
      %v4148 = vunpack.c.h.b16 %v4130
      %v4149 = vunpack.c.l.b16 %v4131
      %v4150 = vunpack.c.h.b16 %v4131
      %v4151 = vunpack.c.l.b16 %v4132
      %v4152 = vunpack.c.h.b16 %v4132
      %v4153 = vunpack.c.l.b16 %v4133
      %v4154 = vunpack.c.h.b16 %v4133
      %v4155 = vunpack.c.l.b16 %v4134
      %v4156 = vunpack.c.h.b16 %v4134
      %v4157 = vunpack.c.l.b16 %v4135
      %v4158 = vunpack.c.h.b16 %v4135
      %v4159 = vunpack.c.l.b16 %v4136
      %v4160 = vunpack.c.h.b16 %v4136
      %v4161 = vpack.c.b16 %v4145, %v4145
      %v4162 = vpack.c.b16 %v4146, %v4146
      %v4163 = vpack.c.b16 %v4147, %v4147
      %v4164 = vpack.c.b16 %v4148, %v4148
      %v4165 = vpack.c.b16 %v4149, %v4149
      %v4166 = vpack.c.b16 %v4150, %v4150
      %v4167 = vpack.c.b16 %v4151, %v4151
      %v4168 = vpack.c.b16 %v4152, %v4152
      %v4169 = vpack.c.b16 %v4153, %v4153
      %v4170 = vpack.c.b16 %v4154, %v4154
      %v4171 = vpack.c.b16 %v4155, %v4155
      %v4172 = vpack.c.b16 %v4156, %v4156
      %v4173 = vpack.c.b16 %v4157, %v4157
      %v4174 = vpack.c.b16 %v4158, %v4158
      %v4175 = vpack.c.b16 %v4159, %v4159
      %v4176 = vpack.c.b16 %v4160, %v4160
      %4177 = vrot.lane.b32.xlu0 %v4161, 8
      %v4178 = vpop.permute.xlu0 %4177
      %4179 = vrot.lane.b32.xlu0 %v4162, 8
      %v4180 = vpop.permute.xlu0 %4179
      %4181 = vrot.lane.b32.xlu0 %v4163, 8
      %v4182 = vpop.permute.xlu0 %4181
      %4183 = vrot.lane.b32.xlu0 %v4164, 8
      %v4184 = vpop.permute.xlu0 %4183
      %4185 = vrot.lane.b32.xlu0 %v4165, 8
      %v4186 = vpop.permute.xlu0 %4185
      %4187 = vrot.lane.b32.xlu0 %v4166, 8
      %v4188 = vpop.permute.xlu0 %4187
      %4189 = vrot.lane.b32.xlu0 %v4167, 8
      %v4190 = vpop.permute.xlu0 %4189
      %4191 = vrot.lane.b32.xlu0 %v4168, 8
      %v4192 = vpop.permute.xlu0 %4191
      %4193 = vrot.lane.b32.xlu0 %v4169, 8
      %v4194 = vpop.permute.xlu0 %4193
      %4195 = vrot.lane.b32.xlu0 %v4170, 8
      %v4196 = vpop.permute.xlu0 %4195
      %4197 = vrot.lane.b32.xlu0 %v4171, 8
      %v4198 = vpop.permute.xlu0 %4197
      %4199 = vrot.lane.b32.xlu0 %v4172, 8
      %v4200 = vpop.permute.xlu0 %4199
      %4201 = vrot.lane.b32.xlu0 %v4173, 8
      %v4202 = vpop.permute.xlu0 %4201
      %4203 = vrot.lane.b32.xlu0 %v4174, 8
      %v4204 = vpop.permute.xlu0 %4203
      %4205 = vrot.lane.b32.xlu0 %v4175, 8
      %v4206 = vpop.permute.xlu0 %4205
      %4207 = vrot.lane.b32.xlu0 %v4176, 8
      %v4208 = vpop.permute.xlu0 %4207
      %4225 = vst.msk [vmem:[%s3515] sm:$0xf] %vm2781, %v4178
      %4226 = vst.msk [vmem:[%s3515 + $0x4] sm:$0xf] %vm2781, %v4180
      %4227 = vst.msk [vmem:[%s3515 + $0x10] sm:$0xf] %vm2781, %v4182
      %4228 = vst.msk [vmem:[%s3515 + $0x14] sm:$0xf] %vm2781, %v4184
      %4229 = vst.msk [vmem:[%s3515 + $0x20] sm:$0xf] %vm2781, %v4186
      %4230 = vst.msk [vmem:[%s3515 + $0x24] sm:$0xf] %vm2781, %v4188
      %4231 = vst.msk [vmem:[%s3515 + $0x30] sm:$0xf] %vm2781, %v4190
      %4232 = vst.msk [vmem:[%s3515 + $0x34] sm:$0xf] %vm2781, %v4192
      %4233 = vst.msk [vmem:[%s3515 + $0x40] sm:$0xf] %vm2781, %v4194
      %4234 = vst.msk [vmem:[%s3515 + $0x44] sm:$0xf] %vm2781, %v4196
      %4235 = vst.msk [vmem:[%s3515 + $0x50] sm:$0xf] %vm2781, %v4198
      %4236 = vst.msk [vmem:[%s3515 + $0x54] sm:$0xf] %vm2781, %v4200
      %4237 = vst.msk [vmem:[%s3515 + $0x60] sm:$0xf] %vm2781, %v4202
      %4238 = vst.msk [vmem:[%s3515 + $0x64] sm:$0xf] %vm2781, %v4204
      %4239 = vst.msk [vmem:[%s3515 + $0x70] sm:$0xf] %vm2781, %v4206
      %4240 = vst.msk [vmem:[%s3515 + $0x74] sm:$0xf] %vm2781, %v4208
      %s4241 = smul.u32 8, %s21
      %p4242 = scmp.lt.s32.totalorder %s20, 1
      %s4243 = scalar_select %p4242, %s20, 1
      %p4244 = scmp.lt.s32.totalorder %s4241, 15
      %s4245 = scalar_select %p4244, %s4241, 15
      %s4246 = smul.addr %s4245, 4
      %s4247 = smul.addr %s4243, 64
      %s4248 = sadd.s32 %s4246, %s4247
      %s4249 = smul.addr %s4248, 4
      %s4250 = scalar_lea.vmem %s2, %s4249
      %p4251 = scmp.lt.s32.totalorder %s20, 1
      %s4252 = scalar_select %p4251, %s20, 1
      %p4253 = scmp.lt.s32.totalorder %s21, 1
      %s4254 = scalar_select %p4253, %s21, 1
      %s4255 = smul.addr %s4252, 2
      %s4256 = sadd.s32 %s4254, %s4255
      %s4257 = smul.addr %s4256, 4
      %s4258 = scalar_lea.vmem %s3, %s4257
      %p4259 = scmp.lt.s32.totalorder %s20, 1
      %s4260 = scalar_select %p4259, %s20, 1
      %p4261 = scmp.lt.s32.totalorder %s21, 1
      %s4262 = scalar_select %p4261, %s21, 1
      %s4263 = smul.addr %s4260, 2
      %s4264 = sadd.s32 %s4262, %s4263
      %s4265 = smul.addr %s4264, 4
      %s4266 = scalar_lea.vmem %s4, %s4265
      // Predicated region
      $region29: #{basic_layer_transpose.2} parent=27 // pred_check
        %p4267 = pneg %p97
      $region30: #{basic_layer_transpose.2} parent=27 // pred_check_branch
        %4269 = sbr.rel (%p4267) target = $region32
      $region31: #{basic_layer_transpose.2} parent=27 // pred_region
        %s4270 = smul.u32 8, %s21
      $region32: #{basic_layer_transpose.2} parent=27 // pred_fallthru
        _
      // Predicated region
      $region33: #{basic_layer_transpose.2} parent=27 // pred_check
        %p4271 = pneg %p125
      $region34: #{basic_layer_transpose.2} parent=27 // pred_check_branch
        %4273 = sbr.rel (%p4271) target = $region36
      $region35: #{basic_layer_transpose.2} parent=27 // pred_region
        _
      $region36: #{basic_layer_transpose.2} parent=27 // pred_fallthru
        _
      // Predicated region
      $region37: #{basic_layer_transpose.2} parent=27 // pred_check
        %p4274 = pneg %p153
      $region38: #{basic_layer_transpose.2} parent=27 // pred_check_branch
        %4276 = sbr.rel (%p4274) target = $region40
      $region39: #{basic_layer_transpose.2} parent=27 // pred_region
        _
      $region40: #{basic_layer_transpose.2} parent=27 // pred_fallthru
        _
    $region28: #{basic_layer_transpose.2} parent=5 // pred_fallthru
      _
    %p4277 = scmp.le.s32.totalorder 2, %s11
    // Predicated region
    $region41: #{basic_layer_transpose.2} parent=5 // pred_check
      %p4278 = pneg %p4277
    $region42: #{basic_layer_transpose.2} parent=5 // pred_check_branch
      %4280 = sbr.rel (%p4278) target = $region44
    $region43: #{basic_layer_transpose.2} parent=5 // pred_region
      %s4281 = ssub.s32 %s11, 2
      // Predicated region
      $region45: #{basic_layer_transpose.2} parent=43 // pred_check
        %p4282 = pneg %p103
      $region46: #{basic_layer_transpose.2} parent=43 // pred_check_branch
        %4284 = sbr.rel (%p4282) target = $region48
      $region47: #{basic_layer_transpose.2} parent=43 // pred_region
        %s4285 = smul.u32 8, %s23
        %p4286 = scmp.lt.s32.totalorder %s22, 1
        %s4287 = scalar_select %p4286, %s22, 1
        %p4288 = scmp.lt.s32.totalorder %s4285, 15
        %s4289 = scalar_select %p4288, %s4285, 15
        %s4290 = smul.addr %s4289, 4
        %s4291 = smul.addr %s4287, 64
        %s4292 = sadd.s32 %s4290, %s4291
        %s4293 = smul.addr %s4292, 4
        %s4294 = scalar_lea.vmem %s2, %s4293
      $region48: #{basic_layer_transpose.2} parent=43 // pred_fallthru
        _
      // Predicated region
      $region49: #{basic_layer_transpose.2} parent=43 // pred_check
        %p4295 = pneg %p131
      $region50: #{basic_layer_transpose.2} parent=43 // pred_check_branch
        %4297 = sbr.rel (%p4295) target = $region52
      $region51: #{basic_layer_transpose.2} parent=43 // pred_region
        %p4298 = scmp.lt.s32.totalorder %s22, 1
        %s4299 = scalar_select %p4298, %s22, 1
        %p4300 = scmp.lt.s32.totalorder %s23, 1
        %s4301 = scalar_select %p4300, %s23, 1
        %s4302 = smul.addr %s4299, 2
        %s4303 = sadd.s32 %s4301, %s4302
        %s4304 = smul.addr %s4303, 4
        %s4305 = scalar_lea.vmem %s3, %s4304
      $region52: #{basic_layer_transpose.2} parent=43 // pred_fallthru
        _
      // Predicated region
      $region53: #{basic_layer_transpose.2} parent=43 // pred_check
        %p4306 = pneg %p159
      $region54: #{basic_layer_transpose.2} parent=43 // pred_check_branch
        %4308 = sbr.rel (%p4306) target = $region56
      $region55: #{basic_layer_transpose.2} parent=43 // pred_region
        %p4309 = scmp.lt.s32.totalorder %s22, 1
        %s4310 = scalar_select %p4309, %s22, 1
        %p4311 = scmp.lt.s32.totalorder %s23, 1
        %s4312 = scalar_select %p4311, %s23, 1
        %s4313 = smul.addr %s4310, 2
        %s4314 = sadd.s32 %s4312, %s4313
        %s4315 = smul.addr %s4314, 4
        %s4316 = scalar_lea.vmem %s4, %s4315
      $region56: #{basic_layer_transpose.2} parent=43 // pred_fallthru
        _
    $region44: #{basic_layer_transpose.2} parent=5 // pred_fallthru
      _
  $region6: #{basic_layer_transpose.2} parent=0 // loop_footer
    %s15 = sadd.s32 1, %s11
  $region7: #{basic_layer_transpose.2} parent=0 // loop_footer_branch
    %10 = sbr.rel target = $region3
  $region8: #{basic_layer_transpose.2} parent=0 // loop_exit
    _

</llo_original>
